<compile_context>
chip_gen: v7x
topology: tpu7x:2x2x1
jax: 0.10.0
libtpu: 0.0.40
codegen_flags: <defaults>
</compile_context>

<pallas_src>
import jax
import jax.numpy as jnp
import numpy as np
from jax import lax
from jax.experimental import pallas as pl
from jax.experimental.pallas import tpu as pltpu

EPS = 1e-5
LANE = 128


def _round_up(v, m):
    return ((v + m - 1) // m) * m


# ----------------------------------------------------------------------------- kernels
def _gemm_bn_relu_kernel(lhs_ref, w_ref, g_ref, b_ref, o_ref):
    # lhs_ref: (M, K)  bf16 im2col slab        (lane-dense, K multiple of 128)
    # w_ref  : (K, CP) bf16 packed conv weight (CP multiple of 128)
    # g/b    : (1, CP) f32 BN affine params
    # o_ref  : (M, CP)
    acc = jnp.dot(lhs_ref[...], w_ref[...], preferred_element_type=jnp.float32)
    # training-mode BatchNorm2d: per-channel mean / biased var over M = N*H*W rows.
    mean = jnp.mean(acc, axis=0, keepdims=True)
    cen = acc - mean
    var = jnp.mean(cen * cen, axis=0, keepdims=True)
    y = cen * lax.rsqrt(var + EPS) * g_ref[...] + b_ref[...]
    o_ref[...] = jnp.maximum(y, 0.0).astype(o_ref.dtype)


def _gemm_bn_relu_residual_kernel(lhs_ref, w_ref, g_ref, b_ref, res_ref, o_ref):
    # Same as above, plus the (pre-aligned) identity shortcut add and final ReLU.
    acc = jnp.dot(lhs_ref[...], w_ref[...], preferred_element_type=jnp.float32)
    mean = jnp.mean(acc, axis=0, keepdims=True)
    cen = acc - mean
    var = jnp.mean(cen * cen, axis=0, keepdims=True)
    y = cen * lax.rsqrt(var + EPS) * g_ref[...] + b_ref[...]
    y = jnp.maximum(y, 0.0)
    o_ref[...] = jnp.maximum(res_ref[...] + y, 0.0).astype(o_ref.dtype)


_VMEM = pl.BlockSpec(memory_space=pltpu.MemorySpace.VMEM)


def _gemm_bn_relu(lhs, w, g, b, out_dtype):
    M = lhs.shape[0]
    CP = w.shape[1]
    return pl.pallas_call(
        _gemm_bn_relu_kernel,
        out_shape=jax.ShapeDtypeStruct((M, CP), out_dtype),
        in_specs=[_VMEM] * 4,
        out_specs=_VMEM,
    )(lhs, w, g, b)


def _gemm_bn_relu_residual(lhs, w, g, b, res, out_dtype):
    M = lhs.shape[0]
    CP = w.shape[1]
    return pl.pallas_call(
        _gemm_bn_relu_residual_kernel,
        out_shape=jax.ShapeDtypeStruct((M, CP), out_dtype),
        in_specs=[_VMEM] * 5,
        out_specs=_VMEM,
    )(lhs, w, g, b, res)


# -------------------------------------------------------------------- wrapper-side layout
def _im2col_3x3(x_nhwc):
    """3x3 / stride-1 / pad-1 im2col: (N,H,W,C) -> (N*H*W, 9*C). Pure XLA layout plumbing."""
    N, H, W, C = x_nhwc.shape
    xp = jnp.pad(x_nhwc, ((0, 0), (1, 1), (1, 1), (0, 0)))
    taps = [xp[:, kh:kh + H, kw:kw + W, :] for kh in range(3) for kw in range(3)]
    return jnp.concatenate(taps, axis=-1).reshape(N * H * W, 9 * C)


def _pack_weight(w_hwio, k_pad, c_pad):
    """(3,3,Cin,Cout) HWIO conv weight -> (k_pad, c_pad) GEMM weight (zero padded)."""
    kh, kw, cin, cout = w_hwio.shape
    wm = w_hwio.reshape(kh * kw * cin, cout)
    return jnp.pad(wm, ((0, k_pad - kh * kw * cin), (0, c_pad - cout)))


def _pack_bn(g, b, c_pad):
    cout = g.shape[0]
    gp = jnp.pad(g.astype(jnp.float32), (0, c_pad - cout), constant_values=1.0)
    bp = jnp.pad(b.astype(jnp.float32), (0, c_pad - cout))
    return gp.reshape(1, c_pad), bp.reshape(1, c_pad)


def residual_block_forward(x_nchw, params):
    """same_shape=True residual block. x_nchw: (N,C,H,W); params = (w1,g1,b1,w2,g2,b2), HWIO conv weights."""
    w1, g1, b1, w2, g2, b2 = params
    N, Cin, H, W = x_nchw.shape
    Cout = w1.shape[-1]
    CP = _round_up(max(Cout, Cin), LANE)            # lane-dense channel padding (multiple of 128)
    M = N * H * W                                   # batch folded into the GEMM M dimension

    x = jnp.transpose(x_nchw, (0, 2, 3, 1)).astype(jnp.float32)   # NCHW -> NHWC

    # ---- conv1 -> bn1 -> relu  (one GEMM, K = 9*Cin padded to 128) ----
    K1 = 9 * Cin
    K1P = _round_up(K1, LANE)
    lhs1 = jnp.pad(_im2col_3x3(x), ((0, 0), (0, K1P - K1))).astype(jnp.bfloat16)
    w1m = _pack_weight(w1, K1P, CP).astype(jnp.bfloat16)
    g1p, b1p = _pack_bn(g1, b1, CP)
    a1 = _gemm_bn_relu(lhs1, w1m, g1p, b1p, jnp.bfloat16)          # (M, CP); padded channels stay 0

    # ---- conv2 -> bn2 -> relu -> (+x) -> relu  (one GEMM, K = 9*CP, already lane-dense) ----
    lhs2 = _im2col_3x3(a1.reshape(N, H, W, CP))                    # (M, 9*CP) bf16
    w2p = jnp.zeros((3, 3, CP, CP), w2.dtype).at[:, :, :Cout, :Cout].set(w2)
    w2m = _pack_weight(w2p, 9 * CP, CP).astype(jnp.bfloat16)
    g2p, b2p = _pack_bn(g2, b2, CP)
    x_res = jnp.pad(x, ((0, 0), (0, 0), (0, 0), (0, CP - Cin))).reshape(M, CP)   # aligned residual, f32
    out = _gemm_bn_relu_residual(lhs2, w2m, g2p, b2p, x_res, jnp.float32)        # (M, CP) f32

    out = out.reshape(N, H, W, CP)[..., :Cout]
    return jnp.transpose(out, (0, 3, 1, 2))                        # NHWC -> NCHW


# ----------------------------------------------------------------------------- reference
def _ref_forward(x_nchw, params):
    # Pure-JAX f32 reference (training-mode BN), for correctness check.
    w1, g1, b1, w2, g2, b2 = params
    x = jnp.transpose(x_nchw, (0, 2, 3, 1)).astype(jnp.float32)

    def conv(v, w):
        return lax.conv_general_dilated(v, w, (1, 1), "SAME",
                                        dimension_numbers=("NHWC", "HWIO", "NHWC"))

    def bn_relu(v, g, b):
        mean = jnp.mean(v, axis=(0, 1, 2), keepdims=True)
        var = jnp.mean((v - mean) ** 2, axis=(0, 1, 2), keepdims=True)
        return jnp.maximum((v - mean) * lax.rsqrt(var + EPS) * g + b, 0.0)

    h = bn_relu(conv(x, w1), g1, b1)
    h = bn_relu(conv(h, w2), g2, b2)
    out = jnp.maximum(x + h, 0.0)
    return jnp.transpose(out, (0, 3, 1, 2))


if __name__ == "__main__":
    key = jax.random.PRNGKey(0)
    k_x, k_w1, k_w2 = jax.random.split(key, 3)

    # same_shape=True  =>  in_channel == out_channel, stride 1
    N, C, H, W = 2, 4, 16, 16
    x = jax.random.normal(k_x, (N, C, H, W), jnp.float32)

    # Deterministic parameter init (conv weights ~ N(0, 0.1); BN gamma=1, beta=0 as in nn.BatchNorm2d).
    w1 = 0.1 * jax.random.normal(k_w1, (3, 3, C, C), jnp.float32)  # HWIO
    w2 = 0.1 * jax.random.normal(k_w2, (3, 3, C, C), jnp.float32)  # HWIO
    g1 = jnp.ones((C,), jnp.float32)
    b1 = jnp.zeros((C,), jnp.float32)
    g2 = jnp.ones((C,), jnp.float32)
    b2 = jnp.zeros((C,), jnp.float32)
    params = (w1, g1, b1, w2, g2, b2)

    fwd = jax.jit(residual_block_forward)
    out = jax.block_until_ready(fwd(x, params))

    ref = _ref_forward(x, params)
    assert out.shape == (N, C, H, W)
    # bf16 MXU operands (with f32 accumulation / f32 BN) => slightly loosened tolerance vs f32 reference.
    np.testing.assert_allclose(np.asarray(out), np.asarray(ref), atol=2e-2, rtol=2e-2)
    print("KERNEL_OK")
</pallas_src>

<mosaic_0001>
module attributes {stable_mosaic.version = 11 : i64} {
  func.func @_gemm_bn_relu_kernel(%arg0: memref<512x128xbf16, #tpu.memory_space<vmem>>, %arg1: memref<128x128xbf16, #tpu.memory_space<vmem>>, %arg2: memref<1x128xf32, #tpu.memory_space<vmem>>, %arg3: memref<1x128xf32, #tpu.memory_space<vmem>>, %arg4: memref<512x128xbf16, #tpu.memory_space<vmem>>) attributes {dimension_semantics = [], scalar_prefetch = 0 : i64, scratch_operands = 0 : i64, tpu.core_type = #tpu.core_type<tc>} {
    %c0 = arith.constant 0 : index
    %c0_0 = arith.constant 0 : index
    %0 = vector.load %arg0[%c0, %c0_0] : memref<512x128xbf16, #tpu.memory_space<vmem>>, vector<512x128xbf16>
    %c0_1 = arith.constant 0 : index
    %c0_2 = arith.constant 0 : index
    %1 = vector.load %arg1[%c0_1, %c0_2] : memref<128x128xbf16, #tpu.memory_space<vmem>>, vector<128x128xbf16>
    %cst = arith.constant dense<0.000000e+00> : vector<512x128xf32>
    %2 = tpu.matmul %0, %1, %cst {dimension_numbers = #tpu.dot_dimension_numbers<[1], [0], [0], [1], [0, 0, 1, 1], [], []>} : vector<512x128xbf16>, vector<128x128xbf16>, vector<512x128xf32> -> vector<512x128xf32>
    %cst_3 = arith.constant dense<0.000000e+00> : vector<128xf32>
    %3 = vector.multi_reduction <add>, %2, %cst_3 [0] : vector<512x128xf32> to vector<128xf32>
    %4 = vector.shape_cast %3 : vector<128xf32> to vector<1x128xf32>
    %cst_4 = arith.constant 5.120000e+02 : f32
    %5 = vector.broadcast %cst_4 : f32 to vector<1x128xf32>
    %6 = arith.divf %4, %5 : vector<1x128xf32>
    %7 = vector.broadcast %6 : vector<1x128xf32> to vector<512x128xf32>
    %8 = arith.subf %2, %7 : vector<512x128xf32>
    %9 = arith.mulf %8, %8 : vector<512x128xf32>
    %cst_5 = arith.constant dense<0.000000e+00> : vector<128xf32>
    %10 = vector.multi_reduction <add>, %9, %cst_5 [0] : vector<512x128xf32> to vector<128xf32>
    %11 = vector.shape_cast %10 : vector<128xf32> to vector<1x128xf32>
    %cst_6 = arith.constant 5.120000e+02 : f32
    %12 = vector.broadcast %cst_6 : f32 to vector<1x128xf32>
    %13 = arith.divf %11, %12 : vector<1x128xf32>
    %cst_7 = arith.constant 9.99999974E-6 : f32
    %14 = vector.broadcast %cst_7 : f32 to vector<1x128xf32>
    %15 = arith.addf %13, %14 : vector<1x128xf32>
    %16 = math.rsqrt %15 : vector<1x128xf32>
    %17 = vector.broadcast %16 : vector<1x128xf32> to vector<512x128xf32>
    %18 = arith.mulf %8, %17 : vector<512x128xf32>
    %c0_8 = arith.constant 0 : index
    %c0_9 = arith.constant 0 : index
    %19 = vector.load %arg2[%c0_8, %c0_9] : memref<1x128xf32, #tpu.memory_space<vmem>>, vector<1x128xf32>
    %20 = vector.broadcast %19 : vector<1x128xf32> to vector<512x128xf32>
    %21 = arith.mulf %18, %20 : vector<512x128xf32>
    %c0_10 = arith.constant 0 : index
    %c0_11 = arith.constant 0 : index
    %22 = vector.load %arg3[%c0_10, %c0_11] : memref<1x128xf32, #tpu.memory_space<vmem>>, vector<1x128xf32>
    %23 = vector.broadcast %22 : vector<1x128xf32> to vector<512x128xf32>
    %24 = arith.addf %21, %23 : vector<512x128xf32>
    %cst_12 = arith.constant 0.000000e+00 : f32
    %25 = vector.broadcast %cst_12 : f32 to vector<512x128xf32>
    %26 = arith.maximumf %24, %25 : vector<512x128xf32>
    %27 = arith.truncf %26 : vector<512x128xf32> to vector<512x128xbf16>
    %c0_13 = arith.constant 0 : index
    %c0_14 = arith.constant 0 : index
    %28 = vector.load %arg4[%c0_13, %c0_14] : memref<512x128xbf16, #tpu.memory_space<vmem>>, vector<512x128xbf16>
    tpu.vector_store %arg4[%c0_13, %c0_14], %27 {strides = array<i32>} : memref<512x128xbf16, #tpu.memory_space<vmem>>, vector<512x128xbf16>,
    return
  }
}

module attributes {stable_mosaic.version = 11 : i64} {
  func.func @_gemm_bn_relu_residual_kernel(%arg0: memref<512x1152xbf16, #tpu.memory_space<vmem>>, %arg1: memref<1152x128xbf16, #tpu.memory_space<vmem>>, %arg2: memref<1x128xf32, #tpu.memory_space<vmem>>, %arg3: memref<1x128xf32, #tpu.memory_space<vmem>>, %arg4: memref<512x128xf32, #tpu.memory_space<vmem>>, %arg5: memref<512x128xf32, #tpu.memory_space<vmem>>) attributes {dimension_semantics = [], scalar_prefetch = 0 : i64, scratch_operands = 0 : i64, tpu.core_type = #tpu.core_type<tc>} {
    %c0 = arith.constant 0 : index
    %c0_0 = arith.constant 0 : index
    %0 = vector.load %arg0[%c0, %c0_0] : memref<512x1152xbf16, #tpu.memory_space<vmem>>, vector<512x1152xbf16>
    %c0_1 = arith.constant 0 : index
    %c0_2 = arith.constant 0 : index
    %1 = vector.load %arg1[%c0_1, %c0_2] : memref<1152x128xbf16, #tpu.memory_space<vmem>>, vector<1152x128xbf16>
    %cst = arith.constant dense<0.000000e+00> : vector<512x128xf32>
    %2 = tpu.matmul %0, %1, %cst {dimension_numbers = #tpu.dot_dimension_numbers<[1], [0], [0], [1], [0, 0, 1, 1], [], []>} : vector<512x1152xbf16>, vector<1152x128xbf16>, vector<512x128xf32> -> vector<512x128xf32>
    %cst_3 = arith.constant dense<0.000000e+00> : vector<128xf32>
    %3 = vector.multi_reduction <add>, %2, %cst_3 [0] : vector<512x128xf32> to vector<128xf32>
    %4 = vector.shape_cast %3 : vector<128xf32> to vector<1x128xf32>
    %cst_4 = arith.constant 5.120000e+02 : f32
    %5 = vector.broadcast %cst_4 : f32 to vector<1x128xf32>
    %6 = arith.divf %4, %5 : vector<1x128xf32>
    %7 = vector.broadcast %6 : vector<1x128xf32> to vector<512x128xf32>
    %8 = arith.subf %2, %7 : vector<512x128xf32>
    %9 = arith.mulf %8, %8 : vector<512x128xf32>
    %cst_5 = arith.constant dense<0.000000e+00> : vector<128xf32>
    %10 = vector.multi_reduction <add>, %9, %cst_5 [0] : vector<512x128xf32> to vector<128xf32>
    %11 = vector.shape_cast %10 : vector<128xf32> to vector<1x128xf32>
    %cst_6 = arith.constant 5.120000e+02 : f32
    %12 = vector.broadcast %cst_6 : f32 to vector<1x128xf32>
    %13 = arith.divf %11, %12 : vector<1x128xf32>
    %cst_7 = arith.constant 9.99999974E-6 : f32
    %14 = vector.broadcast %cst_7 : f32 to vector<1x128xf32>
    %15 = arith.addf %13, %14 : vector<1x128xf32>
    %16 = math.rsqrt %15 : vector<1x128xf32>
    %17 = vector.broadcast %16 : vector<1x128xf32> to vector<512x128xf32>
    %18 = arith.mulf %8, %17 : vector<512x128xf32>
    %c0_8 = arith.constant 0 : index
    %c0_9 = arith.constant 0 : index
    %19 = vector.load %arg2[%c0_8, %c0_9] : memref<1x128xf32, #tpu.memory_space<vmem>>, vector<1x128xf32>
    %20 = vector.broadcast %19 : vector<1x128xf32> to vector<512x128xf32>
    %21 = arith.mulf %18, %20 : vector<512x128xf32>
    %c0_10 = arith.constant 0 : index
    %c0_11 = arith.constant 0 : index
    %22 = vector.load %arg3[%c0_10, %c0_11] : memref<1x128xf32, #tpu.memory_space<vmem>>, vector<1x128xf32>
    %23 = vector.broadcast %22 : vector<1x128xf32> to vector<512x128xf32>
    %24 = arith.addf %21, %23 : vector<512x128xf32>
    %cst_12 = arith.constant 0.000000e+00 : f32
    %25 = vector.broadcast %cst_12 : f32 to vector<512x128xf32>
    %26 = arith.maximumf %24, %25 : vector<512x128xf32>
    %c0_13 = arith.constant 0 : index
    %c0_14 = arith.constant 0 : index
    %27 = vector.load %arg4[%c0_13, %c0_14] : memref<512x128xf32, #tpu.memory_space<vmem>>, vector<512x128xf32>
    %28 = arith.addf %27, %26 : vector<512x128xf32>
    %cst_15 = arith.constant 0.000000e+00 : f32
    %29 = vector.broadcast %cst_15 : f32 to vector<512x128xf32>
    %30 = arith.maximumf %28, %29 : vector<512x128xf32>
    %c0_16 = arith.constant 0 : index
    %c0_17 = arith.constant 0 : index
    %31 = vector.load %arg5[%c0_16, %c0_17] : memref<512x128xf32, #tpu.memory_space<vmem>>, vector<512x128xf32>
    tpu.vector_store %arg5[%c0_16, %c0_17], %30 {strides = array<i32>} : memref<512x128xf32, #tpu.memory_space<vmem>>, vector<512x128xf32>,
    return
  }
}

</mosaic_0001>

<llo_original>
// kernel: residual_block_forward.2
$region0: #{residual_block_forward.2}
  #allocation0 [shape = 'u32[]', space=smem, size = 0x4, offset = 0x4, fixed_abs, tag = 'smem constant byte address 0x4 - core index']
  #allocation1 [shape = 'u32[144,128]{1,0:T(1,128)}', space=vmem, size = 0x12000, scoped, tag = 'internal scratch']
  %s0 = inlined_call_operand.vmem [shape: bf16[512,128], index: 0, kind: input, shape index: {}]
  %s1 = inlined_call_operand.vmem [shape: bf16[128,128], index: 1, kind: input, shape index: {}]
  %s2 = inlined_call_operand.vmem [shape: f32[1,128], index: 2, kind: input, shape index: {}]
  %s3 = inlined_call_operand.vmem [shape: f32[1,128], index: 3, kind: input, shape index: {}]
  %s4 = inlined_call_operand.vmem [shape: bf16[512,128], index: 4, kind: output, shape index: {}]
  %s5 = sld [smem:[#allocation0]]
  $region26: #{residual_block_forward.2} parent=0
    _
  %s7 = ssub.s32 1, %s5
  %s8 = scalar_select 0, %s7, %s5
  // Predicated region
  $region2: #{residual_block_forward.2} parent=0 // pred_check
    _
  $region3: #{residual_block_forward.2} parent=0 // pred_check_branch
    %10 = sbr.rel (0) target = $region5
  $region4: #{residual_block_forward.2} parent=0 // pred_region
    _
  $region5: #{residual_block_forward.2} parent=0 // pred_fallthru
    _
  // Predicated region
  $region6: #{residual_block_forward.2} parent=0 // pred_check
    _
  $region7: #{residual_block_forward.2} parent=0 // pred_check_branch
    %12 = sbr.rel (0) target = $region9
  $region8: #{residual_block_forward.2} parent=0 // pred_region
    _
  $region9: #{residual_block_forward.2} parent=0 // pred_fallthru
    _
  // Predicated region
  $region10: #{residual_block_forward.2} parent=0 // pred_check
    _
  $region11: #{residual_block_forward.2} parent=0 // pred_check_branch
    %14 = sbr.rel (0) target = $region13
  $region12: #{residual_block_forward.2} parent=0 // pred_region
    _
  $region13: #{residual_block_forward.2} parent=0 // pred_fallthru
    _
  // Predicated region
  $region14: #{residual_block_forward.2} parent=0 // pred_check
    _
  $region15: #{residual_block_forward.2} parent=0 // pred_check_branch
    %16 = sbr.rel (0) target = $region17
  $region16: #{residual_block_forward.2} parent=0 // pred_region
    _
  $region17: #{residual_block_forward.2} parent=0 // pred_fallthru
    _
  %v18 = vld [vmem:[%s0] sm:$0xf]
  %v19 = vld [vmem:[%s0 + $0x4] sm:$0xf]
  %v20 = vld [vmem:[%s0 + $0x8] sm:$0xf]
  %v21 = vld [vmem:[%s0 + $0xc] sm:$0xf]
  %v22 = vld [vmem:[%s0 + $0x10] sm:$0xf]
  %v23 = vld [vmem:[%s0 + $0x14] sm:$0xf]
  %v24 = vld [vmem:[%s0 + $0x18] sm:$0xf]
  %v25 = vld [vmem:[%s0 + $0x1c] sm:$0xf]
  %v26 = vld [vmem:[%s0 + $0x20] sm:$0xf]
  %v27 = vld [vmem:[%s0 + $0x24] sm:$0xf]
  %v28 = vld [vmem:[%s0 + $0x28] sm:$0xf]
  %v29 = vld [vmem:[%s0 + $0x2c] sm:$0xf]
  %v30 = vld [vmem:[%s0 + $0x30] sm:$0xf]
  %v31 = vld [vmem:[%s0 + $0x34] sm:$0xf]
  %v32 = vld [vmem:[%s0 + $0x38] sm:$0xf]
  %v33 = vld [vmem:[%s0 + $0x3c] sm:$0xf]
  %v34 = vld [vmem:[%s0 + $0x40] sm:$0xf]
  %v35 = vld [vmem:[%s0 + $0x44] sm:$0xf]
  %v36 = vld [vmem:[%s0 + $0x48] sm:$0xf]
  %v37 = vld [vmem:[%s0 + $0x4c] sm:$0xf]
  %v38 = vld [vmem:[%s0 + $0x50] sm:$0xf]
  %v39 = vld [vmem:[%s0 + $0x54] sm:$0xf]
  %v40 = vld [vmem:[%s0 + $0x58] sm:$0xf]
  %v41 = vld [vmem:[%s0 + $0x5c] sm:$0xf]
  %v42 = vld [vmem:[%s0 + $0x60] sm:$0xf]
  %v43 = vld [vmem:[%s0 + $0x64] sm:$0xf]
  %v44 = vld [vmem:[%s0 + $0x68] sm:$0xf]
  %v45 = vld [vmem:[%s0 + $0x6c] sm:$0xf]
  %v46 = vld [vmem:[%s0 + $0x70] sm:$0xf]
  %v47 = vld [vmem:[%s0 + $0x74] sm:$0xf]
  %v48 = vld [vmem:[%s0 + $0x78] sm:$0xf]
  %v49 = vld [vmem:[%s0 + $0x7c] sm:$0xf]
  %v50 = vld [vmem:[%s0 + $0x80] sm:$0xf]
  %v51 = vld [vmem:[%s0 + $0x84] sm:$0xf]
  %v52 = vld [vmem:[%s0 + $0x88] sm:$0xf]
  %v53 = vld [vmem:[%s0 + $0x8c] sm:$0xf]
  %v54 = vld [vmem:[%s0 + $0x90] sm:$0xf]
  %v55 = vld [vmem:[%s0 + $0x94] sm:$0xf]
  %v56 = vld [vmem:[%s0 + $0x98] sm:$0xf]
  %v57 = vld [vmem:[%s0 + $0x9c] sm:$0xf]
  %v58 = vld [vmem:[%s0 + $0xa0] sm:$0xf]
  %v59 = vld [vmem:[%s0 + $0xa4] sm:$0xf]
  %v60 = vld [vmem:[%s0 + $0xa8] sm:$0xf]
  %v61 = vld [vmem:[%s0 + $0xac] sm:$0xf]
  %v62 = vld [vmem:[%s0 + $0xb0] sm:$0xf]
  %v63 = vld [vmem:[%s0 + $0xb4] sm:$0xf]
  %v64 = vld [vmem:[%s0 + $0xb8] sm:$0xf]
  %v65 = vld [vmem:[%s0 + $0xbc] sm:$0xf]
  %v66 = vld [vmem:[%s0 + $0xc0] sm:$0xf]
  %v67 = vld [vmem:[%s0 + $0xc4] sm:$0xf]
  %v68 = vld [vmem:[%s0 + $0xc8] sm:$0xf]
  %v69 = vld [vmem:[%s0 + $0xcc] sm:$0xf]
  %v70 = vld [vmem:[%s0 + $0xd0] sm:$0xf]
  %v71 = vld [vmem:[%s0 + $0xd4] sm:$0xf]
  %v72 = vld [vmem:[%s0 + $0xd8] sm:$0xf]
  %v73 = vld [vmem:[%s0 + $0xdc] sm:$0xf]
  %v74 = vld [vmem:[%s0 + $0xe0] sm:$0xf]
  %v75 = vld [vmem:[%s0 + $0xe4] sm:$0xf]
  %v76 = vld [vmem:[%s0 + $0xe8] sm:$0xf]
  %v77 = vld [vmem:[%s0 + $0xec] sm:$0xf]
  %v78 = vld [vmem:[%s0 + $0xf0] sm:$0xf]
  %v79 = vld [vmem:[%s0 + $0xf4] sm:$0xf]
  %v80 = vld [vmem:[%s0 + $0xf8] sm:$0xf]
  %v81 = vld [vmem:[%s0 + $0xfc] sm:$0xf]
  %v82 = vld [vmem:[%s1] sm:$0xf]
  %v83 = vld [vmem:[%s1 + $0x4] sm:$0xf]
  %v84 = vld [vmem:[%s1 + $0x8] sm:$0xf]
  %v85 = vld [vmem:[%s1 + $0xc] sm:$0xf]
  %v86 = vld [vmem:[%s1 + $0x10] sm:$0xf]
  %v87 = vld [vmem:[%s1 + $0x14] sm:$0xf]
  %v88 = vld [vmem:[%s1 + $0x18] sm:$0xf]
  %v89 = vld [vmem:[%s1 + $0x1c] sm:$0xf]
  %v90 = vld [vmem:[%s1 + $0x20] sm:$0xf]
  %v91 = vld [vmem:[%s1 + $0x24] sm:$0xf]
  %v92 = vld [vmem:[%s1 + $0x28] sm:$0xf]
  %v93 = vld [vmem:[%s1 + $0x2c] sm:$0xf]
  %v94 = vld [vmem:[%s1 + $0x30] sm:$0xf]
  %v95 = vld [vmem:[%s1 + $0x34] sm:$0xf]
  %v96 = vld [vmem:[%s1 + $0x38] sm:$0xf]
  %v97 = vld [vmem:[%s1 + $0x3c] sm:$0xf]
  %v162 = vunpack.c.l.b16 %v18
  %v163 = vunpack.c.l.b16 %v19
  %v164 = vunpack.c.l.b16 %v20
  %v165 = vunpack.c.l.b16 %v21
  %v166 = vunpack.c.l.b16 %v22
  %v167 = vunpack.c.l.b16 %v23
  %v168 = vunpack.c.l.b16 %v24
  %v169 = vunpack.c.l.b16 %v25
  %v170 = vunpack.c.l.b16 %v26
  %v171 = vunpack.c.l.b16 %v27
  %v172 = vunpack.c.l.b16 %v28
  %v173 = vunpack.c.l.b16 %v29
  %v174 = vunpack.c.l.b16 %v30
  %v175 = vunpack.c.l.b16 %v31
  %v176 = vunpack.c.l.b16 %v32
  %v177 = vunpack.c.l.b16 %v33
  %v178 = vunpack.c.l.b16 %v34
  %v179 = vunpack.c.l.b16 %v35
  %v180 = vunpack.c.l.b16 %v36
  %v181 = vunpack.c.l.b16 %v37
  %v182 = vunpack.c.l.b16 %v38
  %v183 = vunpack.c.l.b16 %v39
  %v184 = vunpack.c.l.b16 %v40
  %v185 = vunpack.c.l.b16 %v41
  %v186 = vunpack.c.l.b16 %v42
  %v187 = vunpack.c.l.b16 %v43
  %v188 = vunpack.c.l.b16 %v44
  %v189 = vunpack.c.l.b16 %v45
  %v190 = vunpack.c.l.b16 %v46
  %v191 = vunpack.c.l.b16 %v47
  %v192 = vunpack.c.l.b16 %v48
  %v193 = vunpack.c.l.b16 %v49
  %v194 = vunpack.c.l.b16 %v50
  %v195 = vunpack.c.l.b16 %v51
  %v196 = vunpack.c.l.b16 %v52
  %v197 = vunpack.c.l.b16 %v53
  %v198 = vunpack.c.l.b16 %v54
  %v199 = vunpack.c.l.b16 %v55
  %v200 = vunpack.c.l.b16 %v56
  %v201 = vunpack.c.l.b16 %v57
  %v202 = vunpack.c.l.b16 %v58
  %v203 = vunpack.c.l.b16 %v59
  %v204 = vunpack.c.l.b16 %v60
  %v205 = vunpack.c.l.b16 %v61
  %v206 = vunpack.c.l.b16 %v62
  %v207 = vunpack.c.l.b16 %v63
  %v208 = vunpack.c.l.b16 %v64
  %v209 = vunpack.c.l.b16 %v65
  %v210 = vunpack.c.l.b16 %v66
  %v211 = vunpack.c.l.b16 %v67
  %v212 = vunpack.c.l.b16 %v68
  %v213 = vunpack.c.l.b16 %v69
  %v214 = vunpack.c.l.b16 %v70
  %v215 = vunpack.c.l.b16 %v71
  %v216 = vunpack.c.l.b16 %v72
  %v217 = vunpack.c.l.b16 %v73
  %v218 = vunpack.c.l.b16 %v74
  %v219 = vunpack.c.l.b16 %v75
  %v220 = vunpack.c.l.b16 %v76
  %v221 = vunpack.c.l.b16 %v77
  %v222 = vunpack.c.l.b16 %v78
  %v223 = vunpack.c.l.b16 %v79
  %v224 = vunpack.c.l.b16 %v80
  %v225 = vunpack.c.l.b16 %v81
  %v226 = vpack.c.b16 %v163, %v162
  %v227 = vpack.c.b16 %v165, %v164
  %v228 = vpack.c.b16 %v167, %v166
  %v229 = vpack.c.b16 %v169, %v168
  %v230 = vpack.c.b16 %v171, %v170
  %v231 = vpack.c.b16 %v173, %v172
  %v232 = vpack.c.b16 %v175, %v174
  %v233 = vpack.c.b16 %v177, %v176
  %v234 = vpack.c.b16 %v179, %v178
  %v235 = vpack.c.b16 %v181, %v180
  %v236 = vpack.c.b16 %v183, %v182
  %v237 = vpack.c.b16 %v185, %v184
  %v238 = vpack.c.b16 %v187, %v186
  %v239 = vpack.c.b16 %v189, %v188
  %v240 = vpack.c.b16 %v191, %v190
  %v241 = vpack.c.b16 %v193, %v192
  %v242 = vpack.c.b16 %v195, %v194
  %v243 = vpack.c.b16 %v197, %v196
  %v244 = vpack.c.b16 %v199, %v198
  %v245 = vpack.c.b16 %v201, %v200
  %v246 = vpack.c.b16 %v203, %v202
  %v247 = vpack.c.b16 %v205, %v204
  %v248 = vpack.c.b16 %v207, %v206
  %v249 = vpack.c.b16 %v209, %v208
  %v250 = vpack.c.b16 %v211, %v210
  %v251 = vpack.c.b16 %v213, %v212
  %v252 = vpack.c.b16 %v215, %v214
  %v253 = vpack.c.b16 %v217, %v216
  %v254 = vpack.c.b16 %v219, %v218
  %v255 = vpack.c.b16 %v221, %v220
  %v256 = vpack.c.b16 %v223, %v222
  %v257 = vpack.c.b16 %v225, %v224
  %v306 = vunpack.c.l.b16 %v82
  %v307 = vunpack.c.l.b16 %v83
  %v308 = vunpack.c.l.b16 %v84
  %v309 = vunpack.c.l.b16 %v85
  %v310 = vunpack.c.l.b16 %v86
  %v311 = vunpack.c.l.b16 %v87
  %v312 = vunpack.c.l.b16 %v88
  %v313 = vunpack.c.l.b16 %v89
  %v314 = vunpack.c.l.b16 %v90
  %v315 = vunpack.c.l.b16 %v91
  %v316 = vunpack.c.l.b16 %v92
  %v317 = vunpack.c.l.b16 %v93
  %v318 = vunpack.c.l.b16 %v94
  %v319 = vunpack.c.l.b16 %v95
  %v320 = vunpack.c.l.b16 %v96
  %v321 = vunpack.c.l.b16 %v97
  %v322 = vpack.c.b16 %v307, %v306
  %v323 = vpack.c.b16 %v309, %v308
  %v324 = vpack.c.b16 %v311, %v310
  %v325 = vpack.c.b16 %v313, %v312
  %v326 = vpack.c.b16 %v315, %v314
  %v327 = vpack.c.b16 %v317, %v316
  %v328 = vpack.c.b16 %v319, %v318
  %v329 = vpack.c.b16 %v321, %v320
  %338 = vmatprep.subr.bf16.mxu0 0
  %339 = vmatpush1.bf16.msra.mxu0 %v322
  %340 = vmatprep.subr.bf16.mxu0 0
  %341 = vmatpush1.bf16.msra.mxu0 %v323
  %342 = vmatprep.subr.bf16.mxu0 0
  %343 = vmatpush1.bf16.msra.mxu0 %v324
  %344 = vmatprep.subr.bf16.mxu0 0
  %345 = vmatpush1.bf16.msra.mxu0 %v325
  %346 = vmatprep.subr.bf16.mxu0 0
  %347 = vmatpush1.bf16.msra.mxu0 %v326
  %348 = vmatprep.subr.bf16.mxu0 0
  %349 = vmatpush1.bf16.msra.mxu0 %v327
  %350 = vmatprep.subr.bf16.mxu0 0
  %351 = vmatpush1.bf16.msra.mxu0 %v328
  %352 = vmatprep.subr.bf16.mxu0 0
  %353 = vmatpush1.bf16.msra.mxu0 %v329
  %354 = vmatprep.subr.bf16.mxu0 0
  %355 = vmatpush1.bf16.msra.mxu0 0
  %356 = vmatprep.subr.bf16.mxu0 0
  %357 = vmatpush1.bf16.msra.mxu0 0
  %358 = vmatprep.subr.bf16.mxu0 0
  %359 = vmatpush1.bf16.msra.mxu0 0
  %360 = vmatprep.subr.bf16.mxu0 0
  %361 = vmatpush1.bf16.msra.mxu0 0
  %362 = vmatprep.subr.bf16.mxu0 0
  %363 = vmatpush1.bf16.msra.mxu0 0
  %364 = vmatprep.subr.bf16.mxu0 0
  %365 = vmatpush1.bf16.msra.mxu0 0
  %366 = vmatprep.subr.bf16.mxu0 0
  %367 = vmatpush1.bf16.msra.mxu0 0
  %368 = vmatprep.subr.bf16.mxu0 0
  %369 = vmatpush1.bf16.msra.mxu0 0
  %370 = vmatprep.mubr.bf16.mxu0 0
  %371 = vmatmul.mubr.bf16.gmra.mrb[0].mxu0 %v226
  %v372 = vpop.f32.mrb[0].mxu0
  %v373 = vadd.f32 0.0, %v372
  %v374 = vpop.f32.mrb[0].mxu0
  %v375 = vpop.f32.mrb[0].mxu0
  %v376 = vadd.f32 0.0, %v375
  %v377 = vpop.f32.mrb[0].mxu0
  %378 = vmatprep.mubr.bf16.mxu0 0
  %379 = vmatmul.mubr.bf16.gmra.mrb[0].mxu0 %v227
  %v380 = vpop.f32.mrb[0].mxu0
  %v381 = vadd.f32 0.0, %v380
  %v382 = vpop.f32.mrb[0].mxu0
  %v383 = vpop.f32.mrb[0].mxu0
  %v384 = vadd.f32 0.0, %v383
  %v385 = vpop.f32.mrb[0].mxu0
  %386 = vmatprep.mubr.bf16.mxu0 0
  %387 = vmatmul.mubr.bf16.gmra.mrb[0].mxu0 %v228
  %v388 = vpop.f32.mrb[0].mxu0
  %v389 = vadd.f32 0.0, %v388
  %v390 = vpop.f32.mrb[0].mxu0
  %v391 = vpop.f32.mrb[0].mxu0
  %v392 = vadd.f32 0.0, %v391
  %v393 = vpop.f32.mrb[0].mxu0
  %394 = vmatprep.mubr.bf16.mxu0 0
  %395 = vmatmul.mubr.bf16.gmra.mrb[0].mxu0 %v229
  %v396 = vpop.f32.mrb[0].mxu0
  %v397 = vadd.f32 0.0, %v396
  %v398 = vpop.f32.mrb[0].mxu0
  %v399 = vpop.f32.mrb[0].mxu0
  %v400 = vadd.f32 0.0, %v399
  %v401 = vpop.f32.mrb[0].mxu0
  %402 = vmatprep.mubr.bf16.mxu0 0
  %403 = vmatmul.mubr.bf16.gmra.mrb[0].mxu0 %v230
  %v404 = vpop.f32.mrb[0].mxu0
  %v405 = vadd.f32 0.0, %v404
  %v406 = vpop.f32.mrb[0].mxu0
  %v407 = vpop.f32.mrb[0].mxu0
  %v408 = vadd.f32 0.0, %v407
  %v409 = vpop.f32.mrb[0].mxu0
  %410 = vmatprep.mubr.bf16.mxu0 0
  %411 = vmatmul.mubr.bf16.gmra.mrb[0].mxu0 %v231
  %v412 = vpop.f32.mrb[0].mxu0
  %v413 = vadd.f32 0.0, %v412
  %v414 = vpop.f32.mrb[0].mxu0
  %v415 = vpop.f32.mrb[0].mxu0
  %v416 = vadd.f32 0.0, %v415
  %v417 = vpop.f32.mrb[0].mxu0
  %418 = vmatprep.mubr.bf16.mxu0 0
  %419 = vmatmul.mubr.bf16.gmra.mrb[0].mxu0 %v232
  %v420 = vpop.f32.mrb[0].mxu0
  %v421 = vadd.f32 0.0, %v420
  %v422 = vpop.f32.mrb[0].mxu0
  %v423 = vpop.f32.mrb[0].mxu0
  %v424 = vadd.f32 0.0, %v423
  %v425 = vpop.f32.mrb[0].mxu0
  %426 = vmatprep.mubr.bf16.mxu0 0
  %427 = vmatmul.mubr.bf16.gmra.mrb[0].mxu0 %v233
  %v428 = vpop.f32.mrb[0].mxu0
  %v429 = vadd.f32 0.0, %v428
  %v430 = vpop.f32.mrb[0].mxu0
  %v431 = vpop.f32.mrb[0].mxu0
  %v432 = vadd.f32 0.0, %v431
  %v433 = vpop.f32.mrb[0].mxu0
  %434 = vmatprep.mubr.bf16.mxu0 0
  %435 = vmatmul.mubr.bf16.gmra.mrb[0].mxu0 %v234
  %v436 = vpop.f32.mrb[0].mxu0
  %v437 = vadd.f32 0.0, %v436
  %v438 = vpop.f32.mrb[0].mxu0
  %v439 = vpop.f32.mrb[0].mxu0
  %v440 = vadd.f32 0.0, %v439
  %v441 = vpop.f32.mrb[0].mxu0
  %442 = vmatprep.mubr.bf16.mxu0 0
  %443 = vmatmul.mubr.bf16.gmra.mrb[0].mxu0 %v235
  %v444 = vpop.f32.mrb[0].mxu0
  %v445 = vadd.f32 0.0, %v444
  %v446 = vpop.f32.mrb[0].mxu0
  %v447 = vpop.f32.mrb[0].mxu0
  %v448 = vadd.f32 0.0, %v447
  %v449 = vpop.f32.mrb[0].mxu0
  %450 = vmatprep.mubr.bf16.mxu0 0
  %451 = vmatmul.mubr.bf16.gmra.mrb[0].mxu0 %v236
  %v452 = vpop.f32.mrb[0].mxu0
  %v453 = vadd.f32 0.0, %v452
  %v454 = vpop.f32.mrb[0].mxu0
  %v455 = vpop.f32.mrb[0].mxu0
  %v456 = vadd.f32 0.0, %v455
  %v457 = vpop.f32.mrb[0].mxu0
  %458 = vmatprep.mubr.bf16.mxu0 0
  %459 = vmatmul.mubr.bf16.gmra.mrb[0].mxu0 %v237
  %v460 = vpop.f32.mrb[0].mxu0
  %v461 = vadd.f32 0.0, %v460
  %v462 = vpop.f32.mrb[0].mxu0
  %v463 = vpop.f32.mrb[0].mxu0
  %v464 = vadd.f32 0.0, %v463
  %v465 = vpop.f32.mrb[0].mxu0
  %466 = vmatprep.mubr.bf16.mxu0 0
  %467 = vmatmul.mubr.bf16.gmra.mrb[0].mxu0 %v238
  %v468 = vpop.f32.mrb[0].mxu0
  %v469 = vadd.f32 0.0, %v468
  %v470 = vpop.f32.mrb[0].mxu0
  %v471 = vpop.f32.mrb[0].mxu0
  %v472 = vadd.f32 0.0, %v471
  %v473 = vpop.f32.mrb[0].mxu0
  %474 = vmatprep.mubr.bf16.mxu0 0
  %475 = vmatmul.mubr.bf16.gmra.mrb[0].mxu0 %v239
  %v476 = vpop.f32.mrb[0].mxu0
  %v477 = vadd.f32 0.0, %v476
  %v478 = vpop.f32.mrb[0].mxu0
  %v479 = vpop.f32.mrb[0].mxu0
  %v480 = vadd.f32 0.0, %v479
  %v481 = vpop.f32.mrb[0].mxu0
  %482 = vmatprep.mubr.bf16.mxu0 0
  %483 = vmatmul.mubr.bf16.gmra.mrb[0].mxu0 %v240
  %v484 = vpop.f32.mrb[0].mxu0
  %v485 = vadd.f32 0.0, %v484
  %v486 = vpop.f32.mrb[0].mxu0
  %v487 = vpop.f32.mrb[0].mxu0
  %v488 = vadd.f32 0.0, %v487
  %v489 = vpop.f32.mrb[0].mxu0
  %490 = vmatprep.mubr.bf16.mxu0 0
  %491 = vmatmul.mubr.bf16.gmra.mrb[0].mxu0 %v241
  %v492 = vpop.f32.mrb[0].mxu0
  %v493 = vadd.f32 0.0, %v492
  %v494 = vpop.f32.mrb[0].mxu0
  %v495 = vpop.f32.mrb[0].mxu0
  %v496 = vadd.f32 0.0, %v495
  %v497 = vpop.f32.mrb[0].mxu0
  %498 = vmatprep.mubr.bf16.mxu0 0
  %499 = vmatmul.mubr.bf16.gmra.mrb[0].mxu0 %v242
  %v500 = vpop.f32.mrb[0].mxu0
  %v501 = vadd.f32 0.0, %v500
  %v502 = vpop.f32.mrb[0].mxu0
  %v503 = vpop.f32.mrb[0].mxu0
  %v504 = vadd.f32 0.0, %v503
  %v505 = vpop.f32.mrb[0].mxu0
  %506 = vmatprep.mubr.bf16.mxu0 0
  %507 = vmatmul.mubr.bf16.gmra.mrb[0].mxu0 %v243
  %v508 = vpop.f32.mrb[0].mxu0
  %v509 = vadd.f32 0.0, %v508
  %v510 = vpop.f32.mrb[0].mxu0
  %v511 = vpop.f32.mrb[0].mxu0
  %v512 = vadd.f32 0.0, %v511
  %v513 = vpop.f32.mrb[0].mxu0
  %514 = vmatprep.mubr.bf16.mxu0 0
  %515 = vmatmul.mubr.bf16.gmra.mrb[0].mxu0 %v244
  %v516 = vpop.f32.mrb[0].mxu0
  %v517 = vadd.f32 0.0, %v516
  %v518 = vpop.f32.mrb[0].mxu0
  %v519 = vpop.f32.mrb[0].mxu0
  %v520 = vadd.f32 0.0, %v519
  %v521 = vpop.f32.mrb[0].mxu0
  %522 = vmatprep.mubr.bf16.mxu0 0
  %523 = vmatmul.mubr.bf16.gmra.mrb[0].mxu0 %v245
  %v524 = vpop.f32.mrb[0].mxu0
  %v525 = vadd.f32 0.0, %v524
  %v526 = vpop.f32.mrb[0].mxu0
  %v527 = vpop.f32.mrb[0].mxu0
  %v528 = vadd.f32 0.0, %v527
  %v529 = vpop.f32.mrb[0].mxu0
  %530 = vmatprep.mubr.bf16.mxu0 0
  %531 = vmatmul.mubr.bf16.gmra.mrb[0].mxu0 %v246
  %v532 = vpop.f32.mrb[0].mxu0
  %v533 = vadd.f32 0.0, %v532
  %v534 = vpop.f32.mrb[0].mxu0
  %v535 = vpop.f32.mrb[0].mxu0
  %v536 = vadd.f32 0.0, %v535
  %v537 = vpop.f32.mrb[0].mxu0
  %538 = vmatprep.mubr.bf16.mxu0 0
  %539 = vmatmul.mubr.bf16.gmra.mrb[0].mxu0 %v247
  %v540 = vpop.f32.mrb[0].mxu0
  %v541 = vadd.f32 0.0, %v540
  %v542 = vpop.f32.mrb[0].mxu0
  %v543 = vpop.f32.mrb[0].mxu0
  %v544 = vadd.f32 0.0, %v543
  %v545 = vpop.f32.mrb[0].mxu0
  %546 = vmatprep.mubr.bf16.mxu0 0
  %547 = vmatmul.mubr.bf16.gmra.mrb[0].mxu0 %v248
  %v548 = vpop.f32.mrb[0].mxu0
  %v549 = vadd.f32 0.0, %v548
  %v550 = vpop.f32.mrb[0].mxu0
  %v551 = vpop.f32.mrb[0].mxu0
  %v552 = vadd.f32 0.0, %v551
  %v553 = vpop.f32.mrb[0].mxu0
  %554 = vmatprep.mubr.bf16.mxu0 0
  %555 = vmatmul.mubr.bf16.gmra.mrb[0].mxu0 %v249
  %v556 = vpop.f32.mrb[0].mxu0
  %v557 = vadd.f32 0.0, %v556
  %v558 = vpop.f32.mrb[0].mxu0
  %v559 = vpop.f32.mrb[0].mxu0
  %v560 = vadd.f32 0.0, %v559
  %v561 = vpop.f32.mrb[0].mxu0
  %562 = vmatprep.mubr.bf16.mxu0 0
  %563 = vmatmul.mubr.bf16.gmra.mrb[0].mxu0 %v250
  %v564 = vpop.f32.mrb[0].mxu0
  %v565 = vadd.f32 0.0, %v564
  %v566 = vpop.f32.mrb[0].mxu0
  %v567 = vpop.f32.mrb[0].mxu0
  %v568 = vadd.f32 0.0, %v567
  %v569 = vpop.f32.mrb[0].mxu0
  %570 = vmatprep.mubr.bf16.mxu0 0
  %571 = vmatmul.mubr.bf16.gmra.mrb[0].mxu0 %v251
  %v572 = vpop.f32.mrb[0].mxu0
  %v573 = vadd.f32 0.0, %v572
  %v574 = vpop.f32.mrb[0].mxu0
  %v575 = vpop.f32.mrb[0].mxu0
  %v576 = vadd.f32 0.0, %v575
  %v577 = vpop.f32.mrb[0].mxu0
  %578 = vmatprep.mubr.bf16.mxu0 0
  %579 = vmatmul.mubr.bf16.gmra.mrb[0].mxu0 %v252
  %v580 = vpop.f32.mrb[0].mxu0
  %v581 = vadd.f32 0.0, %v580
  %v582 = vpop.f32.mrb[0].mxu0
  %v583 = vpop.f32.mrb[0].mxu0
  %v584 = vadd.f32 0.0, %v583
  %v585 = vpop.f32.mrb[0].mxu0
  %586 = vmatprep.mubr.bf16.mxu0 0
  %587 = vmatmul.mubr.bf16.gmra.mrb[0].mxu0 %v253
  %v588 = vpop.f32.mrb[0].mxu0
  %v589 = vadd.f32 0.0, %v588
  %v590 = vpop.f32.mrb[0].mxu0
  %v591 = vpop.f32.mrb[0].mxu0
  %v592 = vadd.f32 0.0, %v591
  %v593 = vpop.f32.mrb[0].mxu0
  %594 = vmatprep.mubr.bf16.mxu0 0
  %595 = vmatmul.mubr.bf16.gmra.mrb[0].mxu0 %v254
  %v596 = vpop.f32.mrb[0].mxu0
  %v597 = vadd.f32 0.0, %v596
  %v598 = vpop.f32.mrb[0].mxu0
  %v599 = vpop.f32.mrb[0].mxu0
  %v600 = vadd.f32 0.0, %v599
  %v601 = vpop.f32.mrb[0].mxu0
  %602 = vmatprep.mubr.bf16.mxu0 0
  %603 = vmatmul.mubr.bf16.gmra.mrb[0].mxu0 %v255
  %v604 = vpop.f32.mrb[0].mxu0
  %v605 = vadd.f32 0.0, %v604
  %v606 = vpop.f32.mrb[0].mxu0
  %v607 = vpop.f32.mrb[0].mxu0
  %v608 = vadd.f32 0.0, %v607
  %v609 = vpop.f32.mrb[0].mxu0
  %610 = vmatprep.mubr.bf16.mxu0 0
  %611 = vmatmul.mubr.bf16.gmra.mrb[0].mxu0 %v256
  %v612 = vpop.f32.mrb[0].mxu0
  %v613 = vadd.f32 0.0, %v612
  %v614 = vpop.f32.mrb[0].mxu0
  %v615 = vpop.f32.mrb[0].mxu0
  %v616 = vadd.f32 0.0, %v615
  %v617 = vpop.f32.mrb[0].mxu0
  %618 = vmatprep.mubr.bf16.mxu0 0
  %619 = vmatmul.mubr.bf16.gmra.mrb[0].mxu0 %v257
  %v620 = vpop.f32.mrb[0].mxu0
  %v621 = vadd.f32 0.0, %v620
  %v622 = vpop.f32.mrb[0].mxu0
  %v623 = vpop.f32.mrb[0].mxu0
  %v624 = vadd.f32 0.0, %v623
  %v625 = vpop.f32.mrb[0].mxu0
  %626 = vdwg.mxu0
  %v627 = vadd.f32 %v373, %v376
  %v628 = vadd.f32 %v627, %v381
  %v629 = vadd.f32 %v628, %v384
  %v630 = vadd.f32 %v629, %v389
  %v631 = vadd.f32 %v630, %v392
  %v632 = vadd.f32 %v631, %v397
  %v633 = vadd.f32 %v632, %v400
  %v634 = vadd.f32 %v633, %v405
  %v635 = vadd.f32 %v634, %v408
  %v636 = vadd.f32 %v635, %v413
  %v637 = vadd.f32 %v636, %v416
  %v638 = vadd.f32 %v637, %v421
  %v639 = vadd.f32 %v638, %v424
  %v640 = vadd.f32 %v639, %v429
  %v641 = vadd.f32 %v640, %v432
  %v642 = vadd.f32 %v641, %v437
  %v643 = vadd.f32 %v642, %v440
  %v644 = vadd.f32 %v643, %v445
  %v645 = vadd.f32 %v644, %v448
  %v646 = vadd.f32 %v645, %v453
  %v647 = vadd.f32 %v646, %v456
  %v648 = vadd.f32 %v647, %v461
  %v649 = vadd.f32 %v648, %v464
  %v650 = vadd.f32 %v649, %v469
  %v651 = vadd.f32 %v650, %v472
  %v652 = vadd.f32 %v651, %v477
  %v653 = vadd.f32 %v652, %v480
  %v654 = vadd.f32 %v653, %v485
  %v655 = vadd.f32 %v654, %v488
  %v656 = vadd.f32 %v655, %v493
  %v657 = vadd.f32 %v656, %v496
  %v658 = vadd.f32 %v657, %v501
  %v659 = vadd.f32 %v658, %v504
  %v660 = vadd.f32 %v659, %v509
  %v661 = vadd.f32 %v660, %v512
  %v662 = vadd.f32 %v661, %v517
  %v663 = vadd.f32 %v662, %v520
  %v664 = vadd.f32 %v663, %v525
  %v665 = vadd.f32 %v664, %v528
  %v666 = vadd.f32 %v665, %v533
  %v667 = vadd.f32 %v666, %v536
  %v668 = vadd.f32 %v667, %v541
  %v669 = vadd.f32 %v668, %v544
  %v670 = vadd.f32 %v669, %v549
  %v671 = vadd.f32 %v670, %v552
  %v672 = vadd.f32 %v671, %v557
  %v673 = vadd.f32 %v672, %v560
  %v674 = vadd.f32 %v673, %v565
  %v675 = vadd.f32 %v674, %v568
  %v676 = vadd.f32 %v675, %v573
  %v677 = vadd.f32 %v676, %v576
  %v678 = vadd.f32 %v677, %v581
  %v679 = vadd.f32 %v678, %v584
  %v680 = vadd.f32 %v679, %v589
  %v681 = vadd.f32 %v680, %v592
  %v682 = vadd.f32 %v681, %v597
  %v683 = vadd.f32 %v682, %v600
  %v684 = vadd.f32 %v683, %v605
  %v685 = vadd.f32 %v684, %v608
  %v686 = vadd.f32 %v685, %v613
  %v687 = vadd.f32 %v686, %v616
  %v688 = vadd.f32 %v687, %v621
  %v689 = vadd.f32 %v688, %v624
  %v690 = vrot.slane %v689, 4
  %v691 = vadd.f32 %v689, %v690
  %v692 = vrot.slane %v691, 2
  %v693 = vadd.f32 %v691, %v692
  %v694 = vrot.slane %v693, 1
  %v695 = vadd.f32 %v693, %v694
  %v696 = vrcp.pop 512.0
  %v697 = vmul.f32 %v695, %v696
  %v698 = vsub.f32 %v373, %v697
  %v699 = vsub.f32 %v376, %v697
  %v700 = vsub.f32 %v381, %v697
  %v701 = vsub.f32 %v384, %v697
  %v702 = vsub.f32 %v389, %v697
  %v703 = vsub.f32 %v392, %v697
  %v704 = vsub.f32 %v397, %v697
  %v705 = vsub.f32 %v400, %v697
  %v706 = vsub.f32 %v405, %v697
  %v707 = vsub.f32 %v408, %v697
  %v708 = vsub.f32 %v413, %v697
  %v709 = vsub.f32 %v416, %v697
  %v710 = vsub.f32 %v421, %v697
  %v711 = vsub.f32 %v424, %v697
  %v712 = vsub.f32 %v429, %v697
  %v713 = vsub.f32 %v432, %v697
  %v714 = vsub.f32 %v437, %v697
  %v715 = vsub.f32 %v440, %v697
  %v716 = vsub.f32 %v445, %v697
  %v717 = vsub.f32 %v448, %v697
  %v718 = vsub.f32 %v453, %v697
  %v719 = vsub.f32 %v456, %v697
  %v720 = vsub.f32 %v461, %v697
  %v721 = vsub.f32 %v464, %v697
  %v722 = vsub.f32 %v469, %v697
  %v723 = vsub.f32 %v472, %v697
  %v724 = vsub.f32 %v477, %v697
  %v725 = vsub.f32 %v480, %v697
  %v726 = vsub.f32 %v485, %v697
  %v727 = vsub.f32 %v488, %v697
  %v728 = vsub.f32 %v493, %v697
  %v729 = vsub.f32 %v496, %v697
  %v730 = vsub.f32 %v501, %v697
  %v731 = vsub.f32 %v504, %v697
  %v732 = vsub.f32 %v509, %v697
  %v733 = vsub.f32 %v512, %v697
  %v734 = vsub.f32 %v517, %v697
  %v735 = vsub.f32 %v520, %v697
  %v736 = vsub.f32 %v525, %v697
  %v737 = vsub.f32 %v528, %v697
  %v738 = vsub.f32 %v533, %v697
  %v739 = vsub.f32 %v536, %v697
  %v740 = vsub.f32 %v541, %v697
  %v741 = vsub.f32 %v544, %v697
  %v742 = vsub.f32 %v549, %v697
  %v743 = vsub.f32 %v552, %v697
  %v744 = vsub.f32 %v557, %v697
  %v745 = vsub.f32 %v560, %v697
  %v746 = vsub.f32 %v565, %v697
  %v747 = vsub.f32 %v568, %v697
  %v748 = vsub.f32 %v573, %v697
  %v749 = vsub.f32 %v576, %v697
  %v750 = vsub.f32 %v581, %v697
  %v751 = vsub.f32 %v584, %v697
  %v752 = vsub.f32 %v589, %v697
  %v753 = vsub.f32 %v592, %v697
  %v754 = vsub.f32 %v597, %v697
  %v755 = vsub.f32 %v600, %v697
  %v756 = vsub.f32 %v605, %v697
  %v757 = vsub.f32 %v608, %v697
  %v758 = vsub.f32 %v613, %v697
  %v759 = vsub.f32 %v616, %v697
  %v760 = vsub.f32 %v621, %v697
  %v761 = vsub.f32 %v624, %v697
  %v762 = vmul.f32 %v698, %v698
  %v763 = vmul.f32 %v699, %v699
  %v764 = vmul.f32 %v700, %v700
  %v765 = vmul.f32 %v701, %v701
  %v766 = vmul.f32 %v702, %v702
  %v767 = vmul.f32 %v703, %v703
  %v768 = vmul.f32 %v704, %v704
  %v769 = vmul.f32 %v705, %v705
  %v770 = vmul.f32 %v706, %v706
  %v771 = vmul.f32 %v707, %v707
  %v772 = vmul.f32 %v708, %v708
  %v773 = vmul.f32 %v709, %v709
  %v774 = vmul.f32 %v710, %v710
  %v775 = vmul.f32 %v711, %v711
  %v776 = vmul.f32 %v712, %v712
  %v777 = vmul.f32 %v713, %v713
  %v778 = vmul.f32 %v714, %v714
  %v779 = vmul.f32 %v715, %v715
  %v780 = vmul.f32 %v716, %v716
  %v781 = vmul.f32 %v717, %v717
  %v782 = vmul.f32 %v718, %v718
  %v783 = vmul.f32 %v719, %v719
  %v784 = vmul.f32 %v720, %v720
  %v785 = vmul.f32 %v721, %v721
  %v786 = vmul.f32 %v722, %v722
  %v787 = vmul.f32 %v723, %v723
  %v788 = vmul.f32 %v724, %v724
  %v789 = vmul.f32 %v725, %v725
  %v790 = vmul.f32 %v726, %v726
  %v791 = vmul.f32 %v727, %v727
  %v792 = vmul.f32 %v728, %v728
  %v793 = vmul.f32 %v729, %v729
  %v794 = vmul.f32 %v730, %v730
  %v795 = vmul.f32 %v731, %v731
  %v796 = vmul.f32 %v732, %v732
  %v797 = vmul.f32 %v733, %v733
  %v798 = vmul.f32 %v734, %v734
  %v799 = vmul.f32 %v735, %v735
  %v800 = vmul.f32 %v736, %v736
  %v801 = vmul.f32 %v737, %v737
  %v802 = vmul.f32 %v738, %v738
  %v803 = vmul.f32 %v739, %v739
  %v804 = vmul.f32 %v740, %v740
  %v805 = vmul.f32 %v741, %v741
  %v806 = vmul.f32 %v742, %v742
  %v807 = vmul.f32 %v743, %v743
  %v808 = vmul.f32 %v744, %v744
  %v809 = vmul.f32 %v745, %v745
  %v810 = vmul.f32 %v746, %v746
  %v811 = vmul.f32 %v747, %v747
  %v812 = vmul.f32 %v748, %v748
  %v813 = vmul.f32 %v749, %v749
  %v814 = vmul.f32 %v750, %v750
  %v815 = vmul.f32 %v751, %v751
  %v816 = vmul.f32 %v752, %v752
  %v817 = vmul.f32 %v753, %v753
  %v818 = vmul.f32 %v754, %v754
  %v819 = vmul.f32 %v755, %v755
  %v820 = vmul.f32 %v756, %v756
  %v821 = vmul.f32 %v757, %v757
  %v822 = vmul.f32 %v758, %v758
  %v823 = vmul.f32 %v759, %v759
  %v824 = vmul.f32 %v760, %v760
  %v825 = vmul.f32 %v761, %v761
  %v826 = vadd.f32 %v762, %v763
  %v827 = vadd.f32 %v826, %v764
  %v828 = vadd.f32 %v827, %v765
  %v829 = vadd.f32 %v828, %v766
  %v830 = vadd.f32 %v829, %v767
  %v831 = vadd.f32 %v830, %v768
  %v832 = vadd.f32 %v831, %v769
  %v833 = vadd.f32 %v832, %v770
  %v834 = vadd.f32 %v833, %v771
  %v835 = vadd.f32 %v834, %v772
  %v836 = vadd.f32 %v835, %v773
  %v837 = vadd.f32 %v836, %v774
  %v838 = vadd.f32 %v837, %v775
  %v839 = vadd.f32 %v838, %v776
  %v840 = vadd.f32 %v839, %v777
  %v841 = vadd.f32 %v840, %v778
  %v842 = vadd.f32 %v841, %v779
  %v843 = vadd.f32 %v842, %v780
  %v844 = vadd.f32 %v843, %v781
  %v845 = vadd.f32 %v844, %v782
  %v846 = vadd.f32 %v845, %v783
  %v847 = vadd.f32 %v846, %v784
  %v848 = vadd.f32 %v847, %v785
  %v849 = vadd.f32 %v848, %v786
  %v850 = vadd.f32 %v849, %v787
  %v851 = vadd.f32 %v850, %v788
  %v852 = vadd.f32 %v851, %v789
  %v853 = vadd.f32 %v852, %v790
  %v854 = vadd.f32 %v853, %v791
  %v855 = vadd.f32 %v854, %v792
  %v856 = vadd.f32 %v855, %v793
  %v857 = vadd.f32 %v856, %v794
  %v858 = vadd.f32 %v857, %v795
  %v859 = vadd.f32 %v858, %v796
  %v860 = vadd.f32 %v859, %v797
  %v861 = vadd.f32 %v860, %v798
  %v862 = vadd.f32 %v861, %v799
  %v863 = vadd.f32 %v862, %v800
  %v864 = vadd.f32 %v863, %v801
  %v865 = vadd.f32 %v864, %v802
  %v866 = vadd.f32 %v865, %v803
  %v867 = vadd.f32 %v866, %v804
  %v868 = vadd.f32 %v867, %v805
  %v869 = vadd.f32 %v868, %v806
  %v870 = vadd.f32 %v869, %v807
  %v871 = vadd.f32 %v870, %v808
  %v872 = vadd.f32 %v871, %v809
  %v873 = vadd.f32 %v872, %v810
  %v874 = vadd.f32 %v873, %v811
  %v875 = vadd.f32 %v874, %v812
  %v876 = vadd.f32 %v875, %v813
  %v877 = vadd.f32 %v876, %v814
  %v878 = vadd.f32 %v877, %v815
  %v879 = vadd.f32 %v878, %v816
  %v880 = vadd.f32 %v879, %v817
  %v881 = vadd.f32 %v880, %v818
  %v882 = vadd.f32 %v881, %v819
  %v883 = vadd.f32 %v882, %v820
  %v884 = vadd.f32 %v883, %v821
  %v885 = vadd.f32 %v884, %v822
  %v886 = vadd.f32 %v885, %v823
  %v887 = vadd.f32 %v886, %v824
  %v888 = vadd.f32 %v887, %v825
  %v889 = vrot.slane %v888, 4
  %v890 = vadd.f32 %v888, %v889
  %v891 = vrot.slane %v890, 2
  %v892 = vadd.f32 %v890, %v891
  %v893 = vrot.slane %v892, 1
  %v894 = vadd.f32 %v892, %v893
  %v895 = vmul.f32 %v894, %v696
  %v896 = vadd.f32 %v895, 1e-05
  %v897 = vrsqrt.pop %v896
  %v898 = vmul.f32 %v698, %v897
  %v899 = vmul.f32 %v699, %v897
  %v900 = vmul.f32 %v700, %v897
  %v901 = vmul.f32 %v701, %v897
  %v902 = vmul.f32 %v702, %v897
  %v903 = vmul.f32 %v703, %v897
  %v904 = vmul.f32 %v704, %v897
  %v905 = vmul.f32 %v705, %v897
  %v906 = vmul.f32 %v706, %v897
  %v907 = vmul.f32 %v707, %v897
  %v908 = vmul.f32 %v708, %v897
  %v909 = vmul.f32 %v709, %v897
  %v910 = vmul.f32 %v710, %v897
  %v911 = vmul.f32 %v711, %v897
  %v912 = vmul.f32 %v712, %v897
  %v913 = vmul.f32 %v713, %v897
  %v914 = vmul.f32 %v714, %v897
  %v915 = vmul.f32 %v715, %v897
  %v916 = vmul.f32 %v716, %v897
  %v917 = vmul.f32 %v717, %v897
  %v918 = vmul.f32 %v718, %v897
  %v919 = vmul.f32 %v719, %v897
  %v920 = vmul.f32 %v720, %v897
  %v921 = vmul.f32 %v721, %v897
  %v922 = vmul.f32 %v722, %v897
  %v923 = vmul.f32 %v723, %v897
  %v924 = vmul.f32 %v724, %v897
  %v925 = vmul.f32 %v725, %v897
  %v926 = vmul.f32 %v726, %v897
  %v927 = vmul.f32 %v727, %v897
  %v928 = vmul.f32 %v728, %v897
  %v929 = vmul.f32 %v729, %v897
  %v930 = vmul.f32 %v730, %v897
  %v931 = vmul.f32 %v731, %v897
  %v932 = vmul.f32 %v732, %v897
  %v933 = vmul.f32 %v733, %v897
  %v934 = vmul.f32 %v734, %v897
  %v935 = vmul.f32 %v735, %v897
  %v936 = vmul.f32 %v736, %v897
  %v937 = vmul.f32 %v737, %v897
  %v938 = vmul.f32 %v738, %v897
  %v939 = vmul.f32 %v739, %v897
  %v940 = vmul.f32 %v740, %v897
  %v941 = vmul.f32 %v741, %v897
  %v942 = vmul.f32 %v742, %v897
  %v943 = vmul.f32 %v743, %v897
  %v944 = vmul.f32 %v744, %v897
  %v945 = vmul.f32 %v745, %v897
  %v946 = vmul.f32 %v746, %v897
  %v947 = vmul.f32 %v747, %v897
  %v948 = vmul.f32 %v748, %v897
  %v949 = vmul.f32 %v749, %v897
  %v950 = vmul.f32 %v750, %v897
  %v951 = vmul.f32 %v751, %v897
  %v952 = vmul.f32 %v752, %v897
  %v953 = vmul.f32 %v753, %v897
  %v954 = vmul.f32 %v754, %v897
  %v955 = vmul.f32 %v755, %v897
  %v956 = vmul.f32 %v756, %v897
  %v957 = vmul.f32 %v757, %v897
  %v958 = vmul.f32 %v758, %v897
  %v959 = vmul.f32 %v759, %v897
  %v960 = vmul.f32 %v760, %v897
  %v961 = vmul.f32 %v761, %v897
  %v962 = vld [vmem:[%s2] sm:$0x1]
  %v964 = vlaneseq
  %v965 = vshrl.u32 %v964, 7
  %v966 = vsub.s32 0, %v965
  %v967 = vrot.slane %v962, %v966
  %v969 = vmul.f32 %v898, %v967
  %v970 = vmul.f32 %v899, %v967
  %v971 = vmul.f32 %v900, %v967
  %v972 = vmul.f32 %v901, %v967
  %v973 = vmul.f32 %v902, %v967
  %v974 = vmul.f32 %v903, %v967
  %v975 = vmul.f32 %v904, %v967
  %v976 = vmul.f32 %v905, %v967
  %v977 = vmul.f32 %v906, %v967
  %v978 = vmul.f32 %v907, %v967
  %v979 = vmul.f32 %v908, %v967
  %v980 = vmul.f32 %v909, %v967
  %v981 = vmul.f32 %v910, %v967
  %v982 = vmul.f32 %v911, %v967
  %v983 = vmul.f32 %v912, %v967
  %v984 = vmul.f32 %v913, %v967
  %v985 = vmul.f32 %v914, %v967
  %v986 = vmul.f32 %v915, %v967
  %v987 = vmul.f32 %v916, %v967
  %v988 = vmul.f32 %v917, %v967
  %v989 = vmul.f32 %v918, %v967
  %v990 = vmul.f32 %v919, %v967
  %v991 = vmul.f32 %v920, %v967
  %v992 = vmul.f32 %v921, %v967
  %v993 = vmul.f32 %v922, %v967
  %v994 = vmul.f32 %v923, %v967
  %v995 = vmul.f32 %v924, %v967
  %v996 = vmul.f32 %v925, %v967
  %v997 = vmul.f32 %v926, %v967
  %v998 = vmul.f32 %v927, %v967
  %v999 = vmul.f32 %v928, %v967
  %v1000 = vmul.f32 %v929, %v967
  %v1001 = vmul.f32 %v930, %v967
  %v1002 = vmul.f32 %v931, %v967
  %v1003 = vmul.f32 %v932, %v967
  %v1004 = vmul.f32 %v933, %v967
  %v1005 = vmul.f32 %v934, %v967
  %v1006 = vmul.f32 %v935, %v967
  %v1007 = vmul.f32 %v936, %v967
  %v1008 = vmul.f32 %v937, %v967
  %v1009 = vmul.f32 %v938, %v967
  %v1010 = vmul.f32 %v939, %v967
  %v1011 = vmul.f32 %v940, %v967
  %v1012 = vmul.f32 %v941, %v967
  %v1013 = vmul.f32 %v942, %v967
  %v1014 = vmul.f32 %v943, %v967
  %v1015 = vmul.f32 %v944, %v967
  %v1016 = vmul.f32 %v945, %v967
  %v1017 = vmul.f32 %v946, %v967
  %v1018 = vmul.f32 %v947, %v967
  %v1019 = vmul.f32 %v948, %v967
  %v1020 = vmul.f32 %v949, %v967
  %v1021 = vmul.f32 %v950, %v967
  %v1022 = vmul.f32 %v951, %v967
  %v1023 = vmul.f32 %v952, %v967
  %v1024 = vmul.f32 %v953, %v967
  %v1025 = vmul.f32 %v954, %v967
  %v1026 = vmul.f32 %v955, %v967
  %v1027 = vmul.f32 %v956, %v967
  %v1028 = vmul.f32 %v957, %v967
  %v1029 = vmul.f32 %v958, %v967
  %v1030 = vmul.f32 %v959, %v967
  %v1031 = vmul.f32 %v960, %v967
  %v1032 = vmul.f32 %v961, %v967
  %v1033 = vld [vmem:[%s3] sm:$0x1]
  %v1035 = vlaneseq
  %v1036 = vshrl.u32 %v1035, 7
  %v1037 = vsub.s32 0, %v1036
  %v1038 = vrot.slane %v1033, %v1037
  %v1040 = vadd.f32 %v969, %v1038
  %v1041 = vadd.f32 %v970, %v1038
  %v1042 = vadd.f32 %v971, %v1038
  %v1043 = vadd.f32 %v972, %v1038
  %v1044 = vadd.f32 %v973, %v1038
  %v1045 = vadd.f32 %v974, %v1038
  %v1046 = vadd.f32 %v975, %v1038
  %v1047 = vadd.f32 %v976, %v1038
  %v1048 = vadd.f32 %v977, %v1038
  %v1049 = vadd.f32 %v978, %v1038
  %v1050 = vadd.f32 %v979, %v1038
  %v1051 = vadd.f32 %v980, %v1038
  %v1052 = vadd.f32 %v981, %v1038
  %v1053 = vadd.f32 %v982, %v1038
  %v1054 = vadd.f32 %v983, %v1038
  %v1055 = vadd.f32 %v984, %v1038
  %v1056 = vadd.f32 %v985, %v1038
  %v1057 = vadd.f32 %v986, %v1038
  %v1058 = vadd.f32 %v987, %v1038
  %v1059 = vadd.f32 %v988, %v1038
  %v1060 = vadd.f32 %v989, %v1038
  %v1061 = vadd.f32 %v990, %v1038
  %v1062 = vadd.f32 %v991, %v1038
  %v1063 = vadd.f32 %v992, %v1038
  %v1064 = vadd.f32 %v993, %v1038
  %v1065 = vadd.f32 %v994, %v1038
  %v1066 = vadd.f32 %v995, %v1038
  %v1067 = vadd.f32 %v996, %v1038
  %v1068 = vadd.f32 %v997, %v1038
  %v1069 = vadd.f32 %v998, %v1038
  %v1070 = vadd.f32 %v999, %v1038
  %v1071 = vadd.f32 %v1000, %v1038
  %v1072 = vadd.f32 %v1001, %v1038
  %v1073 = vadd.f32 %v1002, %v1038
  %v1074 = vadd.f32 %v1003, %v1038
  %v1075 = vadd.f32 %v1004, %v1038
  %v1076 = vadd.f32 %v1005, %v1038
  %v1077 = vadd.f32 %v1006, %v1038
  %v1078 = vadd.f32 %v1007, %v1038
  %v1079 = vadd.f32 %v1008, %v1038
  %v1080 = vadd.f32 %v1009, %v1038
  %v1081 = vadd.f32 %v1010, %v1038
  %v1082 = vadd.f32 %v1011, %v1038
  %v1083 = vadd.f32 %v1012, %v1038
  %v1084 = vadd.f32 %v1013, %v1038
  %v1085 = vadd.f32 %v1014, %v1038
  %v1086 = vadd.f32 %v1015, %v1038
  %v1087 = vadd.f32 %v1016, %v1038
  %v1088 = vadd.f32 %v1017, %v1038
  %v1089 = vadd.f32 %v1018, %v1038
  %v1090 = vadd.f32 %v1019, %v1038
  %v1091 = vadd.f32 %v1020, %v1038
  %v1092 = vadd.f32 %v1021, %v1038
  %v1093 = vadd.f32 %v1022, %v1038
  %v1094 = vadd.f32 %v1023, %v1038
  %v1095 = vadd.f32 %v1024, %v1038
  %v1096 = vadd.f32 %v1025, %v1038
  %v1097 = vadd.f32 %v1026, %v1038
  %v1098 = vadd.f32 %v1027, %v1038
  %v1099 = vadd.f32 %v1028, %v1038
  %v1100 = vadd.f32 %v1029, %v1038
  %v1101 = vadd.f32 %v1030, %v1038
  %v1102 = vadd.f32 %v1031, %v1038
  %v1103 = vadd.f32 %v1032, %v1038
  %v1104 = vmax.f32 %v1040, 0.0
  %v1105 = vmax.f32 %v1041, 0.0
  %v1106 = vmax.f32 %v1042, 0.0
  %v1107 = vmax.f32 %v1043, 0.0
  %v1108 = vmax.f32 %v1044, 0.0
  %v1109 = vmax.f32 %v1045, 0.0
  %v1110 = vmax.f32 %v1046, 0.0
  %v1111 = vmax.f32 %v1047, 0.0
  %v1112 = vmax.f32 %v1048, 0.0
  %v1113 = vmax.f32 %v1049, 0.0
  %v1114 = vmax.f32 %v1050, 0.0
  %v1115 = vmax.f32 %v1051, 0.0
  %v1116 = vmax.f32 %v1052, 0.0
  %v1117 = vmax.f32 %v1053, 0.0
  %v1118 = vmax.f32 %v1054, 0.0
  %v1119 = vmax.f32 %v1055, 0.0
  %v1120 = vmax.f32 %v1056, 0.0
  %v1121 = vmax.f32 %v1057, 0.0
  %v1122 = vmax.f32 %v1058, 0.0
  %v1123 = vmax.f32 %v1059, 0.0
  %v1124 = vmax.f32 %v1060, 0.0
  %v1125 = vmax.f32 %v1061, 0.0
  %v1126 = vmax.f32 %v1062, 0.0
  %v1127 = vmax.f32 %v1063, 0.0
  %v1128 = vmax.f32 %v1064, 0.0
  %v1129 = vmax.f32 %v1065, 0.0
  %v1130 = vmax.f32 %v1066, 0.0
  %v1131 = vmax.f32 %v1067, 0.0
  %v1132 = vmax.f32 %v1068, 0.0
  %v1133 = vmax.f32 %v1069, 0.0
  %v1134 = vmax.f32 %v1070, 0.0
  %v1135 = vmax.f32 %v1071, 0.0
  %v1136 = vmax.f32 %v1072, 0.0
  %v1137 = vmax.f32 %v1073, 0.0
  %v1138 = vmax.f32 %v1074, 0.0
  %v1139 = vmax.f32 %v1075, 0.0
  %v1140 = vmax.f32 %v1076, 0.0
  %v1141 = vmax.f32 %v1077, 0.0
  %v1142 = vmax.f32 %v1078, 0.0
  %v1143 = vmax.f32 %v1079, 0.0
  %v1144 = vmax.f32 %v1080, 0.0
  %v1145 = vmax.f32 %v1081, 0.0
  %v1146 = vmax.f32 %v1082, 0.0
  %v1147 = vmax.f32 %v1083, 0.0
  %v1148 = vmax.f32 %v1084, 0.0
  %v1149 = vmax.f32 %v1085, 0.0
  %v1150 = vmax.f32 %v1086, 0.0
  %v1151 = vmax.f32 %v1087, 0.0
  %v1152 = vmax.f32 %v1088, 0.0
  %v1153 = vmax.f32 %v1089, 0.0
  %v1154 = vmax.f32 %v1090, 0.0
  %v1155 = vmax.f32 %v1091, 0.0
  %v1156 = vmax.f32 %v1092, 0.0
  %v1157 = vmax.f32 %v1093, 0.0
  %v1158 = vmax.f32 %v1094, 0.0
  %v1159 = vmax.f32 %v1095, 0.0
  %v1160 = vmax.f32 %v1096, 0.0
  %v1161 = vmax.f32 %v1097, 0.0
  %v1162 = vmax.f32 %v1098, 0.0
  %v1163 = vmax.f32 %v1099, 0.0
  %v1164 = vmax.f32 %v1100, 0.0
  %v1165 = vmax.f32 %v1101, 0.0
  %v1166 = vmax.f32 %v1102, 0.0
  %v1167 = vmax.f32 %v1103, 0.0
  %v1168 = vpack.c.bf16 %v1105, %v1104
  %v1169 = vpack.c.bf16 %v1107, %v1106
  %v1170 = vpack.c.bf16 %v1109, %v1108
  %v1171 = vpack.c.bf16 %v1111, %v1110
  %v1172 = vpack.c.bf16 %v1113, %v1112
  %v1173 = vpack.c.bf16 %v1115, %v1114
  %v1174 = vpack.c.bf16 %v1117, %v1116
  %v1175 = vpack.c.bf16 %v1119, %v1118
  %v1176 = vpack.c.bf16 %v1121, %v1120
  %v1177 = vpack.c.bf16 %v1123, %v1122
  %v1178 = vpack.c.bf16 %v1125, %v1124
  %v1179 = vpack.c.bf16 %v1127, %v1126
  %v1180 = vpack.c.bf16 %v1129, %v1128
  %v1181 = vpack.c.bf16 %v1131, %v1130
  %v1182 = vpack.c.bf16 %v1133, %v1132
  %v1183 = vpack.c.bf16 %v1135, %v1134
  %v1184 = vpack.c.bf16 %v1137, %v1136
  %v1185 = vpack.c.bf16 %v1139, %v1138
  %v1186 = vpack.c.bf16 %v1141, %v1140
  %v1187 = vpack.c.bf16 %v1143, %v1142
  %v1188 = vpack.c.bf16 %v1145, %v1144
  %v1189 = vpack.c.bf16 %v1147, %v1146
  %v1190 = vpack.c.bf16 %v1149, %v1148
  %v1191 = vpack.c.bf16 %v1151, %v1150
  %v1192 = vpack.c.bf16 %v1153, %v1152
  %v1193 = vpack.c.bf16 %v1155, %v1154
  %v1194 = vpack.c.bf16 %v1157, %v1156
  %v1195 = vpack.c.bf16 %v1159, %v1158
  %v1196 = vpack.c.bf16 %v1161, %v1160
  %v1197 = vpack.c.bf16 %v1163, %v1162
  %v1198 = vpack.c.bf16 %v1165, %v1164
  %v1199 = vpack.c.bf16 %v1167, %v1166
  %v1232 = vunpack.c.l.b16 %v1168
  %v1233 = vunpack.c.h.b16 %v1168
  %v1234 = vunpack.c.l.b16 %v1169
  %v1235 = vunpack.c.h.b16 %v1169
  %v1236 = vunpack.c.l.b16 %v1170
  %v1237 = vunpack.c.h.b16 %v1170
  %v1238 = vunpack.c.l.b16 %v1171
  %v1239 = vunpack.c.h.b16 %v1171
  %v1240 = vunpack.c.l.b16 %v1172
  %v1241 = vunpack.c.h.b16 %v1172
  %v1242 = vunpack.c.l.b16 %v1173
  %v1243 = vunpack.c.h.b16 %v1173
  %v1244 = vunpack.c.l.b16 %v1174
  %v1245 = vunpack.c.h.b16 %v1174
  %v1246 = vunpack.c.l.b16 %v1175
  %v1247 = vunpack.c.h.b16 %v1175
  %v1248 = vunpack.c.l.b16 %v1176
  %v1249 = vunpack.c.h.b16 %v1176
  %v1250 = vunpack.c.l.b16 %v1177
  %v1251 = vunpack.c.h.b16 %v1177
  %v1252 = vunpack.c.l.b16 %v1178
  %v1253 = vunpack.c.h.b16 %v1178
  %v1254 = vunpack.c.l.b16 %v1179
  %v1255 = vunpack.c.h.b16 %v1179
  %v1256 = vunpack.c.l.b16 %v1180
  %v1257 = vunpack.c.h.b16 %v1180
  %v1258 = vunpack.c.l.b16 %v1181
  %v1259 = vunpack.c.h.b16 %v1181
  %v1260 = vunpack.c.l.b16 %v1182
  %v1261 = vunpack.c.h.b16 %v1182
  %v1262 = vunpack.c.l.b16 %v1183
  %v1263 = vunpack.c.h.b16 %v1183
  %v1264 = vunpack.c.l.b16 %v1184
  %v1265 = vunpack.c.h.b16 %v1184
  %v1266 = vunpack.c.l.b16 %v1185
  %v1267 = vunpack.c.h.b16 %v1185
  %v1268 = vunpack.c.l.b16 %v1186
  %v1269 = vunpack.c.h.b16 %v1186
  %v1270 = vunpack.c.l.b16 %v1187
  %v1271 = vunpack.c.h.b16 %v1187
  %v1272 = vunpack.c.l.b16 %v1188
  %v1273 = vunpack.c.h.b16 %v1188
  %v1274 = vunpack.c.l.b16 %v1189
  %v1275 = vunpack.c.h.b16 %v1189
  %v1276 = vunpack.c.l.b16 %v1190
  %v1277 = vunpack.c.h.b16 %v1190
  %v1278 = vunpack.c.l.b16 %v1191
  %v1279 = vunpack.c.h.b16 %v1191
  %v1280 = vunpack.c.l.b16 %v1192
  %v1281 = vunpack.c.h.b16 %v1192
  %v1282 = vunpack.c.l.b16 %v1193
  %v1283 = vunpack.c.h.b16 %v1193
  %v1284 = vunpack.c.l.b16 %v1194
  %v1285 = vunpack.c.h.b16 %v1194
  %v1286 = vunpack.c.l.b16 %v1195
  %v1287 = vunpack.c.h.b16 %v1195
  %v1288 = vunpack.c.l.b16 %v1196
  %v1289 = vunpack.c.h.b16 %v1196
  %v1290 = vunpack.c.l.b16 %v1197
  %v1291 = vunpack.c.h.b16 %v1197
  %v1292 = vunpack.c.l.b16 %v1198
  %v1293 = vunpack.c.h.b16 %v1198
  %v1294 = vunpack.c.l.b16 %v1199
  %v1295 = vunpack.c.h.b16 %v1199
  %v1296 = vpack.c.b16 %v1232, %v1232
  %v1297 = vpack.c.b16 %v1233, %v1233
  %v1298 = vpack.c.b16 %v1234, %v1234
  %v1299 = vpack.c.b16 %v1235, %v1235
  %v1300 = vpack.c.b16 %v1236, %v1236
  %v1301 = vpack.c.b16 %v1237, %v1237
  %v1302 = vpack.c.b16 %v1238, %v1238
  %v1303 = vpack.c.b16 %v1239, %v1239
  %v1304 = vpack.c.b16 %v1240, %v1240
  %v1305 = vpack.c.b16 %v1241, %v1241
  %v1306 = vpack.c.b16 %v1242, %v1242
  %v1307 = vpack.c.b16 %v1243, %v1243
  %v1308 = vpack.c.b16 %v1244, %v1244
  %v1309 = vpack.c.b16 %v1245, %v1245
  %v1310 = vpack.c.b16 %v1246, %v1246
  %v1311 = vpack.c.b16 %v1247, %v1247
  %v1312 = vpack.c.b16 %v1248, %v1248
  %v1313 = vpack.c.b16 %v1249, %v1249
  %v1314 = vpack.c.b16 %v1250, %v1250
  %v1315 = vpack.c.b16 %v1251, %v1251
  %v1316 = vpack.c.b16 %v1252, %v1252
  %v1317 = vpack.c.b16 %v1253, %v1253
  %v1318 = vpack.c.b16 %v1254, %v1254
  %v1319 = vpack.c.b16 %v1255, %v1255
  %v1320 = vpack.c.b16 %v1256, %v1256
  %v1321 = vpack.c.b16 %v1257, %v1257
  %v1322 = vpack.c.b16 %v1258, %v1258
  %v1323 = vpack.c.b16 %v1259, %v1259
  %v1324 = vpack.c.b16 %v1260, %v1260
  %v1325 = vpack.c.b16 %v1261, %v1261
  %v1326 = vpack.c.b16 %v1262, %v1262
  %v1327 = vpack.c.b16 %v1263, %v1263
  %v1328 = vpack.c.b16 %v1264, %v1264
  %v1329 = vpack.c.b16 %v1265, %v1265
  %v1330 = vpack.c.b16 %v1266, %v1266
  %v1331 = vpack.c.b16 %v1267, %v1267
  %v1332 = vpack.c.b16 %v1268, %v1268
  %v1333 = vpack.c.b16 %v1269, %v1269
  %v1334 = vpack.c.b16 %v1270, %v1270
  %v1335 = vpack.c.b16 %v1271, %v1271
  %v1336 = vpack.c.b16 %v1272, %v1272
  %v1337 = vpack.c.b16 %v1273, %v1273
  %v1338 = vpack.c.b16 %v1274, %v1274
  %v1339 = vpack.c.b16 %v1275, %v1275
  %v1340 = vpack.c.b16 %v1276, %v1276
  %v1341 = vpack.c.b16 %v1277, %v1277
  %v1342 = vpack.c.b16 %v1278, %v1278
  %v1343 = vpack.c.b16 %v1279, %v1279
  %v1344 = vpack.c.b16 %v1280, %v1280
  %v1345 = vpack.c.b16 %v1281, %v1281
  %v1346 = vpack.c.b16 %v1282, %v1282
  %v1347 = vpack.c.b16 %v1283, %v1283
  %v1348 = vpack.c.b16 %v1284, %v1284
  %v1349 = vpack.c.b16 %v1285, %v1285
  %v1350 = vpack.c.b16 %v1286, %v1286
  %v1351 = vpack.c.b16 %v1287, %v1287
  %v1352 = vpack.c.b16 %v1288, %v1288
  %v1353 = vpack.c.b16 %v1289, %v1289
  %v1354 = vpack.c.b16 %v1290, %v1290
  %v1355 = vpack.c.b16 %v1291, %v1291
  %v1356 = vpack.c.b16 %v1292, %v1292
  %v1357 = vpack.c.b16 %v1293, %v1293
  %v1358 = vpack.c.b16 %v1294, %v1294
  %v1359 = vpack.c.b16 %v1295, %v1295
  %1424 = vst [vmem:[%s4] sm:$0xf] %v1296
  %1425 = vst [vmem:[%s4 + $0x4] sm:$0xf] %v1297
  %1426 = vst [vmem:[%s4 + $0x8] sm:$0xf] %v1298
  %1427 = vst [vmem:[%s4 + $0xc] sm:$0xf] %v1299
  %1428 = vst [vmem:[%s4 + $0x10] sm:$0xf] %v1300
  %1429 = vst [vmem:[%s4 + $0x14] sm:$0xf] %v1301
  %1430 = vst [vmem:[%s4 + $0x18] sm:$0xf] %v1302
  %1431 = vst [vmem:[%s4 + $0x1c] sm:$0xf] %v1303
  %1432 = vst [vmem:[%s4 + $0x20] sm:$0xf] %v1304
  %1433 = vst [vmem:[%s4 + $0x24] sm:$0xf] %v1305
  %1434 = vst [vmem:[%s4 + $0x28] sm:$0xf] %v1306
  %1435 = vst [vmem:[%s4 + $0x2c] sm:$0xf] %v1307
  %1436 = vst [vmem:[%s4 + $0x30] sm:$0xf] %v1308
  %1437 = vst [vmem:[%s4 + $0x34] sm:$0xf] %v1309
  %1438 = vst [vmem:[%s4 + $0x38] sm:$0xf] %v1310
  %1439 = vst [vmem:[%s4 + $0x3c] sm:$0xf] %v1311
  %1440 = vst [vmem:[%s4 + $0x40] sm:$0xf] %v1312
  %1441 = vst [vmem:[%s4 + $0x44] sm:$0xf] %v1313
  %1442 = vst [vmem:[%s4 + $0x48] sm:$0xf] %v1314
  %1443 = vst [vmem:[%s4 + $0x4c] sm:$0xf] %v1315
  %1444 = vst [vmem:[%s4 + $0x50] sm:$0xf] %v1316
  %1445 = vst [vmem:[%s4 + $0x54] sm:$0xf] %v1317
  %1446 = vst [vmem:[%s4 + $0x58] sm:$0xf] %v1318
  %1447 = vst [vmem:[%s4 + $0x5c] sm:$0xf] %v1319
  %1448 = vst [vmem:[%s4 + $0x60] sm:$0xf] %v1320
  %1449 = vst [vmem:[%s4 + $0x64] sm:$0xf] %v1321
  %1450 = vst [vmem:[%s4 + $0x68] sm:$0xf] %v1322
  %1451 = vst [vmem:[%s4 + $0x6c] sm:$0xf] %v1323
  %1452 = vst [vmem:[%s4 + $0x70] sm:$0xf] %v1324
  %1453 = vst [vmem:[%s4 + $0x74] sm:$0xf] %v1325
  %1454 = vst [vmem:[%s4 + $0x78] sm:$0xf] %v1326
  %1455 = vst [vmem:[%s4 + $0x7c] sm:$0xf] %v1327
  %1456 = vst [vmem:[%s4 + $0x80] sm:$0xf] %v1328
  %1457 = vst [vmem:[%s4 + $0x84] sm:$0xf] %v1329
  %1458 = vst [vmem:[%s4 + $0x88] sm:$0xf] %v1330
  %1459 = vst [vmem:[%s4 + $0x8c] sm:$0xf] %v1331
  %1460 = vst [vmem:[%s4 + $0x90] sm:$0xf] %v1332
  %1461 = vst [vmem:[%s4 + $0x94] sm:$0xf] %v1333
  %1462 = vst [vmem:[%s4 + $0x98] sm:$0xf] %v1334
  %1463 = vst [vmem:[%s4 + $0x9c] sm:$0xf] %v1335
  %1464 = vst [vmem:[%s4 + $0xa0] sm:$0xf] %v1336
  %1465 = vst [vmem:[%s4 + $0xa4] sm:$0xf] %v1337
  %1466 = vst [vmem:[%s4 + $0xa8] sm:$0xf] %v1338
  %1467 = vst [vmem:[%s4 + $0xac] sm:$0xf] %v1339
  %1468 = vst [vmem:[%s4 + $0xb0] sm:$0xf] %v1340
  %1469 = vst [vmem:[%s4 + $0xb4] sm:$0xf] %v1341
  %1470 = vst [vmem:[%s4 + $0xb8] sm:$0xf] %v1342
  %1471 = vst [vmem:[%s4 + $0xbc] sm:$0xf] %v1343
  %1472 = vst [vmem:[%s4 + $0xc0] sm:$0xf] %v1344
  %1473 = vst [vmem:[%s4 + $0xc4] sm:$0xf] %v1345
  %1474 = vst [vmem:[%s4 + $0xc8] sm:$0xf] %v1346
  %1475 = vst [vmem:[%s4 + $0xcc] sm:$0xf] %v1347
  %1476 = vst [vmem:[%s4 + $0xd0] sm:$0xf] %v1348
  %1477 = vst [vmem:[%s4 + $0xd4] sm:$0xf] %v1349
  %1478 = vst [vmem:[%s4 + $0xd8] sm:$0xf] %v1350
  %1479 = vst [vmem:[%s4 + $0xdc] sm:$0xf] %v1351
  %1480 = vst [vmem:[%s4 + $0xe0] sm:$0xf] %v1352
  %1481 = vst [vmem:[%s4 + $0xe4] sm:$0xf] %v1353
  %1482 = vst [vmem:[%s4 + $0xe8] sm:$0xf] %v1354
  %1483 = vst [vmem:[%s4 + $0xec] sm:$0xf] %v1355
  %1484 = vst [vmem:[%s4 + $0xf0] sm:$0xf] %v1356
  %1485 = vst [vmem:[%s4 + $0xf4] sm:$0xf] %v1357
  %1486 = vst [vmem:[%s4 + $0xf8] sm:$0xf] %v1358
  %1487 = vst [vmem:[%s4 + $0xfc] sm:$0xf] %v1359
  // Predicated region
  $region18: #{residual_block_forward.2} parent=0 // pred_check
    _
  $region19: #{residual_block_forward.2} parent=0 // pred_check_branch
    %1489 = sbr.rel (0) target = $region21
  $region20: #{residual_block_forward.2} parent=0 // pred_region
    _
  $region21: #{residual_block_forward.2} parent=0 // pred_fallthru
    _
  // Predicated region
  $region22: #{residual_block_forward.2} parent=0 // pred_check
    _
  $region23: #{residual_block_forward.2} parent=0 // pred_check_branch
    %1491 = sbr.rel (0) target = $region25
  $region24: #{residual_block_forward.2} parent=0 // pred_region
    _
  $region25: #{residual_block_forward.2} parent=0 // pred_fallthru
    _

// kernel: residual_block_forward.3
$region0: #{residual_block_forward.3}
  #allocation0 [shape = 'u32[]', space=smem, size = 0x4, offset = 0x4, fixed_abs, tag = 'smem constant byte address 0x4 - core index']
  #allocation1 [shape = 'u32[144,128]{1,0:T(1,128)}', space=vmem, size = 0x12000, scoped, tag = 'internal scratch']
  %s0 = inlined_call_operand.vmem [shape: bf16[512,1152], index: 0, kind: input, shape index: {}]
  %s1 = inlined_call_operand.vmem [shape: bf16[1152,128], index: 1, kind: input, shape index: {}]
  %s2 = inlined_call_operand.vmem [shape: f32[1,128], index: 2, kind: input, shape index: {}]
  %s3 = inlined_call_operand.vmem [shape: f32[1,128], index: 3, kind: input, shape index: {}]
  %s4 = inlined_call_operand.vmem [shape: f32[512,128], index: 4, kind: input, shape index: {}]
  %s5 = inlined_call_operand.vmem [shape: f32[512,128], index: 5, kind: output, shape index: {}]
  %s6 = sld [smem:[#allocation0]]
  $region30: #{residual_block_forward.3} parent=0
    _
  %s8 = ssub.s32 1, %s6
  %s9 = scalar_select 0, %s8, %s6
  // Predicated region
  $region2: #{residual_block_forward.3} parent=0 // pred_check
    _
  $region3: #{residual_block_forward.3} parent=0 // pred_check_branch
    %11 = sbr.rel (0) target = $region5
  $region4: #{residual_block_forward.3} parent=0 // pred_region
    _
  $region5: #{residual_block_forward.3} parent=0 // pred_fallthru
    _
  // Predicated region
  $region6: #{residual_block_forward.3} parent=0 // pred_check
    _
  $region7: #{residual_block_forward.3} parent=0 // pred_check_branch
    %13 = sbr.rel (0) target = $region9
  $region8: #{residual_block_forward.3} parent=0 // pred_region
    _
  $region9: #{residual_block_forward.3} parent=0 // pred_fallthru
    _
  // Predicated region
  $region10: #{residual_block_forward.3} parent=0 // pred_check
    _
  $region11: #{residual_block_forward.3} parent=0 // pred_check_branch
    %15 = sbr.rel (0) target = $region13
  $region12: #{residual_block_forward.3} parent=0 // pred_region
    _
  $region13: #{residual_block_forward.3} parent=0 // pred_fallthru
    _
  // Predicated region
  $region14: #{residual_block_forward.3} parent=0 // pred_check
    _
  $region15: #{residual_block_forward.3} parent=0 // pred_check_branch
    %17 = sbr.rel (0) target = $region17
  $region16: #{residual_block_forward.3} parent=0 // pred_region
    _
  $region17: #{residual_block_forward.3} parent=0 // pred_fallthru
    _
  // Predicated region
  $region18: #{residual_block_forward.3} parent=0 // pred_check
    _
  $region19: #{residual_block_forward.3} parent=0 // pred_check_branch
    %19 = sbr.rel (0) target = $region21
  $region20: #{residual_block_forward.3} parent=0 // pred_region
    _
  $region21: #{residual_block_forward.3} parent=0 // pred_fallthru
    _
  %v21 = vld [vmem:[%s0] sm:$0xff]
  %v22 = vld [vmem:[%s0 + $0x8] sm:$0xff]
  %v23 = vld [vmem:[%s0 + $0x10] sm:$0xff]
  %v24 = vld [vmem:[%s0 + $0x18] sm:$0xff]
  %v25 = vld [vmem:[%s0 + $0x20] sm:$0xf]
  %v26 = vld [vmem:[%s0 + $0x24] sm:$0xff]
  %v27 = vld [vmem:[%s0 + $0x2c] sm:$0xff]
  %v28 = vld [vmem:[%s0 + $0x34] sm:$0xff]
  %v29 = vld [vmem:[%s0 + $0x3c] sm:$0xff]
  %v30 = vld [vmem:[%s0 + $0x44] sm:$0xf]
  %v31 = vld [vmem:[%s0 + $0x48] sm:$0xff]
  %v32 = vld [vmem:[%s0 + $0x50] sm:$0xff]
  %v33 = vld [vmem:[%s0 + $0x58] sm:$0xff]
  %v34 = vld [vmem:[%s0 + $0x60] sm:$0xff]
  %v35 = vld [vmem:[%s0 + $0x68] sm:$0xf]
  %v36 = vld [vmem:[%s0 + $0x6c] sm:$0xff]
  %v37 = vld [vmem:[%s0 + $0x74] sm:$0xff]
  %v38 = vld [vmem:[%s0 + $0x7c] sm:$0xff]
  %v39 = vld [vmem:[%s0 + $0x84] sm:$0xff]
  %v40 = vld [vmem:[%s0 + $0x8c] sm:$0xf]
  %v41 = vld [vmem:[%s0 + $0x90] sm:$0xff]
  %v42 = vld [vmem:[%s0 + $0x98] sm:$0xff]
  %v43 = vld [vmem:[%s0 + $0xa0] sm:$0xff]
  %v44 = vld [vmem:[%s0 + $0xa8] sm:$0xff]
  %v45 = vld [vmem:[%s0 + $0xb0] sm:$0xf]
  %v46 = vld [vmem:[%s0 + $0xb4] sm:$0xff]
  %v47 = vld [vmem:[%s0 + $0xbc] sm:$0xff]
  %v48 = vld [vmem:[%s0 + $0xc4] sm:$0xff]
  %v49 = vld [vmem:[%s0 + $0xcc] sm:$0xff]
  %v50 = vld [vmem:[%s0 + $0xd4] sm:$0xf]
  %v51 = vld [vmem:[%s0 + $0xd8] sm:$0xff]
  %v52 = vld [vmem:[%s0 + $0xe0] sm:$0xff]
  %v53 = vld [vmem:[%s0 + $0xe8] sm:$0xff]
  %v54 = vld [vmem:[%s0 + $0xf0] sm:$0xff]
  %v55 = vld [vmem:[%s0 + $0xf8] sm:$0xf]
  %v56 = vld [vmem:[%s0 + $0xfc] sm:$0xff]
  %v57 = vld [vmem:[%s0 + $0x104] sm:$0xff]
  %v58 = vld [vmem:[%s0 + $0x10c] sm:$0xff]
  %v59 = vld [vmem:[%s0 + $0x114] sm:$0xff]
  %v60 = vld [vmem:[%s0 + $0x11c] sm:$0xf]
  %v61 = vld [vmem:[%s0 + $0x120] sm:$0xff]
  %v62 = vld [vmem:[%s0 + $0x128] sm:$0xff]
  %v63 = vld [vmem:[%s0 + $0x130] sm:$0xff]
  %v64 = vld [vmem:[%s0 + $0x138] sm:$0xff]
  %v65 = vld [vmem:[%s0 + $0x140] sm:$0xf]
  %v66 = vld [vmem:[%s0 + $0x144] sm:$0xff]
  %v67 = vld [vmem:[%s0 + $0x14c] sm:$0xff]
  %v68 = vld [vmem:[%s0 + $0x154] sm:$0xff]
  %v69 = vld [vmem:[%s0 + $0x15c] sm:$0xff]
  %v70 = vld [vmem:[%s0 + $0x164] sm:$0xf]
  %v71 = vld [vmem:[%s0 + $0x168] sm:$0xff]
  %v72 = vld [vmem:[%s0 + $0x170] sm:$0xff]
  %v73 = vld [vmem:[%s0 + $0x178] sm:$0xff]
  %v74 = vld [vmem:[%s0 + $0x180] sm:$0xff]
  %v75 = vld [vmem:[%s0 + $0x188] sm:$0xf]
  %v76 = vld [vmem:[%s0 + $0x18c] sm:$0xff]
  %v77 = vld [vmem:[%s0 + $0x194] sm:$0xff]
  %v78 = vld [vmem:[%s0 + $0x19c] sm:$0xff]
  %v79 = vld [vmem:[%s0 + $0x1a4] sm:$0xff]
  %v80 = vld [vmem:[%s0 + $0x1ac] sm:$0xf]
  %v81 = vld [vmem:[%s0 + $0x1b0] sm:$0xff]
  %v82 = vld [vmem:[%s0 + $0x1b8] sm:$0xff]
  %v83 = vld [vmem:[%s0 + $0x1c0] sm:$0xff]
  %v84 = vld [vmem:[%s0 + $0x1c8] sm:$0xff]
  %v85 = vld [vmem:[%s0 + $0x1d0] sm:$0xf]
  %v86 = vld [vmem:[%s0 + $0x1d4] sm:$0xff]
  %v87 = vld [vmem:[%s0 + $0x1dc] sm:$0xff]
  %v88 = vld [vmem:[%s0 + $0x1e4] sm:$0xff]
  %v89 = vld [vmem:[%s0 + $0x1ec] sm:$0xff]
  %v90 = vld [vmem:[%s0 + $0x1f4] sm:$0xf]
  %v91 = vld [vmem:[%s0 + $0x1f8] sm:$0xff]
  %v92 = vld [vmem:[%s0 + $0x200] sm:$0xff]
  %v93 = vld [vmem:[%s0 + $0x208] sm:$0xff]
  %v94 = vld [vmem:[%s0 + $0x210] sm:$0xff]
  %v95 = vld [vmem:[%s0 + $0x218] sm:$0xf]
  %v96 = vld [vmem:[%s0 + $0x21c] sm:$0xff]
  %v97 = vld [vmem:[%s0 + $0x224] sm:$0xff]
  %v98 = vld [vmem:[%s0 + $0x22c] sm:$0xff]
  %v99 = vld [vmem:[%s0 + $0x234] sm:$0xff]
  %v100 = vld [vmem:[%s0 + $0x23c] sm:$0xf]
  %v101 = vld [vmem:[%s0 + $0x240] sm:$0xff]
  %v102 = vld [vmem:[%s0 + $0x248] sm:$0xff]
  %v103 = vld [vmem:[%s0 + $0x250] sm:$0xff]
  %v104 = vld [vmem:[%s0 + $0x258] sm:$0xff]
  %v105 = vld [vmem:[%s0 + $0x260] sm:$0xf]
  %v106 = vld [vmem:[%s0 + $0x264] sm:$0xff]
  %v107 = vld [vmem:[%s0 + $0x26c] sm:$0xff]
  %v108 = vld [vmem:[%s0 + $0x274] sm:$0xff]
  %v109 = vld [vmem:[%s0 + $0x27c] sm:$0xff]
  %v110 = vld [vmem:[%s0 + $0x284] sm:$0xf]
  %v111 = vld [vmem:[%s0 + $0x288] sm:$0xff]
  %v112 = vld [vmem:[%s0 + $0x290] sm:$0xff]
  %v113 = vld [vmem:[%s0 + $0x298] sm:$0xff]
  %v114 = vld [vmem:[%s0 + $0x2a0] sm:$0xff]
  %v115 = vld [vmem:[%s0 + $0x2a8] sm:$0xf]
  %v116 = vld [vmem:[%s0 + $0x2ac] sm:$0xff]
  %v117 = vld [vmem:[%s0 + $0x2b4] sm:$0xff]
  %v118 = vld [vmem:[%s0 + $0x2bc] sm:$0xff]
  %v119 = vld [vmem:[%s0 + $0x2c4] sm:$0xff]
  %v120 = vld [vmem:[%s0 + $0x2cc] sm:$0xf]
  %v121 = vld [vmem:[%s0 + $0x2d0] sm:$0xff]
  %v122 = vld [vmem:[%s0 + $0x2d8] sm:$0xff]
  %v123 = vld [vmem:[%s0 + $0x2e0] sm:$0xff]
  %v124 = vld [vmem:[%s0 + $0x2e8] sm:$0xff]
  %v125 = vld [vmem:[%s0 + $0x2f0] sm:$0xf]
  %v126 = vld [vmem:[%s0 + $0x2f4] sm:$0xff]
  %v127 = vld [vmem:[%s0 + $0x2fc] sm:$0xff]
  %v128 = vld [vmem:[%s0 + $0x304] sm:$0xff]
  %v129 = vld [vmem:[%s0 + $0x30c] sm:$0xff]
  %v130 = vld [vmem:[%s0 + $0x314] sm:$0xf]
  %v131 = vld [vmem:[%s0 + $0x318] sm:$0xff]
  %v132 = vld [vmem:[%s0 + $0x320] sm:$0xff]
  %v133 = vld [vmem:[%s0 + $0x328] sm:$0xff]
  %v134 = vld [vmem:[%s0 + $0x330] sm:$0xff]
  %v135 = vld [vmem:[%s0 + $0x338] sm:$0xf]
  %v136 = vld [vmem:[%s0 + $0x33c] sm:$0xff]
  %v137 = vld [vmem:[%s0 + $0x344] sm:$0xff]
  %v138 = vld [vmem:[%s0 + $0x34c] sm:$0xff]
  %v139 = vld [vmem:[%s0 + $0x354] sm:$0xff]
  %v140 = vld [vmem:[%s0 + $0x35c] sm:$0xf]
  %v141 = vld [vmem:[%s0 + $0x360] sm:$0xff]
  %v142 = vld [vmem:[%s0 + $0x368] sm:$0xff]
  %v143 = vld [vmem:[%s0 + $0x370] sm:$0xff]
  %v144 = vld [vmem:[%s0 + $0x378] sm:$0xff]
  %v145 = vld [vmem:[%s0 + $0x380] sm:$0xf]
  %v146 = vld [vmem:[%s0 + $0x384] sm:$0xff]
  %v147 = vld [vmem:[%s0 + $0x38c] sm:$0xff]
  %v148 = vld [vmem:[%s0 + $0x394] sm:$0xff]
  %v149 = vld [vmem:[%s0 + $0x39c] sm:$0xff]
  %v150 = vld [vmem:[%s0 + $0x3a4] sm:$0xf]
  %v151 = vld [vmem:[%s0 + $0x3a8] sm:$0xff]
  %v152 = vld [vmem:[%s0 + $0x3b0] sm:$0xff]
  %v153 = vld [vmem:[%s0 + $0x3b8] sm:$0xff]
  %v154 = vld [vmem:[%s0 + $0x3c0] sm:$0xff]
  %v155 = vld [vmem:[%s0 + $0x3c8] sm:$0xf]
  %v156 = vld [vmem:[%s0 + $0x3cc] sm:$0xff]
  %v157 = vld [vmem:[%s0 + $0x3d4] sm:$0xff]
  %v158 = vld [vmem:[%s0 + $0x3dc] sm:$0xff]
  %v159 = vld [vmem:[%s0 + $0x3e4] sm:$0xff]
  %v160 = vld [vmem:[%s0 + $0x3ec] sm:$0xf]
  %v161 = vld [vmem:[%s0 + $0x3f0] sm:$0xff]
  %v162 = vld [vmem:[%s0 + $0x3f8] sm:$0xff]
  %v163 = vld [vmem:[%s0 + $0x400] sm:$0xff]
  %v164 = vld [vmem:[%s0 + $0x408] sm:$0xff]
  %v165 = vld [vmem:[%s0 + $0x410] sm:$0xf]
  %v166 = vld [vmem:[%s0 + $0x414] sm:$0xff]
  %v167 = vld [vmem:[%s0 + $0x41c] sm:$0xff]
  %v168 = vld [vmem:[%s0 + $0x424] sm:$0xff]
  %v169 = vld [vmem:[%s0 + $0x42c] sm:$0xff]
  %v170 = vld [vmem:[%s0 + $0x434] sm:$0xf]
  %v171 = vld [vmem:[%s0 + $0x438] sm:$0xff]
  %v172 = vld [vmem:[%s0 + $0x440] sm:$0xff]
  %v173 = vld [vmem:[%s0 + $0x448] sm:$0xff]
  %v174 = vld [vmem:[%s0 + $0x450] sm:$0xff]
  %v175 = vld [vmem:[%s0 + $0x458] sm:$0xf]
  %v176 = vld [vmem:[%s0 + $0x45c] sm:$0xff]
  %v177 = vld [vmem:[%s0 + $0x464] sm:$0xff]
  %v178 = vld [vmem:[%s0 + $0x46c] sm:$0xff]
  %v179 = vld [vmem:[%s0 + $0x474] sm:$0xff]
  %v180 = vld [vmem:[%s0 + $0x47c] sm:$0xf]
  %v181 = vld [vmem:[%s0 + $0x480] sm:$0xff]
  %v182 = vld [vmem:[%s0 + $0x488] sm:$0xff]
  %v183 = vld [vmem:[%s0 + $0x490] sm:$0xff]
  %v184 = vld [vmem:[%s0 + $0x498] sm:$0xff]
  %v185 = vld [vmem:[%s0 + $0x4a0] sm:$0xf]
  %v186 = vld [vmem:[%s0 + $0x4a4] sm:$0xff]
  %v187 = vld [vmem:[%s0 + $0x4ac] sm:$0xff]
  %v188 = vld [vmem:[%s0 + $0x4b4] sm:$0xff]
  %v189 = vld [vmem:[%s0 + $0x4bc] sm:$0xff]
  %v190 = vld [vmem:[%s0 + $0x4c4] sm:$0xf]
  %v191 = vld [vmem:[%s0 + $0x4c8] sm:$0xff]
  %v192 = vld [vmem:[%s0 + $0x4d0] sm:$0xff]
  %v193 = vld [vmem:[%s0 + $0x4d8] sm:$0xff]
  %v194 = vld [vmem:[%s0 + $0x4e0] sm:$0xff]
  %v195 = vld [vmem:[%s0 + $0x4e8] sm:$0xf]
  %v196 = vld [vmem:[%s0 + $0x4ec] sm:$0xff]
  %v197 = vld [vmem:[%s0 + $0x4f4] sm:$0xff]
  %v198 = vld [vmem:[%s0 + $0x4fc] sm:$0xff]
  %v199 = vld [vmem:[%s0 + $0x504] sm:$0xff]
  %v200 = vld [vmem:[%s0 + $0x50c] sm:$0xf]
  %v201 = vld [vmem:[%s0 + $0x510] sm:$0xff]
  %v202 = vld [vmem:[%s0 + $0x518] sm:$0xff]
  %v203 = vld [vmem:[%s0 + $0x520] sm:$0xff]
  %v204 = vld [vmem:[%s0 + $0x528] sm:$0xff]
  %v205 = vld [vmem:[%s0 + $0x530] sm:$0xf]
  %v206 = vld [vmem:[%s0 + $0x534] sm:$0xff]
  %v207 = vld [vmem:[%s0 + $0x53c] sm:$0xff]
  %v208 = vld [vmem:[%s0 + $0x544] sm:$0xff]
  %v209 = vld [vmem:[%s0 + $0x54c] sm:$0xff]
  %v210 = vld [vmem:[%s0 + $0x554] sm:$0xf]
  %v211 = vld [vmem:[%s0 + $0x558] sm:$0xff]
  %v212 = vld [vmem:[%s0 + $0x560] sm:$0xff]
  %v213 = vld [vmem:[%s0 + $0x568] sm:$0xff]
  %v214 = vld [vmem:[%s0 + $0x570] sm:$0xff]
  %v215 = vld [vmem:[%s0 + $0x578] sm:$0xf]
  %v216 = vld [vmem:[%s0 + $0x57c] sm:$0xff]
  %v217 = vld [vmem:[%s0 + $0x584] sm:$0xff]
  %v218 = vld [vmem:[%s0 + $0x58c] sm:$0xff]
  %v219 = vld [vmem:[%s0 + $0x594] sm:$0xff]
  %v220 = vld [vmem:[%s0 + $0x59c] sm:$0xf]
  %v221 = vld [vmem:[%s0 + $0x5a0] sm:$0xff]
  %v222 = vld [vmem:[%s0 + $0x5a8] sm:$0xff]
  %v223 = vld [vmem:[%s0 + $0x5b0] sm:$0xff]
  %v224 = vld [vmem:[%s0 + $0x5b8] sm:$0xff]
  %v225 = vld [vmem:[%s0 + $0x5c0] sm:$0xf]
  %v226 = vld [vmem:[%s0 + $0x5c4] sm:$0xff]
  %v227 = vld [vmem:[%s0 + $0x5cc] sm:$0xff]
  %v228 = vld [vmem:[%s0 + $0x5d4] sm:$0xff]
  %v229 = vld [vmem:[%s0 + $0x5dc] sm:$0xff]
  %v230 = vld [vmem:[%s0 + $0x5e4] sm:$0xf]
  %v231 = vld [vmem:[%s0 + $0x5e8] sm:$0xff]
  %v232 = vld [vmem:[%s0 + $0x5f0] sm:$0xff]
  %v233 = vld [vmem:[%s0 + $0x5f8] sm:$0xff]
  %v234 = vld [vmem:[%s0 + $0x600] sm:$0xff]
  %v235 = vld [vmem:[%s0 + $0x608] sm:$0xf]
  %v236 = vld [vmem:[%s0 + $0x60c] sm:$0xff]
  %v237 = vld [vmem:[%s0 + $0x614] sm:$0xff]
  %v238 = vld [vmem:[%s0 + $0x61c] sm:$0xff]
  %v239 = vld [vmem:[%s0 + $0x624] sm:$0xff]
  %v240 = vld [vmem:[%s0 + $0x62c] sm:$0xf]
  %v241 = vld [vmem:[%s0 + $0x630] sm:$0xff]
  %v242 = vld [vmem:[%s0 + $0x638] sm:$0xff]
  %v243 = vld [vmem:[%s0 + $0x640] sm:$0xff]
  %v244 = vld [vmem:[%s0 + $0x648] sm:$0xff]
  %v245 = vld [vmem:[%s0 + $0x650] sm:$0xf]
  %v246 = vld [vmem:[%s0 + $0x654] sm:$0xff]
  %v247 = vld [vmem:[%s0 + $0x65c] sm:$0xff]
  %v248 = vld [vmem:[%s0 + $0x664] sm:$0xff]
  %v249 = vld [vmem:[%s0 + $0x66c] sm:$0xff]
  %v250 = vld [vmem:[%s0 + $0x674] sm:$0xf]
  %v251 = vld [vmem:[%s0 + $0x678] sm:$0xff]
  %v252 = vld [vmem:[%s0 + $0x680] sm:$0xff]
  %v253 = vld [vmem:[%s0 + $0x688] sm:$0xff]
  %v254 = vld [vmem:[%s0 + $0x690] sm:$0xff]
  %v255 = vld [vmem:[%s0 + $0x698] sm:$0xf]
  %v256 = vld [vmem:[%s0 + $0x69c] sm:$0xff]
  %v257 = vld [vmem:[%s0 + $0x6a4] sm:$0xff]
  %v258 = vld [vmem:[%s0 + $0x6ac] sm:$0xff]
  %v259 = vld [vmem:[%s0 + $0x6b4] sm:$0xff]
  %v260 = vld [vmem:[%s0 + $0x6bc] sm:$0xf]
  %v261 = vld [vmem:[%s0 + $0x6c0] sm:$0xff]
  %v262 = vld [vmem:[%s0 + $0x6c8] sm:$0xff]
  %v263 = vld [vmem:[%s0 + $0x6d0] sm:$0xff]
  %v264 = vld [vmem:[%s0 + $0x6d8] sm:$0xff]
  %v265 = vld [vmem:[%s0 + $0x6e0] sm:$0xf]
  %v266 = vld [vmem:[%s0 + $0x6e4] sm:$0xff]
  %v267 = vld [vmem:[%s0 + $0x6ec] sm:$0xff]
  %v268 = vld [vmem:[%s0 + $0x6f4] sm:$0xff]
  %v269 = vld [vmem:[%s0 + $0x6fc] sm:$0xff]
  %v270 = vld [vmem:[%s0 + $0x704] sm:$0xf]
  %v271 = vld [vmem:[%s0 + $0x708] sm:$0xff]
  %v272 = vld [vmem:[%s0 + $0x710] sm:$0xff]
  %v273 = vld [vmem:[%s0 + $0x718] sm:$0xff]
  %v274 = vld [vmem:[%s0 + $0x720] sm:$0xff]
  %v275 = vld [vmem:[%s0 + $0x728] sm:$0xf]
  %v276 = vld [vmem:[%s0 + $0x72c] sm:$0xff]
  %v277 = vld [vmem:[%s0 + $0x734] sm:$0xff]
  %v278 = vld [vmem:[%s0 + $0x73c] sm:$0xff]
  %v279 = vld [vmem:[%s0 + $0x744] sm:$0xff]
  %v280 = vld [vmem:[%s0 + $0x74c] sm:$0xf]
  %v281 = vld [vmem:[%s0 + $0x750] sm:$0xff]
  %v282 = vld [vmem:[%s0 + $0x758] sm:$0xff]
  %v283 = vld [vmem:[%s0 + $0x760] sm:$0xff]
  %v284 = vld [vmem:[%s0 + $0x768] sm:$0xff]
  %v285 = vld [vmem:[%s0 + $0x770] sm:$0xf]
  %v286 = vld [vmem:[%s0 + $0x774] sm:$0xff]
  %v287 = vld [vmem:[%s0 + $0x77c] sm:$0xff]
  %v288 = vld [vmem:[%s0 + $0x784] sm:$0xff]
  %v289 = vld [vmem:[%s0 + $0x78c] sm:$0xff]
  %v290 = vld [vmem:[%s0 + $0x794] sm:$0xf]
  %v291 = vld [vmem:[%s0 + $0x798] sm:$0xff]
  %v292 = vld [vmem:[%s0 + $0x7a0] sm:$0xff]
  %v293 = vld [vmem:[%s0 + $0x7a8] sm:$0xff]
  %v294 = vld [vmem:[%s0 + $0x7b0] sm:$0xff]
  %v295 = vld [vmem:[%s0 + $0x7b8] sm:$0xf]
  %v296 = vld [vmem:[%s0 + $0x7bc] sm:$0xff]
  %v297 = vld [vmem:[%s0 + $0x7c4] sm:$0xff]
  %v298 = vld [vmem:[%s0 + $0x7cc] sm:$0xff]
  %v299 = vld [vmem:[%s0 + $0x7d4] sm:$0xff]
  %v300 = vld [vmem:[%s0 + $0x7dc] sm:$0xf]
  %v301 = vld [vmem:[%s0 + $0x7e0] sm:$0xff]
  %v302 = vld [vmem:[%s0 + $0x7e8] sm:$0xff]
  %v303 = vld [vmem:[%s0 + $0x7f0] sm:$0xff]
  %v304 = vld [vmem:[%s0 + $0x7f8] sm:$0xff]
  %v305 = vld [vmem:[%s0 + $0x800] sm:$0xf]
  %v306 = vld [vmem:[%s0 + $0x804] sm:$0xff]
  %v307 = vld [vmem:[%s0 + $0x80c] sm:$0xff]
  %v308 = vld [vmem:[%s0 + $0x814] sm:$0xff]
  %v309 = vld [vmem:[%s0 + $0x81c] sm:$0xff]
  %v310 = vld [vmem:[%s0 + $0x824] sm:$0xf]
  %v311 = vld [vmem:[%s0 + $0x828] sm:$0xff]
  %v312 = vld [vmem:[%s0 + $0x830] sm:$0xff]
  %v313 = vld [vmem:[%s0 + $0x838] sm:$0xff]
  %v314 = vld [vmem:[%s0 + $0x840] sm:$0xff]
  %v315 = vld [vmem:[%s0 + $0x848] sm:$0xf]
  %v316 = vld [vmem:[%s0 + $0x84c] sm:$0xff]
  %v317 = vld [vmem:[%s0 + $0x854] sm:$0xff]
  %v318 = vld [vmem:[%s0 + $0x85c] sm:$0xff]
  %v319 = vld [vmem:[%s0 + $0x864] sm:$0xff]
  %v320 = vld [vmem:[%s0 + $0x86c] sm:$0xf]
  %v321 = vld [vmem:[%s0 + $0x870] sm:$0xff]
  %v322 = vld [vmem:[%s0 + $0x878] sm:$0xff]
  %v323 = vld [vmem:[%s0 + $0x880] sm:$0xff]
  %v324 = vld [vmem:[%s0 + $0x888] sm:$0xff]
  %v325 = vld [vmem:[%s0 + $0x890] sm:$0xf]
  %v326 = vld [vmem:[%s0 + $0x894] sm:$0xff]
  %v327 = vld [vmem:[%s0 + $0x89c] sm:$0xff]
  %v328 = vld [vmem:[%s0 + $0x8a4] sm:$0xff]
  %v329 = vld [vmem:[%s0 + $0x8ac] sm:$0xff]
  %v330 = vld [vmem:[%s0 + $0x8b4] sm:$0xf]
  %v331 = vld [vmem:[%s0 + $0x8b8] sm:$0xff]
  %v332 = vld [vmem:[%s0 + $0x8c0] sm:$0xff]
  %v333 = vld [vmem:[%s0 + $0x8c8] sm:$0xff]
  %v334 = vld [vmem:[%s0 + $0x8d0] sm:$0xff]
  %v335 = vld [vmem:[%s0 + $0x8d8] sm:$0xf]
  %v336 = vld [vmem:[%s0 + $0x8dc] sm:$0xff]
  %v337 = vld [vmem:[%s0 + $0x8e4] sm:$0xff]
  %v338 = vld [vmem:[%s0 + $0x8ec] sm:$0xff]
  %v339 = vld [vmem:[%s0 + $0x8f4] sm:$0xff]
  %v340 = vld [vmem:[%s0 + $0x8fc] sm:$0xf]
  %v341 = vld [vmem:[%s1] sm:$0xf]
  %v342 = vld [vmem:[%s1 + $0x4] sm:$0xf]
  %v343 = vld [vmem:[%s1 + $0x8] sm:$0xf]
  %v344 = vld [vmem:[%s1 + $0xc] sm:$0xf]
  %v345 = vld [vmem:[%s1 + $0x10] sm:$0xf]
  %v346 = vld [vmem:[%s1 + $0x14] sm:$0xf]
  %v347 = vld [vmem:[%s1 + $0x18] sm:$0xf]
  %v348 = vld [vmem:[%s1 + $0x1c] sm:$0xf]
  %v349 = vld [vmem:[%s1 + $0x20] sm:$0xf]
  %v350 = vld [vmem:[%s1 + $0x24] sm:$0xf]
  %v351 = vld [vmem:[%s1 + $0x28] sm:$0xf]
  %v352 = vld [vmem:[%s1 + $0x2c] sm:$0xf]
  %v353 = vld [vmem:[%s1 + $0x30] sm:$0xf]
  %v354 = vld [vmem:[%s1 + $0x34] sm:$0xf]
  %v355 = vld [vmem:[%s1 + $0x38] sm:$0xf]
  %v356 = vld [vmem:[%s1 + $0x3c] sm:$0xf]
  %v357 = vld [vmem:[%s1 + $0x40] sm:$0xf]
  %v358 = vld [vmem:[%s1 + $0x44] sm:$0xf]
  %v359 = vld [vmem:[%s1 + $0x48] sm:$0xf]
  %v360 = vld [vmem:[%s1 + $0x4c] sm:$0xf]
  %v361 = vld [vmem:[%s1 + $0x50] sm:$0xf]
  %v362 = vld [vmem:[%s1 + $0x54] sm:$0xf]
  %v363 = vld [vmem:[%s1 + $0x58] sm:$0xf]
  %v364 = vld [vmem:[%s1 + $0x5c] sm:$0xf]
  %v365 = vld [vmem:[%s1 + $0x60] sm:$0xf]
  %v366 = vld [vmem:[%s1 + $0x64] sm:$0xf]
  %v367 = vld [vmem:[%s1 + $0x68] sm:$0xf]
  %v368 = vld [vmem:[%s1 + $0x6c] sm:$0xf]
  %v369 = vld [vmem:[%s1 + $0x70] sm:$0xf]
  %v370 = vld [vmem:[%s1 + $0x74] sm:$0xf]
  %v371 = vld [vmem:[%s1 + $0x78] sm:$0xf]
  %v372 = vld [vmem:[%s1 + $0x7c] sm:$0xf]
  %v373 = vld [vmem:[%s1 + $0x80] sm:$0xf]
  %v374 = vld [vmem:[%s1 + $0x84] sm:$0xf]
  %v375 = vld [vmem:[%s1 + $0x88] sm:$0xf]
  %v376 = vld [vmem:[%s1 + $0x8c] sm:$0xf]
  %v377 = vld [vmem:[%s1 + $0x90] sm:$0xf]
  %v378 = vld [vmem:[%s1 + $0x94] sm:$0xf]
  %v379 = vld [vmem:[%s1 + $0x98] sm:$0xf]
  %v380 = vld [vmem:[%s1 + $0x9c] sm:$0xf]
  %v381 = vld [vmem:[%s1 + $0xa0] sm:$0xf]
  %v382 = vld [vmem:[%s1 + $0xa4] sm:$0xf]
  %v383 = vld [vmem:[%s1 + $0xa8] sm:$0xf]
  %v384 = vld [vmem:[%s1 + $0xac] sm:$0xf]
  %v385 = vld [vmem:[%s1 + $0xb0] sm:$0xf]
  %v386 = vld [vmem:[%s1 + $0xb4] sm:$0xf]
  %v387 = vld [vmem:[%s1 + $0xb8] sm:$0xf]
  %v388 = vld [vmem:[%s1 + $0xbc] sm:$0xf]
  %v389 = vld [vmem:[%s1 + $0xc0] sm:$0xf]
  %v390 = vld [vmem:[%s1 + $0xc4] sm:$0xf]
  %v391 = vld [vmem:[%s1 + $0xc8] sm:$0xf]
  %v392 = vld [vmem:[%s1 + $0xcc] sm:$0xf]
  %v393 = vld [vmem:[%s1 + $0xd0] sm:$0xf]
  %v394 = vld [vmem:[%s1 + $0xd4] sm:$0xf]
  %v395 = vld [vmem:[%s1 + $0xd8] sm:$0xf]
  %v396 = vld [vmem:[%s1 + $0xdc] sm:$0xf]
  %v397 = vld [vmem:[%s1 + $0xe0] sm:$0xf]
  %v398 = vld [vmem:[%s1 + $0xe4] sm:$0xf]
  %v399 = vld [vmem:[%s1 + $0xe8] sm:$0xf]
  %v400 = vld [vmem:[%s1 + $0xec] sm:$0xf]
  %v401 = vld [vmem:[%s1 + $0xf0] sm:$0xf]
  %v402 = vld [vmem:[%s1 + $0xf4] sm:$0xf]
  %v403 = vld [vmem:[%s1 + $0xf8] sm:$0xf]
  %v404 = vld [vmem:[%s1 + $0xfc] sm:$0xf]
  %v405 = vld [vmem:[%s1 + $0x100] sm:$0xf]
  %v406 = vld [vmem:[%s1 + $0x104] sm:$0xf]
  %v407 = vld [vmem:[%s1 + $0x108] sm:$0xf]
  %v408 = vld [vmem:[%s1 + $0x10c] sm:$0xf]
  %v409 = vld [vmem:[%s1 + $0x110] sm:$0xf]
  %v410 = vld [vmem:[%s1 + $0x114] sm:$0xf]
  %v411 = vld [vmem:[%s1 + $0x118] sm:$0xf]
  %v412 = vld [vmem:[%s1 + $0x11c] sm:$0xf]
  %v413 = vld [vmem:[%s1 + $0x120] sm:$0xf]
  %v414 = vld [vmem:[%s1 + $0x124] sm:$0xf]
  %v415 = vld [vmem:[%s1 + $0x128] sm:$0xf]
  %v416 = vld [vmem:[%s1 + $0x12c] sm:$0xf]
  %v417 = vld [vmem:[%s1 + $0x130] sm:$0xf]
  %v418 = vld [vmem:[%s1 + $0x134] sm:$0xf]
  %v419 = vld [vmem:[%s1 + $0x138] sm:$0xf]
  %v420 = vld [vmem:[%s1 + $0x13c] sm:$0xf]
  %v421 = vld [vmem:[%s1 + $0x140] sm:$0xf]
  %v422 = vld [vmem:[%s1 + $0x144] sm:$0xf]
  %v423 = vld [vmem:[%s1 + $0x148] sm:$0xf]
  %v424 = vld [vmem:[%s1 + $0x14c] sm:$0xf]
  %v425 = vld [vmem:[%s1 + $0x150] sm:$0xf]
  %v426 = vld [vmem:[%s1 + $0x154] sm:$0xf]
  %v427 = vld [vmem:[%s1 + $0x158] sm:$0xf]
  %v428 = vld [vmem:[%s1 + $0x15c] sm:$0xf]
  %v429 = vld [vmem:[%s1 + $0x160] sm:$0xf]
  %v430 = vld [vmem:[%s1 + $0x164] sm:$0xf]
  %v431 = vld [vmem:[%s1 + $0x168] sm:$0xf]
  %v432 = vld [vmem:[%s1 + $0x16c] sm:$0xf]
  %v433 = vld [vmem:[%s1 + $0x170] sm:$0xf]
  %v434 = vld [vmem:[%s1 + $0x174] sm:$0xf]
  %v435 = vld [vmem:[%s1 + $0x178] sm:$0xf]
  %v436 = vld [vmem:[%s1 + $0x17c] sm:$0xf]
  %v437 = vld [vmem:[%s1 + $0x180] sm:$0xf]
  %v438 = vld [vmem:[%s1 + $0x184] sm:$0xf]
  %v439 = vld [vmem:[%s1 + $0x188] sm:$0xf]
  %v440 = vld [vmem:[%s1 + $0x18c] sm:$0xf]
  %v441 = vld [vmem:[%s1 + $0x190] sm:$0xf]
  %v442 = vld [vmem:[%s1 + $0x194] sm:$0xf]
  %v443 = vld [vmem:[%s1 + $0x198] sm:$0xf]
  %v444 = vld [vmem:[%s1 + $0x19c] sm:$0xf]
  %v445 = vld [vmem:[%s1 + $0x1a0] sm:$0xf]
  %v446 = vld [vmem:[%s1 + $0x1a4] sm:$0xf]
  %v447 = vld [vmem:[%s1 + $0x1a8] sm:$0xf]
  %v448 = vld [vmem:[%s1 + $0x1ac] sm:$0xf]
  %v449 = vld [vmem:[%s1 + $0x1b0] sm:$0xf]
  %v450 = vld [vmem:[%s1 + $0x1b4] sm:$0xf]
  %v451 = vld [vmem:[%s1 + $0x1b8] sm:$0xf]
  %v452 = vld [vmem:[%s1 + $0x1bc] sm:$0xf]
  %v453 = vld [vmem:[%s1 + $0x1c0] sm:$0xf]
  %v454 = vld [vmem:[%s1 + $0x1c4] sm:$0xf]
  %v455 = vld [vmem:[%s1 + $0x1c8] sm:$0xf]
  %v456 = vld [vmem:[%s1 + $0x1cc] sm:$0xf]
  %v457 = vld [vmem:[%s1 + $0x1d0] sm:$0xf]
  %v458 = vld [vmem:[%s1 + $0x1d4] sm:$0xf]
  %v459 = vld [vmem:[%s1 + $0x1d8] sm:$0xf]
  %v460 = vld [vmem:[%s1 + $0x1dc] sm:$0xf]
  %v461 = vld [vmem:[%s1 + $0x1e0] sm:$0xf]
  %v462 = vld [vmem:[%s1 + $0x1e4] sm:$0xf]
  %v463 = vld [vmem:[%s1 + $0x1e8] sm:$0xf]
  %v464 = vld [vmem:[%s1 + $0x1ec] sm:$0xf]
  %v465 = vld [vmem:[%s1 + $0x1f0] sm:$0xf]
  %v466 = vld [vmem:[%s1 + $0x1f4] sm:$0xf]
  %v467 = vld [vmem:[%s1 + $0x1f8] sm:$0xf]
  %v468 = vld [vmem:[%s1 + $0x1fc] sm:$0xf]
  %v469 = vld [vmem:[%s1 + $0x200] sm:$0xf]
  %v470 = vld [vmem:[%s1 + $0x204] sm:$0xf]
  %v471 = vld [vmem:[%s1 + $0x208] sm:$0xf]
  %v472 = vld [vmem:[%s1 + $0x20c] sm:$0xf]
  %v473 = vld [vmem:[%s1 + $0x210] sm:$0xf]
  %v474 = vld [vmem:[%s1 + $0x214] sm:$0xf]
  %v475 = vld [vmem:[%s1 + $0x218] sm:$0xf]
  %v476 = vld [vmem:[%s1 + $0x21c] sm:$0xf]
  %v477 = vld [vmem:[%s1 + $0x220] sm:$0xf]
  %v478 = vld [vmem:[%s1 + $0x224] sm:$0xf]
  %v479 = vld [vmem:[%s1 + $0x228] sm:$0xf]
  %v480 = vld [vmem:[%s1 + $0x22c] sm:$0xf]
  %v481 = vld [vmem:[%s1 + $0x230] sm:$0xf]
  %v482 = vld [vmem:[%s1 + $0x234] sm:$0xf]
  %v483 = vld [vmem:[%s1 + $0x238] sm:$0xf]
  %v484 = vld [vmem:[%s1 + $0x23c] sm:$0xf]
  %v805 = vunpack.c.l.b16 %v21
  %v806 = vunpack.c.h.b16 %v21
  %v807 = vunpack.c.l.b16 %v22
  %v808 = vunpack.c.h.b16 %v22
  %v809 = vunpack.c.l.b16 %v23
  %v810 = vunpack.c.h.b16 %v23
  %v811 = vunpack.c.l.b16 %v24
  %v812 = vunpack.c.h.b16 %v24
  %v813 = vunpack.c.l.b16 %v25
  %v814 = vunpack.c.l.b16 %v26
  %v815 = vunpack.c.h.b16 %v26
  %v816 = vunpack.c.l.b16 %v27
  %v817 = vunpack.c.h.b16 %v27
  %v818 = vunpack.c.l.b16 %v28
  %v819 = vunpack.c.h.b16 %v28
  %v820 = vunpack.c.l.b16 %v29
  %v821 = vunpack.c.h.b16 %v29
  %v822 = vunpack.c.l.b16 %v30
  %v823 = vunpack.c.l.b16 %v31
  %v824 = vunpack.c.h.b16 %v31
  %v825 = vunpack.c.l.b16 %v32
  %v826 = vunpack.c.h.b16 %v32
  %v827 = vunpack.c.l.b16 %v33
  %v828 = vunpack.c.h.b16 %v33
  %v829 = vunpack.c.l.b16 %v34
  %v830 = vunpack.c.h.b16 %v34
  %v831 = vunpack.c.l.b16 %v35
  %v832 = vunpack.c.l.b16 %v36
  %v833 = vunpack.c.h.b16 %v36
  %v834 = vunpack.c.l.b16 %v37
  %v835 = vunpack.c.h.b16 %v37
  %v836 = vunpack.c.l.b16 %v38
  %v837 = vunpack.c.h.b16 %v38
  %v838 = vunpack.c.l.b16 %v39
  %v839 = vunpack.c.h.b16 %v39
  %v840 = vunpack.c.l.b16 %v40
  %v841 = vunpack.c.l.b16 %v41
  %v842 = vunpack.c.h.b16 %v41
  %v843 = vunpack.c.l.b16 %v42
  %v844 = vunpack.c.h.b16 %v42
  %v845 = vunpack.c.l.b16 %v43
  %v846 = vunpack.c.h.b16 %v43
  %v847 = vunpack.c.l.b16 %v44
  %v848 = vunpack.c.h.b16 %v44
  %v849 = vunpack.c.l.b16 %v45
  %v850 = vunpack.c.l.b16 %v46
  %v851 = vunpack.c.h.b16 %v46
  %v852 = vunpack.c.l.b16 %v47
  %v853 = vunpack.c.h.b16 %v47
  %v854 = vunpack.c.l.b16 %v48
  %v855 = vunpack.c.h.b16 %v48
  %v856 = vunpack.c.l.b16 %v49
  %v857 = vunpack.c.h.b16 %v49
  %v858 = vunpack.c.l.b16 %v50
  %v859 = vunpack.c.l.b16 %v51
  %v860 = vunpack.c.h.b16 %v51
  %v861 = vunpack.c.l.b16 %v52
  %v862 = vunpack.c.h.b16 %v52
  %v863 = vunpack.c.l.b16 %v53
  %v864 = vunpack.c.h.b16 %v53
  %v865 = vunpack.c.l.b16 %v54
  %v866 = vunpack.c.h.b16 %v54
  %v867 = vunpack.c.l.b16 %v55
  %v868 = vunpack.c.l.b16 %v56
  %v869 = vunpack.c.h.b16 %v56
  %v870 = vunpack.c.l.b16 %v57
  %v871 = vunpack.c.h.b16 %v57
  %v872 = vunpack.c.l.b16 %v58
  %v873 = vunpack.c.h.b16 %v58
  %v874 = vunpack.c.l.b16 %v59
  %v875 = vunpack.c.h.b16 %v59
  %v876 = vunpack.c.l.b16 %v60
  %v877 = vunpack.c.l.b16 %v61
  %v878 = vunpack.c.h.b16 %v61
  %v879 = vunpack.c.l.b16 %v62
  %v880 = vunpack.c.h.b16 %v62
  %v881 = vunpack.c.l.b16 %v63
  %v882 = vunpack.c.h.b16 %v63
  %v883 = vunpack.c.l.b16 %v64
  %v884 = vunpack.c.h.b16 %v64
  %v885 = vunpack.c.l.b16 %v65
  %v886 = vunpack.c.l.b16 %v66
  %v887 = vunpack.c.h.b16 %v66
  %v888 = vunpack.c.l.b16 %v67
  %v889 = vunpack.c.h.b16 %v67
  %v890 = vunpack.c.l.b16 %v68
  %v891 = vunpack.c.h.b16 %v68
  %v892 = vunpack.c.l.b16 %v69
  %v893 = vunpack.c.h.b16 %v69
  %v894 = vunpack.c.l.b16 %v70
  %v895 = vunpack.c.l.b16 %v71
  %v896 = vunpack.c.h.b16 %v71
  %v897 = vunpack.c.l.b16 %v72
  %v898 = vunpack.c.h.b16 %v72
  %v899 = vunpack.c.l.b16 %v73
  %v900 = vunpack.c.h.b16 %v73
  %v901 = vunpack.c.l.b16 %v74
  %v902 = vunpack.c.h.b16 %v74
  %v903 = vunpack.c.l.b16 %v75
  %v904 = vunpack.c.l.b16 %v76
  %v905 = vunpack.c.h.b16 %v76
  %v906 = vunpack.c.l.b16 %v77
  %v907 = vunpack.c.h.b16 %v77
  %v908 = vunpack.c.l.b16 %v78
  %v909 = vunpack.c.h.b16 %v78
  %v910 = vunpack.c.l.b16 %v79
  %v911 = vunpack.c.h.b16 %v79
  %v912 = vunpack.c.l.b16 %v80
  %v913 = vunpack.c.l.b16 %v81
  %v914 = vunpack.c.h.b16 %v81
  %v915 = vunpack.c.l.b16 %v82
  %v916 = vunpack.c.h.b16 %v82
  %v917 = vunpack.c.l.b16 %v83
  %v918 = vunpack.c.h.b16 %v83
  %v919 = vunpack.c.l.b16 %v84
  %v920 = vunpack.c.h.b16 %v84
  %v921 = vunpack.c.l.b16 %v85
  %v922 = vunpack.c.l.b16 %v86
  %v923 = vunpack.c.h.b16 %v86
  %v924 = vunpack.c.l.b16 %v87
  %v925 = vunpack.c.h.b16 %v87
  %v926 = vunpack.c.l.b16 %v88
  %v927 = vunpack.c.h.b16 %v88
  %v928 = vunpack.c.l.b16 %v89
  %v929 = vunpack.c.h.b16 %v89
  %v930 = vunpack.c.l.b16 %v90
  %v931 = vunpack.c.l.b16 %v91
  %v932 = vunpack.c.h.b16 %v91
  %v933 = vunpack.c.l.b16 %v92
  %v934 = vunpack.c.h.b16 %v92
  %v935 = vunpack.c.l.b16 %v93
  %v936 = vunpack.c.h.b16 %v93
  %v937 = vunpack.c.l.b16 %v94
  %v938 = vunpack.c.h.b16 %v94
  %v939 = vunpack.c.l.b16 %v95
  %v940 = vunpack.c.l.b16 %v96
  %v941 = vunpack.c.h.b16 %v96
  %v942 = vunpack.c.l.b16 %v97
  %v943 = vunpack.c.h.b16 %v97
  %v944 = vunpack.c.l.b16 %v98
  %v945 = vunpack.c.h.b16 %v98
  %v946 = vunpack.c.l.b16 %v99
  %v947 = vunpack.c.h.b16 %v99
  %v948 = vunpack.c.l.b16 %v100
  %v949 = vunpack.c.l.b16 %v101
  %v950 = vunpack.c.h.b16 %v101
  %v951 = vunpack.c.l.b16 %v102
  %v952 = vunpack.c.h.b16 %v102
  %v953 = vunpack.c.l.b16 %v103
  %v954 = vunpack.c.h.b16 %v103
  %v955 = vunpack.c.l.b16 %v104
  %v956 = vunpack.c.h.b16 %v104
  %v957 = vunpack.c.l.b16 %v105
  %v958 = vunpack.c.l.b16 %v106
  %v959 = vunpack.c.h.b16 %v106
  %v960 = vunpack.c.l.b16 %v107
  %v961 = vunpack.c.h.b16 %v107
  %v962 = vunpack.c.l.b16 %v108
  %v963 = vunpack.c.h.b16 %v108
  %v964 = vunpack.c.l.b16 %v109
  %v965 = vunpack.c.h.b16 %v109
  %v966 = vunpack.c.l.b16 %v110
  %v967 = vunpack.c.l.b16 %v111
  %v968 = vunpack.c.h.b16 %v111
  %v969 = vunpack.c.l.b16 %v112
  %v970 = vunpack.c.h.b16 %v112
  %v971 = vunpack.c.l.b16 %v113
  %v972 = vunpack.c.h.b16 %v113
  %v973 = vunpack.c.l.b16 %v114
  %v974 = vunpack.c.h.b16 %v114
  %v975 = vunpack.c.l.b16 %v115
  %v976 = vunpack.c.l.b16 %v116
  %v977 = vunpack.c.h.b16 %v116
  %v978 = vunpack.c.l.b16 %v117
  %v979 = vunpack.c.h.b16 %v117
  %v980 = vunpack.c.l.b16 %v118
  %v981 = vunpack.c.h.b16 %v118
  %v982 = vunpack.c.l.b16 %v119
  %v983 = vunpack.c.h.b16 %v119
  %v984 = vunpack.c.l.b16 %v120
  %v985 = vunpack.c.l.b16 %v121
  %v986 = vunpack.c.h.b16 %v121
  %v987 = vunpack.c.l.b16 %v122
  %v988 = vunpack.c.h.b16 %v122
  %v989 = vunpack.c.l.b16 %v123
  %v990 = vunpack.c.h.b16 %v123
  %v991 = vunpack.c.l.b16 %v124
  %v992 = vunpack.c.h.b16 %v124
  %v993 = vunpack.c.l.b16 %v125
  %v994 = vunpack.c.l.b16 %v126
  %v995 = vunpack.c.h.b16 %v126
  %v996 = vunpack.c.l.b16 %v127
  %v997 = vunpack.c.h.b16 %v127
  %v998 = vunpack.c.l.b16 %v128
  %v999 = vunpack.c.h.b16 %v128
  %v1000 = vunpack.c.l.b16 %v129
  %v1001 = vunpack.c.h.b16 %v129
  %v1002 = vunpack.c.l.b16 %v130
  %v1003 = vunpack.c.l.b16 %v131
  %v1004 = vunpack.c.h.b16 %v131
  %v1005 = vunpack.c.l.b16 %v132
  %v1006 = vunpack.c.h.b16 %v132
  %v1007 = vunpack.c.l.b16 %v133
  %v1008 = vunpack.c.h.b16 %v133
  %v1009 = vunpack.c.l.b16 %v134
  %v1010 = vunpack.c.h.b16 %v134
  %v1011 = vunpack.c.l.b16 %v135
  %v1012 = vunpack.c.l.b16 %v136
  %v1013 = vunpack.c.h.b16 %v136
  %v1014 = vunpack.c.l.b16 %v137
  %v1015 = vunpack.c.h.b16 %v137
  %v1016 = vunpack.c.l.b16 %v138
  %v1017 = vunpack.c.h.b16 %v138
  %v1018 = vunpack.c.l.b16 %v139
  %v1019 = vunpack.c.h.b16 %v139
  %v1020 = vunpack.c.l.b16 %v140
  %v1021 = vunpack.c.l.b16 %v141
  %v1022 = vunpack.c.h.b16 %v141
  %v1023 = vunpack.c.l.b16 %v142
  %v1024 = vunpack.c.h.b16 %v142
  %v1025 = vunpack.c.l.b16 %v143
  %v1026 = vunpack.c.h.b16 %v143
  %v1027 = vunpack.c.l.b16 %v144
  %v1028 = vunpack.c.h.b16 %v144
  %v1029 = vunpack.c.l.b16 %v145
  %v1030 = vunpack.c.l.b16 %v146
  %v1031 = vunpack.c.h.b16 %v146
  %v1032 = vunpack.c.l.b16 %v147
  %v1033 = vunpack.c.h.b16 %v147
  %v1034 = vunpack.c.l.b16 %v148
  %v1035 = vunpack.c.h.b16 %v148
  %v1036 = vunpack.c.l.b16 %v149
  %v1037 = vunpack.c.h.b16 %v149
  %v1038 = vunpack.c.l.b16 %v150
  %v1039 = vunpack.c.l.b16 %v151
  %v1040 = vunpack.c.h.b16 %v151
  %v1041 = vunpack.c.l.b16 %v152
  %v1042 = vunpack.c.h.b16 %v152
  %v1043 = vunpack.c.l.b16 %v153
  %v1044 = vunpack.c.h.b16 %v153
  %v1045 = vunpack.c.l.b16 %v154
  %v1046 = vunpack.c.h.b16 %v154
  %v1047 = vunpack.c.l.b16 %v155
  %v1048 = vunpack.c.l.b16 %v156
  %v1049 = vunpack.c.h.b16 %v156
  %v1050 = vunpack.c.l.b16 %v157
  %v1051 = vunpack.c.h.b16 %v157
  %v1052 = vunpack.c.l.b16 %v158
  %v1053 = vunpack.c.h.b16 %v158
  %v1054 = vunpack.c.l.b16 %v159
  %v1055 = vunpack.c.h.b16 %v159
  %v1056 = vunpack.c.l.b16 %v160
  %v1057 = vunpack.c.l.b16 %v161
  %v1058 = vunpack.c.h.b16 %v161
  %v1059 = vunpack.c.l.b16 %v162
  %v1060 = vunpack.c.h.b16 %v162
  %v1061 = vunpack.c.l.b16 %v163
  %v1062 = vunpack.c.h.b16 %v163
  %v1063 = vunpack.c.l.b16 %v164
  %v1064 = vunpack.c.h.b16 %v164
  %v1065 = vunpack.c.l.b16 %v165
  %v1066 = vunpack.c.l.b16 %v166
  %v1067 = vunpack.c.h.b16 %v166
  %v1068 = vunpack.c.l.b16 %v167
  %v1069 = vunpack.c.h.b16 %v167
  %v1070 = vunpack.c.l.b16 %v168
  %v1071 = vunpack.c.h.b16 %v168
  %v1072 = vunpack.c.l.b16 %v169
  %v1073 = vunpack.c.h.b16 %v169
  %v1074 = vunpack.c.l.b16 %v170
  %v1075 = vunpack.c.l.b16 %v171
  %v1076 = vunpack.c.h.b16 %v171
  %v1077 = vunpack.c.l.b16 %v172
  %v1078 = vunpack.c.h.b16 %v172
  %v1079 = vunpack.c.l.b16 %v173
  %v1080 = vunpack.c.h.b16 %v173
  %v1081 = vunpack.c.l.b16 %v174
  %v1082 = vunpack.c.h.b16 %v174
  %v1083 = vunpack.c.l.b16 %v175
  %v1084 = vunpack.c.l.b16 %v176
  %v1085 = vunpack.c.h.b16 %v176
  %v1086 = vunpack.c.l.b16 %v177
  %v1087 = vunpack.c.h.b16 %v177
  %v1088 = vunpack.c.l.b16 %v178
  %v1089 = vunpack.c.h.b16 %v178
  %v1090 = vunpack.c.l.b16 %v179
  %v1091 = vunpack.c.h.b16 %v179
  %v1092 = vunpack.c.l.b16 %v180
  %v1093 = vunpack.c.l.b16 %v181
  %v1094 = vunpack.c.h.b16 %v181
  %v1095 = vunpack.c.l.b16 %v182
  %v1096 = vunpack.c.h.b16 %v182
  %v1097 = vunpack.c.l.b16 %v183
  %v1098 = vunpack.c.h.b16 %v183
  %v1099 = vunpack.c.l.b16 %v184
  %v1100 = vunpack.c.h.b16 %v184
  %v1101 = vunpack.c.l.b16 %v185
  %v1102 = vunpack.c.l.b16 %v186
  %v1103 = vunpack.c.h.b16 %v186
  %v1104 = vunpack.c.l.b16 %v187
  %v1105 = vunpack.c.h.b16 %v187
  %v1106 = vunpack.c.l.b16 %v188
  %v1107 = vunpack.c.h.b16 %v188
  %v1108 = vunpack.c.l.b16 %v189
  %v1109 = vunpack.c.h.b16 %v189
  %v1110 = vunpack.c.l.b16 %v190
  %v1111 = vunpack.c.l.b16 %v191
  %v1112 = vunpack.c.h.b16 %v191
  %v1113 = vunpack.c.l.b16 %v192
  %v1114 = vunpack.c.h.b16 %v192
  %v1115 = vunpack.c.l.b16 %v193
  %v1116 = vunpack.c.h.b16 %v193
  %v1117 = vunpack.c.l.b16 %v194
  %v1118 = vunpack.c.h.b16 %v194
  %v1119 = vunpack.c.l.b16 %v195
  %v1120 = vunpack.c.l.b16 %v196
  %v1121 = vunpack.c.h.b16 %v196
  %v1122 = vunpack.c.l.b16 %v197
  %v1123 = vunpack.c.h.b16 %v197
  %v1124 = vunpack.c.l.b16 %v198
  %v1125 = vunpack.c.h.b16 %v198
  %v1126 = vunpack.c.l.b16 %v199
  %v1127 = vunpack.c.h.b16 %v199
  %v1128 = vunpack.c.l.b16 %v200
  %v1129 = vunpack.c.l.b16 %v201
  %v1130 = vunpack.c.h.b16 %v201
  %v1131 = vunpack.c.l.b16 %v202
  %v1132 = vunpack.c.h.b16 %v202
  %v1133 = vunpack.c.l.b16 %v203
  %v1134 = vunpack.c.h.b16 %v203
  %v1135 = vunpack.c.l.b16 %v204
  %v1136 = vunpack.c.h.b16 %v204
  %v1137 = vunpack.c.l.b16 %v205
  %v1138 = vunpack.c.l.b16 %v206
  %v1139 = vunpack.c.h.b16 %v206
  %v1140 = vunpack.c.l.b16 %v207
  %v1141 = vunpack.c.h.b16 %v207
  %v1142 = vunpack.c.l.b16 %v208
  %v1143 = vunpack.c.h.b16 %v208
  %v1144 = vunpack.c.l.b16 %v209
  %v1145 = vunpack.c.h.b16 %v209
  %v1146 = vunpack.c.l.b16 %v210
  %v1147 = vunpack.c.l.b16 %v211
  %v1148 = vunpack.c.h.b16 %v211
  %v1149 = vunpack.c.l.b16 %v212
  %v1150 = vunpack.c.h.b16 %v212
  %v1151 = vunpack.c.l.b16 %v213
  %v1152 = vunpack.c.h.b16 %v213
  %v1153 = vunpack.c.l.b16 %v214
  %v1154 = vunpack.c.h.b16 %v214
  %v1155 = vunpack.c.l.b16 %v215
  %v1156 = vunpack.c.l.b16 %v216
  %v1157 = vunpack.c.h.b16 %v216
  %v1158 = vunpack.c.l.b16 %v217
  %v1159 = vunpack.c.h.b16 %v217
  %v1160 = vunpack.c.l.b16 %v218
  %v1161 = vunpack.c.h.b16 %v218
  %v1162 = vunpack.c.l.b16 %v219
  %v1163 = vunpack.c.h.b16 %v219
  %v1164 = vunpack.c.l.b16 %v220
  %v1165 = vunpack.c.l.b16 %v221
  %v1166 = vunpack.c.h.b16 %v221
  %v1167 = vunpack.c.l.b16 %v222
  %v1168 = vunpack.c.h.b16 %v222
  %v1169 = vunpack.c.l.b16 %v223
  %v1170 = vunpack.c.h.b16 %v223
  %v1171 = vunpack.c.l.b16 %v224
  %v1172 = vunpack.c.h.b16 %v224
  %v1173 = vunpack.c.l.b16 %v225
  %v1174 = vunpack.c.l.b16 %v226
  %v1175 = vunpack.c.h.b16 %v226
  %v1176 = vunpack.c.l.b16 %v227
  %v1177 = vunpack.c.h.b16 %v227
  %v1178 = vunpack.c.l.b16 %v228
  %v1179 = vunpack.c.h.b16 %v228
  %v1180 = vunpack.c.l.b16 %v229
  %v1181 = vunpack.c.h.b16 %v229
  %v1182 = vunpack.c.l.b16 %v230
  %v1183 = vunpack.c.l.b16 %v231
  %v1184 = vunpack.c.h.b16 %v231
  %v1185 = vunpack.c.l.b16 %v232
  %v1186 = vunpack.c.h.b16 %v232
  %v1187 = vunpack.c.l.b16 %v233
  %v1188 = vunpack.c.h.b16 %v233
  %v1189 = vunpack.c.l.b16 %v234
  %v1190 = vunpack.c.h.b16 %v234
  %v1191 = vunpack.c.l.b16 %v235
  %v1192 = vunpack.c.l.b16 %v236
  %v1193 = vunpack.c.h.b16 %v236
  %v1194 = vunpack.c.l.b16 %v237
  %v1195 = vunpack.c.h.b16 %v237
  %v1196 = vunpack.c.l.b16 %v238
  %v1197 = vunpack.c.h.b16 %v238
  %v1198 = vunpack.c.l.b16 %v239
  %v1199 = vunpack.c.h.b16 %v239
  %v1200 = vunpack.c.l.b16 %v240
  %v1201 = vunpack.c.l.b16 %v241
  %v1202 = vunpack.c.h.b16 %v241
  %v1203 = vunpack.c.l.b16 %v242
  %v1204 = vunpack.c.h.b16 %v242
  %v1205 = vunpack.c.l.b16 %v243
  %v1206 = vunpack.c.h.b16 %v243
  %v1207 = vunpack.c.l.b16 %v244
  %v1208 = vunpack.c.h.b16 %v244
  %v1209 = vunpack.c.l.b16 %v245
  %v1210 = vunpack.c.l.b16 %v246
  %v1211 = vunpack.c.h.b16 %v246
  %v1212 = vunpack.c.l.b16 %v247
  %v1213 = vunpack.c.h.b16 %v247
  %v1214 = vunpack.c.l.b16 %v248
  %v1215 = vunpack.c.h.b16 %v248
  %v1216 = vunpack.c.l.b16 %v249
  %v1217 = vunpack.c.h.b16 %v249
  %v1218 = vunpack.c.l.b16 %v250
  %v1219 = vunpack.c.l.b16 %v251
  %v1220 = vunpack.c.h.b16 %v251
  %v1221 = vunpack.c.l.b16 %v252
  %v1222 = vunpack.c.h.b16 %v252
  %v1223 = vunpack.c.l.b16 %v253
  %v1224 = vunpack.c.h.b16 %v253
  %v1225 = vunpack.c.l.b16 %v254
  %v1226 = vunpack.c.h.b16 %v254
  %v1227 = vunpack.c.l.b16 %v255
  %v1228 = vunpack.c.l.b16 %v256
  %v1229 = vunpack.c.h.b16 %v256
  %v1230 = vunpack.c.l.b16 %v257
  %v1231 = vunpack.c.h.b16 %v257
  %v1232 = vunpack.c.l.b16 %v258
  %v1233 = vunpack.c.h.b16 %v258
  %v1234 = vunpack.c.l.b16 %v259
  %v1235 = vunpack.c.h.b16 %v259
  %v1236 = vunpack.c.l.b16 %v260
  %v1237 = vunpack.c.l.b16 %v261
  %v1238 = vunpack.c.h.b16 %v261
  %v1239 = vunpack.c.l.b16 %v262
  %v1240 = vunpack.c.h.b16 %v262
  %v1241 = vunpack.c.l.b16 %v263
  %v1242 = vunpack.c.h.b16 %v263
  %v1243 = vunpack.c.l.b16 %v264
  %v1244 = vunpack.c.h.b16 %v264
  %v1245 = vunpack.c.l.b16 %v265
  %v1246 = vunpack.c.l.b16 %v266
  %v1247 = vunpack.c.h.b16 %v266
  %v1248 = vunpack.c.l.b16 %v267
  %v1249 = vunpack.c.h.b16 %v267
  %v1250 = vunpack.c.l.b16 %v268
  %v1251 = vunpack.c.h.b16 %v268
  %v1252 = vunpack.c.l.b16 %v269
  %v1253 = vunpack.c.h.b16 %v269
  %v1254 = vunpack.c.l.b16 %v270
  %v1255 = vunpack.c.l.b16 %v271
  %v1256 = vunpack.c.h.b16 %v271
  %v1257 = vunpack.c.l.b16 %v272
  %v1258 = vunpack.c.h.b16 %v272
  %v1259 = vunpack.c.l.b16 %v273
  %v1260 = vunpack.c.h.b16 %v273
  %v1261 = vunpack.c.l.b16 %v274
  %v1262 = vunpack.c.h.b16 %v274
  %v1263 = vunpack.c.l.b16 %v275
  %v1264 = vunpack.c.l.b16 %v276
  %v1265 = vunpack.c.h.b16 %v276
  %v1266 = vunpack.c.l.b16 %v277
  %v1267 = vunpack.c.h.b16 %v277
  %v1268 = vunpack.c.l.b16 %v278
  %v1269 = vunpack.c.h.b16 %v278
  %v1270 = vunpack.c.l.b16 %v279
  %v1271 = vunpack.c.h.b16 %v279
  %v1272 = vunpack.c.l.b16 %v280
  %v1273 = vunpack.c.l.b16 %v281
  %v1274 = vunpack.c.h.b16 %v281
  %v1275 = vunpack.c.l.b16 %v282
  %v1276 = vunpack.c.h.b16 %v282
  %v1277 = vunpack.c.l.b16 %v283
  %v1278 = vunpack.c.h.b16 %v283
  %v1279 = vunpack.c.l.b16 %v284
  %v1280 = vunpack.c.h.b16 %v284
  %v1281 = vunpack.c.l.b16 %v285
  %v1282 = vunpack.c.l.b16 %v286
  %v1283 = vunpack.c.h.b16 %v286
  %v1284 = vunpack.c.l.b16 %v287
  %v1285 = vunpack.c.h.b16 %v287
  %v1286 = vunpack.c.l.b16 %v288
  %v1287 = vunpack.c.h.b16 %v288
  %v1288 = vunpack.c.l.b16 %v289
  %v1289 = vunpack.c.h.b16 %v289
  %v1290 = vunpack.c.l.b16 %v290
  %v1291 = vunpack.c.l.b16 %v291
  %v1292 = vunpack.c.h.b16 %v291
  %v1293 = vunpack.c.l.b16 %v292
  %v1294 = vunpack.c.h.b16 %v292
  %v1295 = vunpack.c.l.b16 %v293
  %v1296 = vunpack.c.h.b16 %v293
  %v1297 = vunpack.c.l.b16 %v294
  %v1298 = vunpack.c.h.b16 %v294
  %v1299 = vunpack.c.l.b16 %v295
  %v1300 = vunpack.c.l.b16 %v296
  %v1301 = vunpack.c.h.b16 %v296
  %v1302 = vunpack.c.l.b16 %v297
  %v1303 = vunpack.c.h.b16 %v297
  %v1304 = vunpack.c.l.b16 %v298
  %v1305 = vunpack.c.h.b16 %v298
  %v1306 = vunpack.c.l.b16 %v299
  %v1307 = vunpack.c.h.b16 %v299
  %v1308 = vunpack.c.l.b16 %v300
  %v1309 = vunpack.c.l.b16 %v301
  %v1310 = vunpack.c.h.b16 %v301
  %v1311 = vunpack.c.l.b16 %v302
  %v1312 = vunpack.c.h.b16 %v302
  %v1313 = vunpack.c.l.b16 %v303
  %v1314 = vunpack.c.h.b16 %v303
  %v1315 = vunpack.c.l.b16 %v304
  %v1316 = vunpack.c.h.b16 %v304
  %v1317 = vunpack.c.l.b16 %v305
  %v1318 = vunpack.c.l.b16 %v306
  %v1319 = vunpack.c.h.b16 %v306
  %v1320 = vunpack.c.l.b16 %v307
  %v1321 = vunpack.c.h.b16 %v307
  %v1322 = vunpack.c.l.b16 %v308
  %v1323 = vunpack.c.h.b16 %v308
  %v1324 = vunpack.c.l.b16 %v309
  %v1325 = vunpack.c.h.b16 %v309
  %v1326 = vunpack.c.l.b16 %v310
  %v1327 = vunpack.c.l.b16 %v311
  %v1328 = vunpack.c.h.b16 %v311
  %v1329 = vunpack.c.l.b16 %v312
  %v1330 = vunpack.c.h.b16 %v312
  %v1331 = vunpack.c.l.b16 %v313
  %v1332 = vunpack.c.h.b16 %v313
  %v1333 = vunpack.c.l.b16 %v314
  %v1334 = vunpack.c.h.b16 %v314
  %v1335 = vunpack.c.l.b16 %v315
  %v1336 = vunpack.c.l.b16 %v316
  %v1337 = vunpack.c.h.b16 %v316
  %v1338 = vunpack.c.l.b16 %v317
  %v1339 = vunpack.c.h.b16 %v317
  %v1340 = vunpack.c.l.b16 %v318
  %v1341 = vunpack.c.h.b16 %v318
  %v1342 = vunpack.c.l.b16 %v319
  %v1343 = vunpack.c.h.b16 %v319
  %v1344 = vunpack.c.l.b16 %v320
  %v1345 = vunpack.c.l.b16 %v321
  %v1346 = vunpack.c.h.b16 %v321
  %v1347 = vunpack.c.l.b16 %v322
  %v1348 = vunpack.c.h.b16 %v322
  %v1349 = vunpack.c.l.b16 %v323
  %v1350 = vunpack.c.h.b16 %v323
  %v1351 = vunpack.c.l.b16 %v324
  %v1352 = vunpack.c.h.b16 %v324
  %v1353 = vunpack.c.l.b16 %v325
  %v1354 = vunpack.c.l.b16 %v326
  %v1355 = vunpack.c.h.b16 %v326
  %v1356 = vunpack.c.l.b16 %v327
  %v1357 = vunpack.c.h.b16 %v327
  %v1358 = vunpack.c.l.b16 %v328
  %v1359 = vunpack.c.h.b16 %v328
  %v1360 = vunpack.c.l.b16 %v329
  %v1361 = vunpack.c.h.b16 %v329
  %v1362 = vunpack.c.l.b16 %v330
  %v1363 = vunpack.c.l.b16 %v331
  %v1364 = vunpack.c.h.b16 %v331
  %v1365 = vunpack.c.l.b16 %v332
  %v1366 = vunpack.c.h.b16 %v332
  %v1367 = vunpack.c.l.b16 %v333
  %v1368 = vunpack.c.h.b16 %v333
  %v1369 = vunpack.c.l.b16 %v334
  %v1370 = vunpack.c.h.b16 %v334
  %v1371 = vunpack.c.l.b16 %v335
  %v1372 = vunpack.c.l.b16 %v336
  %v1373 = vunpack.c.h.b16 %v336
  %v1374 = vunpack.c.l.b16 %v337
  %v1375 = vunpack.c.h.b16 %v337
  %v1376 = vunpack.c.l.b16 %v338
  %v1377 = vunpack.c.h.b16 %v338
  %v1378 = vunpack.c.l.b16 %v339
  %v1379 = vunpack.c.h.b16 %v339
  %v1380 = vunpack.c.l.b16 %v340
  %v1381 = vpack.c.b16 %v814, %v805
  %v1382 = vpack.c.b16 %v815, %v806
  %v1383 = vpack.c.b16 %v816, %v807
  %v1384 = vpack.c.b16 %v817, %v808
  %v1385 = vpack.c.b16 %v818, %v809
  %v1386 = vpack.c.b16 %v819, %v810
  %v1387 = vpack.c.b16 %v820, %v811
  %v1388 = vpack.c.b16 %v821, %v812
  %v1389 = vpack.c.b16 %v822, %v813
  %v1390 = vpack.c.b16 %v832, %v823
  %v1391 = vpack.c.b16 %v833, %v824
  %v1392 = vpack.c.b16 %v834, %v825
  %v1393 = vpack.c.b16 %v835, %v826
  %v1394 = vpack.c.b16 %v836, %v827
  %v1395 = vpack.c.b16 %v837, %v828
  %v1396 = vpack.c.b16 %v838, %v829
  %v1397 = vpack.c.b16 %v839, %v830
  %v1398 = vpack.c.b16 %v840, %v831
  %v1399 = vpack.c.b16 %v850, %v841
  %v1400 = vpack.c.b16 %v851, %v842
  %v1401 = vpack.c.b16 %v852, %v843
  %v1402 = vpack.c.b16 %v853, %v844
  %v1403 = vpack.c.b16 %v854, %v845
  %v1404 = vpack.c.b16 %v855, %v846
  %v1405 = vpack.c.b16 %v856, %v847
  %v1406 = vpack.c.b16 %v857, %v848
  %v1407 = vpack.c.b16 %v858, %v849
  %v1408 = vpack.c.b16 %v868, %v859
  %v1409 = vpack.c.b16 %v869, %v860
  %v1410 = vpack.c.b16 %v870, %v861
  %v1411 = vpack.c.b16 %v871, %v862
  %v1412 = vpack.c.b16 %v872, %v863
  %v1413 = vpack.c.b16 %v873, %v864
  %v1414 = vpack.c.b16 %v874, %v865
  %v1415 = vpack.c.b16 %v875, %v866
  %v1416 = vpack.c.b16 %v876, %v867
  %v1417 = vpack.c.b16 %v886, %v877
  %v1418 = vpack.c.b16 %v887, %v878
  %v1419 = vpack.c.b16 %v888, %v879
  %v1420 = vpack.c.b16 %v889, %v880
  %v1421 = vpack.c.b16 %v890, %v881
  %v1422 = vpack.c.b16 %v891, %v882
  %v1423 = vpack.c.b16 %v892, %v883
  %v1424 = vpack.c.b16 %v893, %v884
  %v1425 = vpack.c.b16 %v894, %v885
  %v1426 = vpack.c.b16 %v904, %v895
  %v1427 = vpack.c.b16 %v905, %v896
  %v1428 = vpack.c.b16 %v906, %v897
  %v1429 = vpack.c.b16 %v907, %v898
  %v1430 = vpack.c.b16 %v908, %v899
  %v1431 = vpack.c.b16 %v909, %v900
  %v1432 = vpack.c.b16 %v910, %v901
  %v1433 = vpack.c.b16 %v911, %v902
  %v1434 = vpack.c.b16 %v912, %v903
  %v1435 = vpack.c.b16 %v922, %v913
  %v1436 = vpack.c.b16 %v923, %v914
  %v1437 = vpack.c.b16 %v924, %v915
  %v1438 = vpack.c.b16 %v925, %v916
  %v1439 = vpack.c.b16 %v926, %v917
  %v1440 = vpack.c.b16 %v927, %v918
  %v1441 = vpack.c.b16 %v928, %v919
  %v1442 = vpack.c.b16 %v929, %v920
  %v1443 = vpack.c.b16 %v930, %v921
  %v1444 = vpack.c.b16 %v940, %v931
  %v1445 = vpack.c.b16 %v941, %v932
  %v1446 = vpack.c.b16 %v942, %v933
  %v1447 = vpack.c.b16 %v943, %v934
  %v1448 = vpack.c.b16 %v944, %v935
  %v1449 = vpack.c.b16 %v945, %v936
  %v1450 = vpack.c.b16 %v946, %v937
  %v1451 = vpack.c.b16 %v947, %v938
  %v1452 = vpack.c.b16 %v948, %v939
  %v1453 = vpack.c.b16 %v958, %v949
  %v1454 = vpack.c.b16 %v959, %v950
  %v1455 = vpack.c.b16 %v960, %v951
  %v1456 = vpack.c.b16 %v961, %v952
  %v1457 = vpack.c.b16 %v962, %v953
  %v1458 = vpack.c.b16 %v963, %v954
  %v1459 = vpack.c.b16 %v964, %v955
  %v1460 = vpack.c.b16 %v965, %v956
  %v1461 = vpack.c.b16 %v966, %v957
  %v1462 = vpack.c.b16 %v976, %v967
  %v1463 = vpack.c.b16 %v977, %v968
  %v1464 = vpack.c.b16 %v978, %v969
  %v1465 = vpack.c.b16 %v979, %v970
  %v1466 = vpack.c.b16 %v980, %v971
  %v1467 = vpack.c.b16 %v981, %v972
  %v1468 = vpack.c.b16 %v982, %v973
  %v1469 = vpack.c.b16 %v983, %v974
  %v1470 = vpack.c.b16 %v984, %v975
  %v1471 = vpack.c.b16 %v994, %v985
  %v1472 = vpack.c.b16 %v995, %v986
  %v1473 = vpack.c.b16 %v996, %v987
  %v1474 = vpack.c.b16 %v997, %v988
  %v1475 = vpack.c.b16 %v998, %v989
  %v1476 = vpack.c.b16 %v999, %v990
  %v1477 = vpack.c.b16 %v1000, %v991
  %v1478 = vpack.c.b16 %v1001, %v992
  %v1479 = vpack.c.b16 %v1002, %v993
  %v1480 = vpack.c.b16 %v1012, %v1003
  %v1481 = vpack.c.b16 %v1013, %v1004
  %v1482 = vpack.c.b16 %v1014, %v1005
  %v1483 = vpack.c.b16 %v1015, %v1006
  %v1484 = vpack.c.b16 %v1016, %v1007
  %v1485 = vpack.c.b16 %v1017, %v1008
  %v1486 = vpack.c.b16 %v1018, %v1009
  %v1487 = vpack.c.b16 %v1019, %v1010
  %v1488 = vpack.c.b16 %v1020, %v1011
  %v1489 = vpack.c.b16 %v1030, %v1021
  %v1490 = vpack.c.b16 %v1031, %v1022
  %v1491 = vpack.c.b16 %v1032, %v1023
  %v1492 = vpack.c.b16 %v1033, %v1024
  %v1493 = vpack.c.b16 %v1034, %v1025
  %v1494 = vpack.c.b16 %v1035, %v1026
  %v1495 = vpack.c.b16 %v1036, %v1027
  %v1496 = vpack.c.b16 %v1037, %v1028
  %v1497 = vpack.c.b16 %v1038, %v1029
  %v1498 = vpack.c.b16 %v1048, %v1039
  %v1499 = vpack.c.b16 %v1049, %v1040
  %v1500 = vpack.c.b16 %v1050, %v1041
  %v1501 = vpack.c.b16 %v1051, %v1042
  %v1502 = vpack.c.b16 %v1052, %v1043
  %v1503 = vpack.c.b16 %v1053, %v1044
  %v1504 = vpack.c.b16 %v1054, %v1045
  %v1505 = vpack.c.b16 %v1055, %v1046
  %v1506 = vpack.c.b16 %v1056, %v1047
  %v1507 = vpack.c.b16 %v1066, %v1057
  %v1508 = vpack.c.b16 %v1067, %v1058
  %v1509 = vpack.c.b16 %v1068, %v1059
  %v1510 = vpack.c.b16 %v1069, %v1060
  %v1511 = vpack.c.b16 %v1070, %v1061
  %v1512 = vpack.c.b16 %v1071, %v1062
  %v1513 = vpack.c.b16 %v1072, %v1063
  %v1514 = vpack.c.b16 %v1073, %v1064
  %v1515 = vpack.c.b16 %v1074, %v1065
  %v1516 = vpack.c.b16 %v1084, %v1075
  %v1517 = vpack.c.b16 %v1085, %v1076
  %v1518 = vpack.c.b16 %v1086, %v1077
  %v1519 = vpack.c.b16 %v1087, %v1078
  %v1520 = vpack.c.b16 %v1088, %v1079
  %v1521 = vpack.c.b16 %v1089, %v1080
  %v1522 = vpack.c.b16 %v1090, %v1081
  %v1523 = vpack.c.b16 %v1091, %v1082
  %v1524 = vpack.c.b16 %v1092, %v1083
  %v1525 = vpack.c.b16 %v1102, %v1093
  %v1526 = vpack.c.b16 %v1103, %v1094
  %v1527 = vpack.c.b16 %v1104, %v1095
  %v1528 = vpack.c.b16 %v1105, %v1096
  %v1529 = vpack.c.b16 %v1106, %v1097
  %v1530 = vpack.c.b16 %v1107, %v1098
  %v1531 = vpack.c.b16 %v1108, %v1099
  %v1532 = vpack.c.b16 %v1109, %v1100
  %v1533 = vpack.c.b16 %v1110, %v1101
  %v1534 = vpack.c.b16 %v1120, %v1111
  %v1535 = vpack.c.b16 %v1121, %v1112
  %v1536 = vpack.c.b16 %v1122, %v1113
  %v1537 = vpack.c.b16 %v1123, %v1114
  %v1538 = vpack.c.b16 %v1124, %v1115
  %v1539 = vpack.c.b16 %v1125, %v1116
  %v1540 = vpack.c.b16 %v1126, %v1117
  %v1541 = vpack.c.b16 %v1127, %v1118
  %v1542 = vpack.c.b16 %v1128, %v1119
  %v1543 = vpack.c.b16 %v1138, %v1129
  %v1544 = vpack.c.b16 %v1139, %v1130
  %v1545 = vpack.c.b16 %v1140, %v1131
  %v1546 = vpack.c.b16 %v1141, %v1132
  %v1547 = vpack.c.b16 %v1142, %v1133
  %v1548 = vpack.c.b16 %v1143, %v1134
  %v1549 = vpack.c.b16 %v1144, %v1135
  %v1550 = vpack.c.b16 %v1145, %v1136
  %v1551 = vpack.c.b16 %v1146, %v1137
  %v1552 = vpack.c.b16 %v1156, %v1147
  %v1553 = vpack.c.b16 %v1157, %v1148
  %v1554 = vpack.c.b16 %v1158, %v1149
  %v1555 = vpack.c.b16 %v1159, %v1150
  %v1556 = vpack.c.b16 %v1160, %v1151
  %v1557 = vpack.c.b16 %v1161, %v1152
  %v1558 = vpack.c.b16 %v1162, %v1153
  %v1559 = vpack.c.b16 %v1163, %v1154
  %v1560 = vpack.c.b16 %v1164, %v1155
  %v1561 = vpack.c.b16 %v1174, %v1165
  %v1562 = vpack.c.b16 %v1175, %v1166
  %v1563 = vpack.c.b16 %v1176, %v1167
  %v1564 = vpack.c.b16 %v1177, %v1168
  %v1565 = vpack.c.b16 %v1178, %v1169
  %v1566 = vpack.c.b16 %v1179, %v1170
  %v1567 = vpack.c.b16 %v1180, %v1171
  %v1568 = vpack.c.b16 %v1181, %v1172
  %v1569 = vpack.c.b16 %v1182, %v1173
  %v1570 = vpack.c.b16 %v1192, %v1183
  %v1571 = vpack.c.b16 %v1193, %v1184
  %v1572 = vpack.c.b16 %v1194, %v1185
  %v1573 = vpack.c.b16 %v1195, %v1186
  %v1574 = vpack.c.b16 %v1196, %v1187
  %v1575 = vpack.c.b16 %v1197, %v1188
  %v1576 = vpack.c.b16 %v1198, %v1189
  %v1577 = vpack.c.b16 %v1199, %v1190
  %v1578 = vpack.c.b16 %v1200, %v1191
  %v1579 = vpack.c.b16 %v1210, %v1201
  %v1580 = vpack.c.b16 %v1211, %v1202
  %v1581 = vpack.c.b16 %v1212, %v1203
  %v1582 = vpack.c.b16 %v1213, %v1204
  %v1583 = vpack.c.b16 %v1214, %v1205
  %v1584 = vpack.c.b16 %v1215, %v1206
  %v1585 = vpack.c.b16 %v1216, %v1207
  %v1586 = vpack.c.b16 %v1217, %v1208
  %v1587 = vpack.c.b16 %v1218, %v1209
  %v1588 = vpack.c.b16 %v1228, %v1219
  %v1589 = vpack.c.b16 %v1229, %v1220
  %v1590 = vpack.c.b16 %v1230, %v1221
  %v1591 = vpack.c.b16 %v1231, %v1222
  %v1592 = vpack.c.b16 %v1232, %v1223
  %v1593 = vpack.c.b16 %v1233, %v1224
  %v1594 = vpack.c.b16 %v1234, %v1225
  %v1595 = vpack.c.b16 %v1235, %v1226
  %v1596 = vpack.c.b16 %v1236, %v1227
  %v1597 = vpack.c.b16 %v1246, %v1237
  %v1598 = vpack.c.b16 %v1247, %v1238
  %v1599 = vpack.c.b16 %v1248, %v1239
  %v1600 = vpack.c.b16 %v1249, %v1240
  %v1601 = vpack.c.b16 %v1250, %v1241
  %v1602 = vpack.c.b16 %v1251, %v1242
  %v1603 = vpack.c.b16 %v1252, %v1243
  %v1604 = vpack.c.b16 %v1253, %v1244
  %v1605 = vpack.c.b16 %v1254, %v1245
  %v1606 = vpack.c.b16 %v1264, %v1255
  %v1607 = vpack.c.b16 %v1265, %v1256
  %v1608 = vpack.c.b16 %v1266, %v1257
  %v1609 = vpack.c.b16 %v1267, %v1258
  %v1610 = vpack.c.b16 %v1268, %v1259
  %v1611 = vpack.c.b16 %v1269, %v1260
  %v1612 = vpack.c.b16 %v1270, %v1261
  %v1613 = vpack.c.b16 %v1271, %v1262
  %v1614 = vpack.c.b16 %v1272, %v1263
  %v1615 = vpack.c.b16 %v1282, %v1273
  %v1616 = vpack.c.b16 %v1283, %v1274
  %v1617 = vpack.c.b16 %v1284, %v1275
  %v1618 = vpack.c.b16 %v1285, %v1276
  %v1619 = vpack.c.b16 %v1286, %v1277
  %v1620 = vpack.c.b16 %v1287, %v1278
  %v1621 = vpack.c.b16 %v1288, %v1279
  %v1622 = vpack.c.b16 %v1289, %v1280
  %v1623 = vpack.c.b16 %v1290, %v1281
  %v1624 = vpack.c.b16 %v1300, %v1291
  %v1625 = vpack.c.b16 %v1301, %v1292
  %v1626 = vpack.c.b16 %v1302, %v1293
  %v1627 = vpack.c.b16 %v1303, %v1294
  %v1628 = vpack.c.b16 %v1304, %v1295
  %v1629 = vpack.c.b16 %v1305, %v1296
  %v1630 = vpack.c.b16 %v1306, %v1297
  %v1631 = vpack.c.b16 %v1307, %v1298
  %v1632 = vpack.c.b16 %v1308, %v1299
  %v1633 = vpack.c.b16 %v1318, %v1309
  %v1634 = vpack.c.b16 %v1319, %v1310
  %v1635 = vpack.c.b16 %v1320, %v1311
  %v1636 = vpack.c.b16 %v1321, %v1312
  %v1637 = vpack.c.b16 %v1322, %v1313
  %v1638 = vpack.c.b16 %v1323, %v1314
  %v1639 = vpack.c.b16 %v1324, %v1315
  %v1640 = vpack.c.b16 %v1325, %v1316
  %v1641 = vpack.c.b16 %v1326, %v1317
  %v1642 = vpack.c.b16 %v1336, %v1327
  %v1643 = vpack.c.b16 %v1337, %v1328
  %v1644 = vpack.c.b16 %v1338, %v1329
  %v1645 = vpack.c.b16 %v1339, %v1330
  %v1646 = vpack.c.b16 %v1340, %v1331
  %v1647 = vpack.c.b16 %v1341, %v1332
  %v1648 = vpack.c.b16 %v1342, %v1333
  %v1649 = vpack.c.b16 %v1343, %v1334
  %v1650 = vpack.c.b16 %v1344, %v1335
  %v1651 = vpack.c.b16 %v1354, %v1345
  %v1652 = vpack.c.b16 %v1355, %v1346
  %v1653 = vpack.c.b16 %v1356, %v1347
  %v1654 = vpack.c.b16 %v1357, %v1348
  %v1655 = vpack.c.b16 %v1358, %v1349
  %v1656 = vpack.c.b16 %v1359, %v1350
  %v1657 = vpack.c.b16 %v1360, %v1351
  %v1658 = vpack.c.b16 %v1361, %v1352
  %v1659 = vpack.c.b16 %v1362, %v1353
  %v1660 = vpack.c.b16 %v1372, %v1363
  %v1661 = vpack.c.b16 %v1373, %v1364
  %v1662 = vpack.c.b16 %v1374, %v1365
  %v1663 = vpack.c.b16 %v1375, %v1366
  %v1664 = vpack.c.b16 %v1376, %v1367
  %v1665 = vpack.c.b16 %v1377, %v1368
  %v1666 = vpack.c.b16 %v1378, %v1369
  %v1667 = vpack.c.b16 %v1379, %v1370
  %v1668 = vpack.c.b16 %v1380, %v1371
  %v2101 = vunpack.c.l.b16 %v341
  %v2102 = vunpack.c.l.b16 %v342
  %v2103 = vunpack.c.l.b16 %v343
  %v2104 = vunpack.c.l.b16 %v344
  %v2105 = vunpack.c.l.b16 %v345
  %v2106 = vunpack.c.l.b16 %v346
  %v2107 = vunpack.c.l.b16 %v347
  %v2108 = vunpack.c.l.b16 %v348
  %v2109 = vunpack.c.l.b16 %v349
  %v2110 = vunpack.c.l.b16 %v350
  %v2111 = vunpack.c.l.b16 %v351
  %v2112 = vunpack.c.l.b16 %v352
  %v2113 = vunpack.c.l.b16 %v353
  %v2114 = vunpack.c.l.b16 %v354
  %v2115 = vunpack.c.l.b16 %v355
  %v2116 = vunpack.c.l.b16 %v356
  %v2117 = vunpack.c.l.b16 %v357
  %v2118 = vunpack.c.l.b16 %v358
  %v2119 = vunpack.c.l.b16 %v359
  %v2120 = vunpack.c.l.b16 %v360
  %v2121 = vunpack.c.l.b16 %v361
  %v2122 = vunpack.c.l.b16 %v362
  %v2123 = vunpack.c.l.b16 %v363
  %v2124 = vunpack.c.l.b16 %v364
  %v2125 = vunpack.c.l.b16 %v365
  %v2126 = vunpack.c.l.b16 %v366
  %v2127 = vunpack.c.l.b16 %v367
  %v2128 = vunpack.c.l.b16 %v368
  %v2129 = vunpack.c.l.b16 %v369
  %v2130 = vunpack.c.l.b16 %v370
  %v2131 = vunpack.c.l.b16 %v371
  %v2132 = vunpack.c.l.b16 %v372
  %v2133 = vunpack.c.l.b16 %v373
  %v2134 = vunpack.c.l.b16 %v374
  %v2135 = vunpack.c.l.b16 %v375
  %v2136 = vunpack.c.l.b16 %v376
  %v2137 = vunpack.c.l.b16 %v377
  %v2138 = vunpack.c.l.b16 %v378
  %v2139 = vunpack.c.l.b16 %v379
  %v2140 = vunpack.c.l.b16 %v380
  %v2141 = vunpack.c.l.b16 %v381
  %v2142 = vunpack.c.l.b16 %v382
  %v2143 = vunpack.c.l.b16 %v383
  %v2144 = vunpack.c.l.b16 %v384
  %v2145 = vunpack.c.l.b16 %v385
  %v2146 = vunpack.c.l.b16 %v386
  %v2147 = vunpack.c.l.b16 %v387
  %v2148 = vunpack.c.l.b16 %v388
  %v2149 = vunpack.c.l.b16 %v389
  %v2150 = vunpack.c.l.b16 %v390
  %v2151 = vunpack.c.l.b16 %v391
  %v2152 = vunpack.c.l.b16 %v392
  %v2153 = vunpack.c.l.b16 %v393
  %v2154 = vunpack.c.l.b16 %v394
  %v2155 = vunpack.c.l.b16 %v395
  %v2156 = vunpack.c.l.b16 %v396
  %v2157 = vunpack.c.l.b16 %v397
  %v2158 = vunpack.c.l.b16 %v398
  %v2159 = vunpack.c.l.b16 %v399
  %v2160 = vunpack.c.l.b16 %v400
  %v2161 = vunpack.c.l.b16 %v401
  %v2162 = vunpack.c.l.b16 %v402
  %v2163 = vunpack.c.l.b16 %v403
  %v2164 = vunpack.c.l.b16 %v404
  %v2165 = vunpack.c.l.b16 %v405
  %v2166 = vunpack.c.l.b16 %v406
  %v2167 = vunpack.c.l.b16 %v407
  %v2168 = vunpack.c.l.b16 %v408
  %v2169 = vunpack.c.l.b16 %v409
  %v2170 = vunpack.c.l.b16 %v410
  %v2171 = vunpack.c.l.b16 %v411
  %v2172 = vunpack.c.l.b16 %v412
  %v2173 = vunpack.c.l.b16 %v413
  %v2174 = vunpack.c.l.b16 %v414
  %v2175 = vunpack.c.l.b16 %v415
  %v2176 = vunpack.c.l.b16 %v416
  %v2177 = vunpack.c.l.b16 %v417
  %v2178 = vunpack.c.l.b16 %v418
  %v2179 = vunpack.c.l.b16 %v419
  %v2180 = vunpack.c.l.b16 %v420
  %v2181 = vunpack.c.l.b16 %v421
  %v2182 = vunpack.c.l.b16 %v422
  %v2183 = vunpack.c.l.b16 %v423
  %v2184 = vunpack.c.l.b16 %v424
  %v2185 = vunpack.c.l.b16 %v425
  %v2186 = vunpack.c.l.b16 %v426
  %v2187 = vunpack.c.l.b16 %v427
  %v2188 = vunpack.c.l.b16 %v428
  %v2189 = vunpack.c.l.b16 %v429
  %v2190 = vunpack.c.l.b16 %v430
  %v2191 = vunpack.c.l.b16 %v431
  %v2192 = vunpack.c.l.b16 %v432
  %v2193 = vunpack.c.l.b16 %v433
  %v2194 = vunpack.c.l.b16 %v434
  %v2195 = vunpack.c.l.b16 %v435
  %v2196 = vunpack.c.l.b16 %v436
  %v2197 = vunpack.c.l.b16 %v437
  %v2198 = vunpack.c.l.b16 %v438
  %v2199 = vunpack.c.l.b16 %v439
  %v2200 = vunpack.c.l.b16 %v440
  %v2201 = vunpack.c.l.b16 %v441
  %v2202 = vunpack.c.l.b16 %v442
  %v2203 = vunpack.c.l.b16 %v443
  %v2204 = vunpack.c.l.b16 %v444
  %v2205 = vunpack.c.l.b16 %v445
  %v2206 = vunpack.c.l.b16 %v446
  %v2207 = vunpack.c.l.b16 %v447
  %v2208 = vunpack.c.l.b16 %v448
  %v2209 = vunpack.c.l.b16 %v449
  %v2210 = vunpack.c.l.b16 %v450
  %v2211 = vunpack.c.l.b16 %v451
  %v2212 = vunpack.c.l.b16 %v452
  %v2213 = vunpack.c.l.b16 %v453
  %v2214 = vunpack.c.l.b16 %v454
  %v2215 = vunpack.c.l.b16 %v455
  %v2216 = vunpack.c.l.b16 %v456
  %v2217 = vunpack.c.l.b16 %v457
  %v2218 = vunpack.c.l.b16 %v458
  %v2219 = vunpack.c.l.b16 %v459
  %v2220 = vunpack.c.l.b16 %v460
  %v2221 = vunpack.c.l.b16 %v461
  %v2222 = vunpack.c.l.b16 %v462
  %v2223 = vunpack.c.l.b16 %v463
  %v2224 = vunpack.c.l.b16 %v464
  %v2225 = vunpack.c.l.b16 %v465
  %v2226 = vunpack.c.l.b16 %v466
  %v2227 = vunpack.c.l.b16 %v467
  %v2228 = vunpack.c.l.b16 %v468
  %v2229 = vunpack.c.l.b16 %v469
  %v2230 = vunpack.c.l.b16 %v470
  %v2231 = vunpack.c.l.b16 %v471
  %v2232 = vunpack.c.l.b16 %v472
  %v2233 = vunpack.c.l.b16 %v473
  %v2234 = vunpack.c.l.b16 %v474
  %v2235 = vunpack.c.l.b16 %v475
  %v2236 = vunpack.c.l.b16 %v476
  %v2237 = vunpack.c.l.b16 %v477
  %v2238 = vunpack.c.l.b16 %v478
  %v2239 = vunpack.c.l.b16 %v479
  %v2240 = vunpack.c.l.b16 %v480
  %v2241 = vunpack.c.l.b16 %v481
  %v2242 = vunpack.c.l.b16 %v482
  %v2243 = vunpack.c.l.b16 %v483
  %v2244 = vunpack.c.l.b16 %v484
  %v2245 = vpack.c.b16 %v2102, %v2101
  %v2246 = vpack.c.b16 %v2104, %v2103
  %v2247 = vpack.c.b16 %v2106, %v2105
  %v2248 = vpack.c.b16 %v2108, %v2107
  %v2249 = vpack.c.b16 %v2110, %v2109
  %v2250 = vpack.c.b16 %v2112, %v2111
  %v2251 = vpack.c.b16 %v2114, %v2113
  %v2252 = vpack.c.b16 %v2116, %v2115
  %v2253 = vpack.c.b16 %v2118, %v2117
  %v2254 = vpack.c.b16 %v2120, %v2119
  %v2255 = vpack.c.b16 %v2122, %v2121
  %v2256 = vpack.c.b16 %v2124, %v2123
  %v2257 = vpack.c.b16 %v2126, %v2125
  %v2258 = vpack.c.b16 %v2128, %v2127
  %v2259 = vpack.c.b16 %v2130, %v2129
  %v2260 = vpack.c.b16 %v2132, %v2131
  %v2261 = vpack.c.b16 %v2134, %v2133
  %v2262 = vpack.c.b16 %v2136, %v2135
  %v2263 = vpack.c.b16 %v2138, %v2137
  %v2264 = vpack.c.b16 %v2140, %v2139
  %v2265 = vpack.c.b16 %v2142, %v2141
  %v2266 = vpack.c.b16 %v2144, %v2143
  %v2267 = vpack.c.b16 %v2146, %v2145
  %v2268 = vpack.c.b16 %v2148, %v2147
  %v2269 = vpack.c.b16 %v2150, %v2149
  %v2270 = vpack.c.b16 %v2152, %v2151
  %v2271 = vpack.c.b16 %v2154, %v2153
  %v2272 = vpack.c.b16 %v2156, %v2155
  %v2273 = vpack.c.b16 %v2158, %v2157
  %v2274 = vpack.c.b16 %v2160, %v2159
  %v2275 = vpack.c.b16 %v2162, %v2161
  %v2276 = vpack.c.b16 %v2164, %v2163
  %v2277 = vpack.c.b16 %v2166, %v2165
  %v2278 = vpack.c.b16 %v2168, %v2167
  %v2279 = vpack.c.b16 %v2170, %v2169
  %v2280 = vpack.c.b16 %v2172, %v2171
  %v2281 = vpack.c.b16 %v2174, %v2173
  %v2282 = vpack.c.b16 %v2176, %v2175
  %v2283 = vpack.c.b16 %v2178, %v2177
  %v2284 = vpack.c.b16 %v2180, %v2179
  %v2285 = vpack.c.b16 %v2182, %v2181
  %v2286 = vpack.c.b16 %v2184, %v2183
  %v2287 = vpack.c.b16 %v2186, %v2185
  %v2288 = vpack.c.b16 %v2188, %v2187
  %v2289 = vpack.c.b16 %v2190, %v2189
  %v2290 = vpack.c.b16 %v2192, %v2191
  %v2291 = vpack.c.b16 %v2194, %v2193
  %v2292 = vpack.c.b16 %v2196, %v2195
  %v2293 = vpack.c.b16 %v2198, %v2197
  %v2294 = vpack.c.b16 %v2200, %v2199
  %v2295 = vpack.c.b16 %v2202, %v2201
  %v2296 = vpack.c.b16 %v2204, %v2203
  %v2297 = vpack.c.b16 %v2206, %v2205
  %v2298 = vpack.c.b16 %v2208, %v2207
  %v2299 = vpack.c.b16 %v2210, %v2209
  %v2300 = vpack.c.b16 %v2212, %v2211
  %v2301 = vpack.c.b16 %v2214, %v2213
  %v2302 = vpack.c.b16 %v2216, %v2215
  %v2303 = vpack.c.b16 %v2218, %v2217
  %v2304 = vpack.c.b16 %v2220, %v2219
  %v2305 = vpack.c.b16 %v2222, %v2221
  %v2306 = vpack.c.b16 %v2224, %v2223
  %v2307 = vpack.c.b16 %v2226, %v2225
  %v2308 = vpack.c.b16 %v2228, %v2227
  %v2309 = vpack.c.b16 %v2230, %v2229
  %v2310 = vpack.c.b16 %v2232, %v2231
  %v2311 = vpack.c.b16 %v2234, %v2233
  %v2312 = vpack.c.b16 %v2236, %v2235
  %v2313 = vpack.c.b16 %v2238, %v2237
  %v2314 = vpack.c.b16 %v2240, %v2239
  %v2315 = vpack.c.b16 %v2242, %v2241
  %v2316 = vpack.c.b16 %v2244, %v2243
  %2389 = vmatprep.subr.bf16.mxu0 0
  %2390 = vmatpush1.bf16.msra.mxu0 %v2245
  %2391 = vmatprep.subr.bf16.mxu0 0
  %2392 = vmatpush1.bf16.msra.mxu0 %v2246
  %2393 = vmatprep.subr.bf16.mxu0 0
  %2394 = vmatpush1.bf16.msra.mxu0 %v2247
  %2395 = vmatprep.subr.bf16.mxu0 0
  %2396 = vmatpush1.bf16.msra.mxu0 %v2248
  %2397 = vmatprep.subr.bf16.mxu0 0
  %2398 = vmatpush1.bf16.msra.mxu0 %v2249
  %2399 = vmatprep.subr.bf16.mxu0 0
  %2400 = vmatpush1.bf16.msra.mxu0 %v2250
  %2401 = vmatprep.subr.bf16.mxu0 0
  %2402 = vmatpush1.bf16.msra.mxu0 %v2251
  %2403 = vmatprep.subr.bf16.mxu0 0
  %2404 = vmatpush1.bf16.msra.mxu0 %v2252
  %2405 = vmatprep.subr.bf16.mxu0 0
  %2406 = vmatpush1.bf16.msra.mxu0 %v2253
  %2407 = vmatprep.subr.bf16.mxu0 0
  %2408 = vmatpush1.bf16.msra.mxu0 %v2254
  %2409 = vmatprep.subr.bf16.mxu0 0
  %2410 = vmatpush1.bf16.msra.mxu0 %v2255
  %2411 = vmatprep.subr.bf16.mxu0 0
  %2412 = vmatpush1.bf16.msra.mxu0 %v2256
  %2413 = vmatprep.subr.bf16.mxu0 0
  %2414 = vmatpush1.bf16.msra.mxu0 %v2257
  %2415 = vmatprep.subr.bf16.mxu0 0
  %2416 = vmatpush1.bf16.msra.mxu0 %v2258
  %2417 = vmatprep.subr.bf16.mxu0 0
  %2418 = vmatpush1.bf16.msra.mxu0 %v2259
  %2419 = vmatprep.subr.bf16.mxu0 0
  %2420 = vmatpush1.bf16.msra.mxu0 %v2260
  %2421 = vmatprep.mubr.bf16.mxu0 %v1382
  %2422 = vmatmul.mubr.bf16.gmra.mrb[0].mxu0 %v1381
  %v2423 = vpop.f32.mrb[0].mxu0
  %v2424 = vadd.f32 0.0, %v2423
  %v2425 = vpop.f32.mrb[0].mxu0
  %v2426 = vpop.f32.mrb[0].mxu0
  %v2427 = vadd.f32 0.0, %v2426
  %v2428 = vpop.f32.mrb[0].mxu0
  %2429 = vmatprep.mubr.bf16.mxu0 %v1391
  %2430 = vmatmul.mubr.bf16.gmra.mrb[0].mxu0 %v1390
  %v2431 = vpop.f32.mrb[0].mxu0
  %v2432 = vadd.f32 0.0, %v2431
  %v2433 = vpop.f32.mrb[0].mxu0
  %v2434 = vpop.f32.mrb[0].mxu0
  %v2435 = vadd.f32 0.0, %v2434
  %v2436 = vpop.f32.mrb[0].mxu0
  %2437 = vmatprep.mubr.bf16.mxu0 %v1400
  %2438 = vmatmul.mubr.bf16.gmra.mrb[0].mxu0 %v1399
  %v2439 = vpop.f32.mrb[0].mxu0
  %v2440 = vadd.f32 0.0, %v2439
  %v2441 = vpop.f32.mrb[0].mxu0
  %v2442 = vpop.f32.mrb[0].mxu0
  %v2443 = vadd.f32 0.0, %v2442
  %v2444 = vpop.f32.mrb[0].mxu0
  %2445 = vmatprep.mubr.bf16.mxu0 %v1409
  %2446 = vmatmul.mubr.bf16.gmra.mrb[0].mxu0 %v1408
  %v2447 = vpop.f32.mrb[0].mxu0
  %v2448 = vadd.f32 0.0, %v2447
  %v2449 = vpop.f32.mrb[0].mxu0
  %v2450 = vpop.f32.mrb[0].mxu0
  %v2451 = vadd.f32 0.0, %v2450
  %v2452 = vpop.f32.mrb[0].mxu0
  %2453 = vmatprep.mubr.bf16.mxu0 %v1418
  %2454 = vmatmul.mubr.bf16.gmra.mrb[0].mxu0 %v1417
  %v2455 = vpop.f32.mrb[0].mxu0
  %v2456 = vadd.f32 0.0, %v2455
  %v2457 = vpop.f32.mrb[0].mxu0
  %v2458 = vpop.f32.mrb[0].mxu0
  %v2459 = vadd.f32 0.0, %v2458
  %v2460 = vpop.f32.mrb[0].mxu0
  %2461 = vmatprep.mubr.bf16.mxu0 %v1427
  %2462 = vmatmul.mubr.bf16.gmra.mrb[0].mxu0 %v1426
  %v2463 = vpop.f32.mrb[0].mxu0
  %v2464 = vadd.f32 0.0, %v2463
  %v2465 = vpop.f32.mrb[0].mxu0
  %v2466 = vpop.f32.mrb[0].mxu0
  %v2467 = vadd.f32 0.0, %v2466
  %v2468 = vpop.f32.mrb[0].mxu0
  %2469 = vmatprep.mubr.bf16.mxu0 %v1436
  %2470 = vmatmul.mubr.bf16.gmra.mrb[0].mxu0 %v1435
  %v2471 = vpop.f32.mrb[0].mxu0
  %v2472 = vadd.f32 0.0, %v2471
  %v2473 = vpop.f32.mrb[0].mxu0
  %v2474 = vpop.f32.mrb[0].mxu0
  %v2475 = vadd.f32 0.0, %v2474
  %v2476 = vpop.f32.mrb[0].mxu0
  %2477 = vmatprep.mubr.bf16.mxu0 %v1445
  %2478 = vmatmul.mubr.bf16.gmra.mrb[0].mxu0 %v1444
  %v2479 = vpop.f32.mrb[0].mxu0
  %v2480 = vadd.f32 0.0, %v2479
  %v2481 = vpop.f32.mrb[0].mxu0
  %v2482 = vpop.f32.mrb[0].mxu0
  %v2483 = vadd.f32 0.0, %v2482
  %v2484 = vpop.f32.mrb[0].mxu0
  %2485 = vmatprep.mubr.bf16.mxu0 %v1454
  %2486 = vmatmul.mubr.bf16.gmra.mrb[0].mxu0 %v1453
  %v2487 = vpop.f32.mrb[0].mxu0
  %v2488 = vadd.f32 0.0, %v2487
  %v2489 = vpop.f32.mrb[0].mxu0
  %v2490 = vpop.f32.mrb[0].mxu0
  %v2491 = vadd.f32 0.0, %v2490
  %v2492 = vpop.f32.mrb[0].mxu0
  %2493 = vmatprep.mubr.bf16.mxu0 %v1463
  %2494 = vmatmul.mubr.bf16.gmra.mrb[0].mxu0 %v1462
  %v2495 = vpop.f32.mrb[0].mxu0
  %v2496 = vadd.f32 0.0, %v2495
  %v2497 = vpop.f32.mrb[0].mxu0
  %v2498 = vpop.f32.mrb[0].mxu0
  %v2499 = vadd.f32 0.0, %v2498
  %v2500 = vpop.f32.mrb[0].mxu0
  %2501 = vmatprep.mubr.bf16.mxu0 %v1472
  %2502 = vmatmul.mubr.bf16.gmra.mrb[0].mxu0 %v1471
  %v2503 = vpop.f32.mrb[0].mxu0
  %v2504 = vadd.f32 0.0, %v2503
  %v2505 = vpop.f32.mrb[0].mxu0
  %v2506 = vpop.f32.mrb[0].mxu0
  %v2507 = vadd.f32 0.0, %v2506
  %v2508 = vpop.f32.mrb[0].mxu0
  %2509 = vmatprep.mubr.bf16.mxu0 %v1481
  %2510 = vmatmul.mubr.bf16.gmra.mrb[0].mxu0 %v1480
  %v2511 = vpop.f32.mrb[0].mxu0
  %v2512 = vadd.f32 0.0, %v2511
  %v2513 = vpop.f32.mrb[0].mxu0
  %v2514 = vpop.f32.mrb[0].mxu0
  %v2515 = vadd.f32 0.0, %v2514
  %v2516 = vpop.f32.mrb[0].mxu0
  %2517 = vmatprep.mubr.bf16.mxu0 %v1490
  %2518 = vmatmul.mubr.bf16.gmra.mrb[0].mxu0 %v1489
  %v2519 = vpop.f32.mrb[0].mxu0
  %v2520 = vadd.f32 0.0, %v2519
  %v2521 = vpop.f32.mrb[0].mxu0
  %v2522 = vpop.f32.mrb[0].mxu0
  %v2523 = vadd.f32 0.0, %v2522
  %v2524 = vpop.f32.mrb[0].mxu0
  %2525 = vmatprep.mubr.bf16.mxu0 %v1499
  %2526 = vmatmul.mubr.bf16.gmra.mrb[0].mxu0 %v1498
  %v2527 = vpop.f32.mrb[0].mxu0
  %v2528 = vadd.f32 0.0, %v2527
  %v2529 = vpop.f32.mrb[0].mxu0
  %v2530 = vpop.f32.mrb[0].mxu0
  %v2531 = vadd.f32 0.0, %v2530
  %v2532 = vpop.f32.mrb[0].mxu0
  %2533 = vmatprep.mubr.bf16.mxu0 %v1508
  %2534 = vmatmul.mubr.bf16.gmra.mrb[0].mxu0 %v1507
  %v2535 = vpop.f32.mrb[0].mxu0
  %v2536 = vadd.f32 0.0, %v2535
  %v2537 = vpop.f32.mrb[0].mxu0
  %v2538 = vpop.f32.mrb[0].mxu0
  %v2539 = vadd.f32 0.0, %v2538
  %v2540 = vpop.f32.mrb[0].mxu0
  %2541 = vmatprep.mubr.bf16.mxu0 %v1517
  %2542 = vmatmul.mubr.bf16.gmra.mrb[0].mxu0 %v1516
  %v2543 = vpop.f32.mrb[0].mxu0
  %v2544 = vadd.f32 0.0, %v2543
  %v2545 = vpop.f32.mrb[0].mxu0
  %v2546 = vpop.f32.mrb[0].mxu0
  %v2547 = vadd.f32 0.0, %v2546
  %v2548 = vpop.f32.mrb[0].mxu0
  %2549 = vmatprep.mubr.bf16.mxu0 %v1526
  %2550 = vmatmul.mubr.bf16.gmra.mrb[0].mxu0 %v1525
  %v2551 = vpop.f32.mrb[0].mxu0
  %v2552 = vadd.f32 0.0, %v2551
  %v2553 = vpop.f32.mrb[0].mxu0
  %v2554 = vpop.f32.mrb[0].mxu0
  %v2555 = vadd.f32 0.0, %v2554
  %v2556 = vpop.f32.mrb[0].mxu0
  %2557 = vmatprep.mubr.bf16.mxu0 %v1535
  %2558 = vmatmul.mubr.bf16.gmra.mrb[0].mxu0 %v1534
  %v2559 = vpop.f32.mrb[0].mxu0
  %v2560 = vadd.f32 0.0, %v2559
  %v2561 = vpop.f32.mrb[0].mxu0
  %v2562 = vpop.f32.mrb[0].mxu0
  %v2563 = vadd.f32 0.0, %v2562
  %v2564 = vpop.f32.mrb[0].mxu0
  %2565 = vmatprep.mubr.bf16.mxu0 %v1544
  %2566 = vmatmul.mubr.bf16.gmra.mrb[0].mxu0 %v1543
  %v2567 = vpop.f32.mrb[0].mxu0
  %v2568 = vadd.f32 0.0, %v2567
  %v2569 = vpop.f32.mrb[0].mxu0
  %v2570 = vpop.f32.mrb[0].mxu0
  %v2571 = vadd.f32 0.0, %v2570
  %v2572 = vpop.f32.mrb[0].mxu0
  %2573 = vmatprep.mubr.bf16.mxu0 %v1553
  %2574 = vmatmul.mubr.bf16.gmra.mrb[0].mxu0 %v1552
  %v2575 = vpop.f32.mrb[0].mxu0
  %v2576 = vadd.f32 0.0, %v2575
  %v2577 = vpop.f32.mrb[0].mxu0
  %v2578 = vpop.f32.mrb[0].mxu0
  %v2579 = vadd.f32 0.0, %v2578
  %v2580 = vpop.f32.mrb[0].mxu0
  %2581 = vmatprep.mubr.bf16.mxu0 %v1562
  %2582 = vmatmul.mubr.bf16.gmra.mrb[0].mxu0 %v1561
  %v2583 = vpop.f32.mrb[0].mxu0
  %v2584 = vadd.f32 0.0, %v2583
  %v2585 = vpop.f32.mrb[0].mxu0
  %v2586 = vpop.f32.mrb[0].mxu0
  %v2587 = vadd.f32 0.0, %v2586
  %v2588 = vpop.f32.mrb[0].mxu0
  %2589 = vmatprep.mubr.bf16.mxu0 %v1571
  %2590 = vmatmul.mubr.bf16.gmra.mrb[0].mxu0 %v1570
  %v2591 = vpop.f32.mrb[0].mxu0
  %v2592 = vadd.f32 0.0, %v2591
  %v2593 = vpop.f32.mrb[0].mxu0
  %v2594 = vpop.f32.mrb[0].mxu0
  %v2595 = vadd.f32 0.0, %v2594
  %v2596 = vpop.f32.mrb[0].mxu0
  %2597 = vmatprep.mubr.bf16.mxu0 %v1580
  %2598 = vmatmul.mubr.bf16.gmra.mrb[0].mxu0 %v1579
  %v2599 = vpop.f32.mrb[0].mxu0
  %v2600 = vadd.f32 0.0, %v2599
  %v2601 = vpop.f32.mrb[0].mxu0
  %v2602 = vpop.f32.mrb[0].mxu0
  %v2603 = vadd.f32 0.0, %v2602
  %v2604 = vpop.f32.mrb[0].mxu0
  %2605 = vmatprep.mubr.bf16.mxu0 %v1589
  %2606 = vmatmul.mubr.bf16.gmra.mrb[0].mxu0 %v1588
  %v2607 = vpop.f32.mrb[0].mxu0
  %v2608 = vadd.f32 0.0, %v2607
  %v2609 = vpop.f32.mrb[0].mxu0
  %v2610 = vpop.f32.mrb[0].mxu0
  %v2611 = vadd.f32 0.0, %v2610
  %v2612 = vpop.f32.mrb[0].mxu0
  %2613 = vmatprep.mubr.bf16.mxu0 %v1598
  %2614 = vmatmul.mubr.bf16.gmra.mrb[0].mxu0 %v1597
  %v2615 = vpop.f32.mrb[0].mxu0
  %v2616 = vadd.f32 0.0, %v2615
  %v2617 = vpop.f32.mrb[0].mxu0
  %v2618 = vpop.f32.mrb[0].mxu0
  %v2619 = vadd.f32 0.0, %v2618
  %v2620 = vpop.f32.mrb[0].mxu0
  %2621 = vmatprep.mubr.bf16.mxu0 %v1607
  %2622 = vmatmul.mubr.bf16.gmra.mrb[0].mxu0 %v1606
  %v2623 = vpop.f32.mrb[0].mxu0
  %v2624 = vadd.f32 0.0, %v2623
  %v2625 = vpop.f32.mrb[0].mxu0
  %v2626 = vpop.f32.mrb[0].mxu0
  %v2627 = vadd.f32 0.0, %v2626
  %v2628 = vpop.f32.mrb[0].mxu0
  %2629 = vmatprep.mubr.bf16.mxu0 %v1616
  %2630 = vmatmul.mubr.bf16.gmra.mrb[0].mxu0 %v1615
  %v2631 = vpop.f32.mrb[0].mxu0
  %v2632 = vadd.f32 0.0, %v2631
  %v2633 = vpop.f32.mrb[0].mxu0
  %v2634 = vpop.f32.mrb[0].mxu0
  %v2635 = vadd.f32 0.0, %v2634
  %v2636 = vpop.f32.mrb[0].mxu0
  %2637 = vmatprep.mubr.bf16.mxu0 %v1625
  %2638 = vmatmul.mubr.bf16.gmra.mrb[0].mxu0 %v1624
  %v2639 = vpop.f32.mrb[0].mxu0
  %v2640 = vadd.f32 0.0, %v2639
  %v2641 = vpop.f32.mrb[0].mxu0
  %v2642 = vpop.f32.mrb[0].mxu0
  %v2643 = vadd.f32 0.0, %v2642
  %v2644 = vpop.f32.mrb[0].mxu0
  %2645 = vmatprep.mubr.bf16.mxu0 %v1634
  %2646 = vmatmul.mubr.bf16.gmra.mrb[0].mxu0 %v1633
  %v2647 = vpop.f32.mrb[0].mxu0
  %v2648 = vadd.f32 0.0, %v2647
  %v2649 = vpop.f32.mrb[0].mxu0
  %v2650 = vpop.f32.mrb[0].mxu0
  %v2651 = vadd.f32 0.0, %v2650
  %v2652 = vpop.f32.mrb[0].mxu0
  %2653 = vmatprep.mubr.bf16.mxu0 %v1643
  %2654 = vmatmul.mubr.bf16.gmra.mrb[0].mxu0 %v1642
  %v2655 = vpop.f32.mrb[0].mxu0
  %v2656 = vadd.f32 0.0, %v2655
  %v2657 = vpop.f32.mrb[0].mxu0
  %v2658 = vpop.f32.mrb[0].mxu0
  %v2659 = vadd.f32 0.0, %v2658
  %v2660 = vpop.f32.mrb[0].mxu0
  %2661 = vmatprep.mubr.bf16.mxu0 %v1652
  %2662 = vmatmul.mubr.bf16.gmra.mrb[0].mxu0 %v1651
  %v2663 = vpop.f32.mrb[0].mxu0
  %v2664 = vadd.f32 0.0, %v2663
  %v2665 = vpop.f32.mrb[0].mxu0
  %v2666 = vpop.f32.mrb[0].mxu0
  %v2667 = vadd.f32 0.0, %v2666
  %v2668 = vpop.f32.mrb[0].mxu0
  %2669 = vmatprep.mubr.bf16.mxu0 %v1661
  %2670 = vmatmul.mubr.bf16.gmra.mrb[0].mxu0 %v1660
  %v2671 = vpop.f32.mrb[0].mxu0
  %v2672 = vadd.f32 0.0, %v2671
  %v2673 = vpop.f32.mrb[0].mxu0
  %v2674 = vpop.f32.mrb[0].mxu0
  %v2675 = vadd.f32 0.0, %v2674
  %v2676 = vpop.f32.mrb[0].mxu0
  %2677 = vdwg.mxu0
  %2678 = vmatprep.subr.bf16.mxu0 0
  %2679 = vmatpush1.bf16.msra.mxu0 %v2261
  %2680 = vmatprep.subr.bf16.mxu0 0
  %2681 = vmatpush1.bf16.msra.mxu0 %v2262
  %2682 = vmatprep.subr.bf16.mxu0 0
  %2683 = vmatpush1.bf16.msra.mxu0 %v2263
  %2684 = vmatprep.subr.bf16.mxu0 0
  %2685 = vmatpush1.bf16.msra.mxu0 %v2264
  %2686 = vmatprep.subr.bf16.mxu0 0
  %2687 = vmatpush1.bf16.msra.mxu0 %v2265
  %2688 = vmatprep.subr.bf16.mxu0 0
  %2689 = vmatpush1.bf16.msra.mxu0 %v2266
  %2690 = vmatprep.subr.bf16.mxu0 0
  %2691 = vmatpush1.bf16.msra.mxu0 %v2267
  %2692 = vmatprep.subr.bf16.mxu0 0
  %2693 = vmatpush1.bf16.msra.mxu0 %v2268
  %2694 = vmatprep.subr.bf16.mxu0 0
  %2695 = vmatpush1.bf16.msra.mxu0 %v2269
  %2696 = vmatprep.subr.bf16.mxu0 0
  %2697 = vmatpush1.bf16.msra.mxu0 %v2270
  %2698 = vmatprep.subr.bf16.mxu0 0
  %2699 = vmatpush1.bf16.msra.mxu0 %v2271
  %2700 = vmatprep.subr.bf16.mxu0 0
  %2701 = vmatpush1.bf16.msra.mxu0 %v2272
  %2702 = vmatprep.subr.bf16.mxu0 0
  %2703 = vmatpush1.bf16.msra.mxu0 %v2273
  %2704 = vmatprep.subr.bf16.mxu0 0
  %2705 = vmatpush1.bf16.msra.mxu0 %v2274
  %2706 = vmatprep.subr.bf16.mxu0 0
  %2707 = vmatpush1.bf16.msra.mxu0 %v2275
  %2708 = vmatprep.subr.bf16.mxu0 0
  %2709 = vmatpush1.bf16.msra.mxu0 %v2276
  %2710 = vmatprep.mubr.bf16.mxu0 %v1384
  %2711 = vmatmul.mubr.bf16.gmra.mrb[0].mxu0 %v1383
  %v2712 = vpop.f32.mrb[0].mxu0
  %v2713 = vadd.f32 %v2424, %v2712
  %v2714 = vpop.f32.mrb[0].mxu0
  %v2715 = vpop.f32.mrb[0].mxu0
  %v2716 = vadd.f32 %v2427, %v2715
  %v2717 = vpop.f32.mrb[0].mxu0
  %2718 = vmatprep.mubr.bf16.mxu0 %v1393
  %2719 = vmatmul.mubr.bf16.gmra.mrb[0].mxu0 %v1392
  %v2720 = vpop.f32.mrb[0].mxu0
  %v2721 = vadd.f32 %v2432, %v2720
  %v2722 = vpop.f32.mrb[0].mxu0
  %v2723 = vpop.f32.mrb[0].mxu0
  %v2724 = vadd.f32 %v2435, %v2723
  %v2725 = vpop.f32.mrb[0].mxu0
  %2726 = vmatprep.mubr.bf16.mxu0 %v1402
  %2727 = vmatmul.mubr.bf16.gmra.mrb[0].mxu0 %v1401
  %v2728 = vpop.f32.mrb[0].mxu0
  %v2729 = vadd.f32 %v2440, %v2728
  %v2730 = vpop.f32.mrb[0].mxu0
  %v2731 = vpop.f32.mrb[0].mxu0
  %v2732 = vadd.f32 %v2443, %v2731
  %v2733 = vpop.f32.mrb[0].mxu0
  %2734 = vmatprep.mubr.bf16.mxu0 %v1411
  %2735 = vmatmul.mubr.bf16.gmra.mrb[0].mxu0 %v1410
  %v2736 = vpop.f32.mrb[0].mxu0
  %v2737 = vadd.f32 %v2448, %v2736
  %v2738 = vpop.f32.mrb[0].mxu0
  %v2739 = vpop.f32.mrb[0].mxu0
  %v2740 = vadd.f32 %v2451, %v2739
  %v2741 = vpop.f32.mrb[0].mxu0
  %2742 = vmatprep.mubr.bf16.mxu0 %v1420
  %2743 = vmatmul.mubr.bf16.gmra.mrb[0].mxu0 %v1419
  %v2744 = vpop.f32.mrb[0].mxu0
  %v2745 = vadd.f32 %v2456, %v2744
  %v2746 = vpop.f32.mrb[0].mxu0
  %v2747 = vpop.f32.mrb[0].mxu0
  %v2748 = vadd.f32 %v2459, %v2747
  %v2749 = vpop.f32.mrb[0].mxu0
  %2750 = vmatprep.mubr.bf16.mxu0 %v1429
  %2751 = vmatmul.mubr.bf16.gmra.mrb[0].mxu0 %v1428
  %v2752 = vpop.f32.mrb[0].mxu0
  %v2753 = vadd.f32 %v2464, %v2752
  %v2754 = vpop.f32.mrb[0].mxu0
  %v2755 = vpop.f32.mrb[0].mxu0
  %v2756 = vadd.f32 %v2467, %v2755
  %v2757 = vpop.f32.mrb[0].mxu0
  %2758 = vmatprep.mubr.bf16.mxu0 %v1438
  %2759 = vmatmul.mubr.bf16.gmra.mrb[0].mxu0 %v1437
  %v2760 = vpop.f32.mrb[0].mxu0
  %v2761 = vadd.f32 %v2472, %v2760
  %v2762 = vpop.f32.mrb[0].mxu0
  %v2763 = vpop.f32.mrb[0].mxu0
  %v2764 = vadd.f32 %v2475, %v2763
  %v2765 = vpop.f32.mrb[0].mxu0
  %2766 = vmatprep.mubr.bf16.mxu0 %v1447
  %2767 = vmatmul.mubr.bf16.gmra.mrb[0].mxu0 %v1446
  %v2768 = vpop.f32.mrb[0].mxu0
  %v2769 = vadd.f32 %v2480, %v2768
  %v2770 = vpop.f32.mrb[0].mxu0
  %v2771 = vpop.f32.mrb[0].mxu0
  %v2772 = vadd.f32 %v2483, %v2771
  %v2773 = vpop.f32.mrb[0].mxu0
  %2774 = vmatprep.mubr.bf16.mxu0 %v1456
  %2775 = vmatmul.mubr.bf16.gmra.mrb[0].mxu0 %v1455
  %v2776 = vpop.f32.mrb[0].mxu0
  %v2777 = vadd.f32 %v2488, %v2776
  %v2778 = vpop.f32.mrb[0].mxu0
  %v2779 = vpop.f32.mrb[0].mxu0
  %v2780 = vadd.f32 %v2491, %v2779
  %v2781 = vpop.f32.mrb[0].mxu0
  %2782 = vmatprep.mubr.bf16.mxu0 %v1465
  %2783 = vmatmul.mubr.bf16.gmra.mrb[0].mxu0 %v1464
  %v2784 = vpop.f32.mrb[0].mxu0
  %v2785 = vadd.f32 %v2496, %v2784
  %v2786 = vpop.f32.mrb[0].mxu0
  %v2787 = vpop.f32.mrb[0].mxu0
  %v2788 = vadd.f32 %v2499, %v2787
  %v2789 = vpop.f32.mrb[0].mxu0
  %2790 = vmatprep.mubr.bf16.mxu0 %v1474
  %2791 = vmatmul.mubr.bf16.gmra.mrb[0].mxu0 %v1473
  %v2792 = vpop.f32.mrb[0].mxu0
  %v2793 = vadd.f32 %v2504, %v2792
  %v2794 = vpop.f32.mrb[0].mxu0
  %v2795 = vpop.f32.mrb[0].mxu0
  %v2796 = vadd.f32 %v2507, %v2795
  %v2797 = vpop.f32.mrb[0].mxu0
  %2798 = vmatprep.mubr.bf16.mxu0 %v1483
  %2799 = vmatmul.mubr.bf16.gmra.mrb[0].mxu0 %v1482
  %v2800 = vpop.f32.mrb[0].mxu0
  %v2801 = vadd.f32 %v2512, %v2800
  %v2802 = vpop.f32.mrb[0].mxu0
  %v2803 = vpop.f32.mrb[0].mxu0
  %v2804 = vadd.f32 %v2515, %v2803
  %v2805 = vpop.f32.mrb[0].mxu0
  %2806 = vmatprep.mubr.bf16.mxu0 %v1492
  %2807 = vmatmul.mubr.bf16.gmra.mrb[0].mxu0 %v1491
  %v2808 = vpop.f32.mrb[0].mxu0
  %v2809 = vadd.f32 %v2520, %v2808
  %v2810 = vpop.f32.mrb[0].mxu0
  %v2811 = vpop.f32.mrb[0].mxu0
  %v2812 = vadd.f32 %v2523, %v2811
  %v2813 = vpop.f32.mrb[0].mxu0
  %2814 = vmatprep.mubr.bf16.mxu0 %v1501
  %2815 = vmatmul.mubr.bf16.gmra.mrb[0].mxu0 %v1500
  %v2816 = vpop.f32.mrb[0].mxu0
  %v2817 = vadd.f32 %v2528, %v2816
  %v2818 = vpop.f32.mrb[0].mxu0
  %v2819 = vpop.f32.mrb[0].mxu0
  %v2820 = vadd.f32 %v2531, %v2819
  %v2821 = vpop.f32.mrb[0].mxu0
  %2822 = vmatprep.mubr.bf16.mxu0 %v1510
  %2823 = vmatmul.mubr.bf16.gmra.mrb[0].mxu0 %v1509
  %v2824 = vpop.f32.mrb[0].mxu0
  %v2825 = vadd.f32 %v2536, %v2824
  %v2826 = vpop.f32.mrb[0].mxu0
  %v2827 = vpop.f32.mrb[0].mxu0
  %v2828 = vadd.f32 %v2539, %v2827
  %v2829 = vpop.f32.mrb[0].mxu0
  %2830 = vmatprep.mubr.bf16.mxu0 %v1519
  %2831 = vmatmul.mubr.bf16.gmra.mrb[0].mxu0 %v1518
  %v2832 = vpop.f32.mrb[0].mxu0
  %v2833 = vadd.f32 %v2544, %v2832
  %v2834 = vpop.f32.mrb[0].mxu0
  %v2835 = vpop.f32.mrb[0].mxu0
  %v2836 = vadd.f32 %v2547, %v2835
  %v2837 = vpop.f32.mrb[0].mxu0
  %2838 = vmatprep.mubr.bf16.mxu0 %v1528
  %2839 = vmatmul.mubr.bf16.gmra.mrb[0].mxu0 %v1527
  %v2840 = vpop.f32.mrb[0].mxu0
  %v2841 = vadd.f32 %v2552, %v2840
  %v2842 = vpop.f32.mrb[0].mxu0
  %v2843 = vpop.f32.mrb[0].mxu0
  %v2844 = vadd.f32 %v2555, %v2843
  %v2845 = vpop.f32.mrb[0].mxu0
  %2846 = vmatprep.mubr.bf16.mxu0 %v1537
  %2847 = vmatmul.mubr.bf16.gmra.mrb[0].mxu0 %v1536
  %v2848 = vpop.f32.mrb[0].mxu0
  %v2849 = vadd.f32 %v2560, %v2848
  %v2850 = vpop.f32.mrb[0].mxu0
  %v2851 = vpop.f32.mrb[0].mxu0
  %v2852 = vadd.f32 %v2563, %v2851
  %v2853 = vpop.f32.mrb[0].mxu0
  %2854 = vmatprep.mubr.bf16.mxu0 %v1546
  %2855 = vmatmul.mubr.bf16.gmra.mrb[0].mxu0 %v1545
  %v2856 = vpop.f32.mrb[0].mxu0
  %v2857 = vadd.f32 %v2568, %v2856
  %v2858 = vpop.f32.mrb[0].mxu0
  %v2859 = vpop.f32.mrb[0].mxu0
  %v2860 = vadd.f32 %v2571, %v2859
  %v2861 = vpop.f32.mrb[0].mxu0
  %2862 = vmatprep.mubr.bf16.mxu0 %v1555
  %2863 = vmatmul.mubr.bf16.gmra.mrb[0].mxu0 %v1554
  %v2864 = vpop.f32.mrb[0].mxu0
  %v2865 = vadd.f32 %v2576, %v2864
  %v2866 = vpop.f32.mrb[0].mxu0
  %v2867 = vpop.f32.mrb[0].mxu0
  %v2868 = vadd.f32 %v2579, %v2867
  %v2869 = vpop.f32.mrb[0].mxu0
  %2870 = vmatprep.mubr.bf16.mxu0 %v1564
  %2871 = vmatmul.mubr.bf16.gmra.mrb[0].mxu0 %v1563
  %v2872 = vpop.f32.mrb[0].mxu0
  %v2873 = vadd.f32 %v2584, %v2872
  %v2874 = vpop.f32.mrb[0].mxu0
  %v2875 = vpop.f32.mrb[0].mxu0
  %v2876 = vadd.f32 %v2587, %v2875
  %v2877 = vpop.f32.mrb[0].mxu0
  %2878 = vmatprep.mubr.bf16.mxu0 %v1573
  %2879 = vmatmul.mubr.bf16.gmra.mrb[0].mxu0 %v1572
  %v2880 = vpop.f32.mrb[0].mxu0
  %v2881 = vadd.f32 %v2592, %v2880
  %v2882 = vpop.f32.mrb[0].mxu0
  %v2883 = vpop.f32.mrb[0].mxu0
  %v2884 = vadd.f32 %v2595, %v2883
  %v2885 = vpop.f32.mrb[0].mxu0
  %2886 = vmatprep.mubr.bf16.mxu0 %v1582
  %2887 = vmatmul.mubr.bf16.gmra.mrb[0].mxu0 %v1581
  %v2888 = vpop.f32.mrb[0].mxu0
  %v2889 = vadd.f32 %v2600, %v2888
  %v2890 = vpop.f32.mrb[0].mxu0
  %v2891 = vpop.f32.mrb[0].mxu0
  %v2892 = vadd.f32 %v2603, %v2891
  %v2893 = vpop.f32.mrb[0].mxu0
  %2894 = vmatprep.mubr.bf16.mxu0 %v1591
  %2895 = vmatmul.mubr.bf16.gmra.mrb[0].mxu0 %v1590
  %v2896 = vpop.f32.mrb[0].mxu0
  %v2897 = vadd.f32 %v2608, %v2896
  %v2898 = vpop.f32.mrb[0].mxu0
  %v2899 = vpop.f32.mrb[0].mxu0
  %v2900 = vadd.f32 %v2611, %v2899
  %v2901 = vpop.f32.mrb[0].mxu0
  %2902 = vmatprep.mubr.bf16.mxu0 %v1600
  %2903 = vmatmul.mubr.bf16.gmra.mrb[0].mxu0 %v1599
  %v2904 = vpop.f32.mrb[0].mxu0
  %v2905 = vadd.f32 %v2616, %v2904
  %v2906 = vpop.f32.mrb[0].mxu0
  %v2907 = vpop.f32.mrb[0].mxu0
  %v2908 = vadd.f32 %v2619, %v2907
  %v2909 = vpop.f32.mrb[0].mxu0
  %2910 = vmatprep.mubr.bf16.mxu0 %v1609
  %2911 = vmatmul.mubr.bf16.gmra.mrb[0].mxu0 %v1608
  %v2912 = vpop.f32.mrb[0].mxu0
  %v2913 = vadd.f32 %v2624, %v2912
  %v2914 = vpop.f32.mrb[0].mxu0
  %v2915 = vpop.f32.mrb[0].mxu0
  %v2916 = vadd.f32 %v2627, %v2915
  %v2917 = vpop.f32.mrb[0].mxu0
  %2918 = vmatprep.mubr.bf16.mxu0 %v1618
  %2919 = vmatmul.mubr.bf16.gmra.mrb[0].mxu0 %v1617
  %v2920 = vpop.f32.mrb[0].mxu0
  %v2921 = vadd.f32 %v2632, %v2920
  %v2922 = vpop.f32.mrb[0].mxu0
  %v2923 = vpop.f32.mrb[0].mxu0
  %v2924 = vadd.f32 %v2635, %v2923
  %v2925 = vpop.f32.mrb[0].mxu0
  %2926 = vmatprep.mubr.bf16.mxu0 %v1627
  %2927 = vmatmul.mubr.bf16.gmra.mrb[0].mxu0 %v1626
  %v2928 = vpop.f32.mrb[0].mxu0
  %v2929 = vadd.f32 %v2640, %v2928
  %v2930 = vpop.f32.mrb[0].mxu0
  %v2931 = vpop.f32.mrb[0].mxu0
  %v2932 = vadd.f32 %v2643, %v2931
  %v2933 = vpop.f32.mrb[0].mxu0
  %2934 = vmatprep.mubr.bf16.mxu0 %v1636
  %2935 = vmatmul.mubr.bf16.gmra.mrb[0].mxu0 %v1635
  %v2936 = vpop.f32.mrb[0].mxu0
  %v2937 = vadd.f32 %v2648, %v2936
  %v2938 = vpop.f32.mrb[0].mxu0
  %v2939 = vpop.f32.mrb[0].mxu0
  %v2940 = vadd.f32 %v2651, %v2939
  %v2941 = vpop.f32.mrb[0].mxu0
  %2942 = vmatprep.mubr.bf16.mxu0 %v1645
  %2943 = vmatmul.mubr.bf16.gmra.mrb[0].mxu0 %v1644
  %v2944 = vpop.f32.mrb[0].mxu0
  %v2945 = vadd.f32 %v2656, %v2944
  %v2946 = vpop.f32.mrb[0].mxu0
  %v2947 = vpop.f32.mrb[0].mxu0
  %v2948 = vadd.f32 %v2659, %v2947
  %v2949 = vpop.f32.mrb[0].mxu0
  %2950 = vmatprep.mubr.bf16.mxu0 %v1654
  %2951 = vmatmul.mubr.bf16.gmra.mrb[0].mxu0 %v1653
  %v2952 = vpop.f32.mrb[0].mxu0
  %v2953 = vadd.f32 %v2664, %v2952
  %v2954 = vpop.f32.mrb[0].mxu0
  %v2955 = vpop.f32.mrb[0].mxu0
  %v2956 = vadd.f32 %v2667, %v2955
  %v2957 = vpop.f32.mrb[0].mxu0
  %2958 = vmatprep.mubr.bf16.mxu0 %v1663
  %2959 = vmatmul.mubr.bf16.gmra.mrb[0].mxu0 %v1662
  %v2960 = vpop.f32.mrb[0].mxu0
  %v2961 = vadd.f32 %v2672, %v2960
  %v2962 = vpop.f32.mrb[0].mxu0
  %v2963 = vpop.f32.mrb[0].mxu0
  %v2964 = vadd.f32 %v2675, %v2963
  %v2965 = vpop.f32.mrb[0].mxu0
  %2966 = vdwg.mxu0
  %2967 = vmatprep.subr.bf16.mxu0 0
  %2968 = vmatpush1.bf16.msra.mxu0 %v2277
  %2969 = vmatprep.subr.bf16.mxu0 0
  %2970 = vmatpush1.bf16.msra.mxu0 %v2278
  %2971 = vmatprep.subr.bf16.mxu0 0
  %2972 = vmatpush1.bf16.msra.mxu0 %v2279
  %2973 = vmatprep.subr.bf16.mxu0 0
  %2974 = vmatpush1.bf16.msra.mxu0 %v2280
  %2975 = vmatprep.subr.bf16.mxu0 0
  %2976 = vmatpush1.bf16.msra.mxu0 %v2281
  %2977 = vmatprep.subr.bf16.mxu0 0
  %2978 = vmatpush1.bf16.msra.mxu0 %v2282
  %2979 = vmatprep.subr.bf16.mxu0 0
  %2980 = vmatpush1.bf16.msra.mxu0 %v2283
  %2981 = vmatprep.subr.bf16.mxu0 0
  %2982 = vmatpush1.bf16.msra.mxu0 %v2284
  %2983 = vmatprep.subr.bf16.mxu0 0
  %2984 = vmatpush1.bf16.msra.mxu0 %v2285
  %2985 = vmatprep.subr.bf16.mxu0 0
  %2986 = vmatpush1.bf16.msra.mxu0 %v2286
  %2987 = vmatprep.subr.bf16.mxu0 0
  %2988 = vmatpush1.bf16.msra.mxu0 %v2287
  %2989 = vmatprep.subr.bf16.mxu0 0
  %2990 = vmatpush1.bf16.msra.mxu0 %v2288
  %2991 = vmatprep.subr.bf16.mxu0 0
  %2992 = vmatpush1.bf16.msra.mxu0 %v2289
  %2993 = vmatprep.subr.bf16.mxu0 0
  %2994 = vmatpush1.bf16.msra.mxu0 %v2290
  %2995 = vmatprep.subr.bf16.mxu0 0
  %2996 = vmatpush1.bf16.msra.mxu0 %v2291
  %2997 = vmatprep.subr.bf16.mxu0 0
  %2998 = vmatpush1.bf16.msra.mxu0 %v2292
  %2999 = vmatprep.mubr.bf16.mxu0 %v1386
  %3000 = vmatmul.mubr.bf16.gmra.mrb[0].mxu0 %v1385
  %v3001 = vpop.f32.mrb[0].mxu0
  %v3002 = vadd.f32 %v2713, %v3001
  %v3003 = vpop.f32.mrb[0].mxu0
  %v3004 = vpop.f32.mrb[0].mxu0
  %v3005 = vadd.f32 %v2716, %v3004
  %v3006 = vpop.f32.mrb[0].mxu0
  %3007 = vmatprep.mubr.bf16.mxu0 %v1395
  %3008 = vmatmul.mubr.bf16.gmra.mrb[0].mxu0 %v1394
  %v3009 = vpop.f32.mrb[0].mxu0
  %v3010 = vadd.f32 %v2721, %v3009
  %v3011 = vpop.f32.mrb[0].mxu0
  %v3012 = vpop.f32.mrb[0].mxu0
  %v3013 = vadd.f32 %v2724, %v3012
  %v3014 = vpop.f32.mrb[0].mxu0
  %3015 = vmatprep.mubr.bf16.mxu0 %v1404
  %3016 = vmatmul.mubr.bf16.gmra.mrb[0].mxu0 %v1403
  %v3017 = vpop.f32.mrb[0].mxu0
  %v3018 = vadd.f32 %v2729, %v3017
  %v3019 = vpop.f32.mrb[0].mxu0
  %v3020 = vpop.f32.mrb[0].mxu0
  %v3021 = vadd.f32 %v2732, %v3020
  %v3022 = vpop.f32.mrb[0].mxu0
  %3023 = vmatprep.mubr.bf16.mxu0 %v1413
  %3024 = vmatmul.mubr.bf16.gmra.mrb[0].mxu0 %v1412
  %v3025 = vpop.f32.mrb[0].mxu0
  %v3026 = vadd.f32 %v2737, %v3025
  %v3027 = vpop.f32.mrb[0].mxu0
  %v3028 = vpop.f32.mrb[0].mxu0
  %v3029 = vadd.f32 %v2740, %v3028
  %v3030 = vpop.f32.mrb[0].mxu0
  %3031 = vmatprep.mubr.bf16.mxu0 %v1422
  %3032 = vmatmul.mubr.bf16.gmra.mrb[0].mxu0 %v1421
  %v3033 = vpop.f32.mrb[0].mxu0
  %v3034 = vadd.f32 %v2745, %v3033
  %v3035 = vpop.f32.mrb[0].mxu0
  %v3036 = vpop.f32.mrb[0].mxu0
  %v3037 = vadd.f32 %v2748, %v3036
  %v3038 = vpop.f32.mrb[0].mxu0
  %3039 = vmatprep.mubr.bf16.mxu0 %v1431
  %3040 = vmatmul.mubr.bf16.gmra.mrb[0].mxu0 %v1430
  %v3041 = vpop.f32.mrb[0].mxu0
  %v3042 = vadd.f32 %v2753, %v3041
  %v3043 = vpop.f32.mrb[0].mxu0
  %v3044 = vpop.f32.mrb[0].mxu0
  %v3045 = vadd.f32 %v2756, %v3044
  %v3046 = vpop.f32.mrb[0].mxu0
  %3047 = vmatprep.mubr.bf16.mxu0 %v1440
  %3048 = vmatmul.mubr.bf16.gmra.mrb[0].mxu0 %v1439
  %v3049 = vpop.f32.mrb[0].mxu0
  %v3050 = vadd.f32 %v2761, %v3049
  %v3051 = vpop.f32.mrb[0].mxu0
  %v3052 = vpop.f32.mrb[0].mxu0
  %v3053 = vadd.f32 %v2764, %v3052
  %v3054 = vpop.f32.mrb[0].mxu0
  %3055 = vmatprep.mubr.bf16.mxu0 %v1449
  %3056 = vmatmul.mubr.bf16.gmra.mrb[0].mxu0 %v1448
  %v3057 = vpop.f32.mrb[0].mxu0
  %v3058 = vadd.f32 %v2769, %v3057
  %v3059 = vpop.f32.mrb[0].mxu0
  %v3060 = vpop.f32.mrb[0].mxu0
  %v3061 = vadd.f32 %v2772, %v3060
  %v3062 = vpop.f32.mrb[0].mxu0
  %3063 = vmatprep.mubr.bf16.mxu0 %v1458
  %3064 = vmatmul.mubr.bf16.gmra.mrb[0].mxu0 %v1457
  %v3065 = vpop.f32.mrb[0].mxu0
  %v3066 = vadd.f32 %v2777, %v3065
  %v3067 = vpop.f32.mrb[0].mxu0
  %v3068 = vpop.f32.mrb[0].mxu0
  %v3069 = vadd.f32 %v2780, %v3068
  %v3070 = vpop.f32.mrb[0].mxu0
  %3071 = vmatprep.mubr.bf16.mxu0 %v1467
  %3072 = vmatmul.mubr.bf16.gmra.mrb[0].mxu0 %v1466
  %v3073 = vpop.f32.mrb[0].mxu0
  %v3074 = vadd.f32 %v2785, %v3073
  %v3075 = vpop.f32.mrb[0].mxu0
  %v3076 = vpop.f32.mrb[0].mxu0
  %v3077 = vadd.f32 %v2788, %v3076
  %v3078 = vpop.f32.mrb[0].mxu0
  %3079 = vmatprep.mubr.bf16.mxu0 %v1476
  %3080 = vmatmul.mubr.bf16.gmra.mrb[0].mxu0 %v1475
  %v3081 = vpop.f32.mrb[0].mxu0
  %v3082 = vadd.f32 %v2793, %v3081
  %v3083 = vpop.f32.mrb[0].mxu0
  %v3084 = vpop.f32.mrb[0].mxu0
  %v3085 = vadd.f32 %v2796, %v3084
  %v3086 = vpop.f32.mrb[0].mxu0
  %3087 = vmatprep.mubr.bf16.mxu0 %v1485
  %3088 = vmatmul.mubr.bf16.gmra.mrb[0].mxu0 %v1484
  %v3089 = vpop.f32.mrb[0].mxu0
  %v3090 = vadd.f32 %v2801, %v3089
  %v3091 = vpop.f32.mrb[0].mxu0
  %v3092 = vpop.f32.mrb[0].mxu0
  %v3093 = vadd.f32 %v2804, %v3092
  %v3094 = vpop.f32.mrb[0].mxu0
  %3095 = vmatprep.mubr.bf16.mxu0 %v1494
  %3096 = vmatmul.mubr.bf16.gmra.mrb[0].mxu0 %v1493
  %v3097 = vpop.f32.mrb[0].mxu0
  %v3098 = vadd.f32 %v2809, %v3097
  %v3099 = vpop.f32.mrb[0].mxu0
  %v3100 = vpop.f32.mrb[0].mxu0
  %v3101 = vadd.f32 %v2812, %v3100
  %v3102 = vpop.f32.mrb[0].mxu0
  %3103 = vmatprep.mubr.bf16.mxu0 %v1503
  %3104 = vmatmul.mubr.bf16.gmra.mrb[0].mxu0 %v1502
  %v3105 = vpop.f32.mrb[0].mxu0
  %v3106 = vadd.f32 %v2817, %v3105
  %v3107 = vpop.f32.mrb[0].mxu0
  %v3108 = vpop.f32.mrb[0].mxu0
  %v3109 = vadd.f32 %v2820, %v3108
  %v3110 = vpop.f32.mrb[0].mxu0
  %3111 = vmatprep.mubr.bf16.mxu0 %v1512
  %3112 = vmatmul.mubr.bf16.gmra.mrb[0].mxu0 %v1511
  %v3113 = vpop.f32.mrb[0].mxu0
  %v3114 = vadd.f32 %v2825, %v3113
  %v3115 = vpop.f32.mrb[0].mxu0
  %v3116 = vpop.f32.mrb[0].mxu0
  %v3117 = vadd.f32 %v2828, %v3116
  %v3118 = vpop.f32.mrb[0].mxu0
  %3119 = vmatprep.mubr.bf16.mxu0 %v1521
  %3120 = vmatmul.mubr.bf16.gmra.mrb[0].mxu0 %v1520
  %v3121 = vpop.f32.mrb[0].mxu0
  %v3122 = vadd.f32 %v2833, %v3121
  %v3123 = vpop.f32.mrb[0].mxu0
  %v3124 = vpop.f32.mrb[0].mxu0
  %v3125 = vadd.f32 %v2836, %v3124
  %v3126 = vpop.f32.mrb[0].mxu0
  %3127 = vmatprep.mubr.bf16.mxu0 %v1530
  %3128 = vmatmul.mubr.bf16.gmra.mrb[0].mxu0 %v1529
  %v3129 = vpop.f32.mrb[0].mxu0
  %v3130 = vadd.f32 %v2841, %v3129
  %v3131 = vpop.f32.mrb[0].mxu0
  %v3132 = vpop.f32.mrb[0].mxu0
  %v3133 = vadd.f32 %v2844, %v3132
  %v3134 = vpop.f32.mrb[0].mxu0
  %3135 = vmatprep.mubr.bf16.mxu0 %v1539
  %3136 = vmatmul.mubr.bf16.gmra.mrb[0].mxu0 %v1538
  %v3137 = vpop.f32.mrb[0].mxu0
  %v3138 = vadd.f32 %v2849, %v3137
  %v3139 = vpop.f32.mrb[0].mxu0
  %v3140 = vpop.f32.mrb[0].mxu0
  %v3141 = vadd.f32 %v2852, %v3140
  %v3142 = vpop.f32.mrb[0].mxu0
  %3143 = vmatprep.mubr.bf16.mxu0 %v1548
  %3144 = vmatmul.mubr.bf16.gmra.mrb[0].mxu0 %v1547
  %v3145 = vpop.f32.mrb[0].mxu0
  %v3146 = vadd.f32 %v2857, %v3145
  %v3147 = vpop.f32.mrb[0].mxu0
  %v3148 = vpop.f32.mrb[0].mxu0
  %v3149 = vadd.f32 %v2860, %v3148
  %v3150 = vpop.f32.mrb[0].mxu0
  %3151 = vmatprep.mubr.bf16.mxu0 %v1557
  %3152 = vmatmul.mubr.bf16.gmra.mrb[0].mxu0 %v1556
  %v3153 = vpop.f32.mrb[0].mxu0
  %v3154 = vadd.f32 %v2865, %v3153
  %v3155 = vpop.f32.mrb[0].mxu0
  %v3156 = vpop.f32.mrb[0].mxu0
  %v3157 = vadd.f32 %v2868, %v3156
  %v3158 = vpop.f32.mrb[0].mxu0
  %3159 = vmatprep.mubr.bf16.mxu0 %v1566
  %3160 = vmatmul.mubr.bf16.gmra.mrb[0].mxu0 %v1565
  %v3161 = vpop.f32.mrb[0].mxu0
  %v3162 = vadd.f32 %v2873, %v3161
  %v3163 = vpop.f32.mrb[0].mxu0
  %v3164 = vpop.f32.mrb[0].mxu0
  %v3165 = vadd.f32 %v2876, %v3164
  %v3166 = vpop.f32.mrb[0].mxu0
  %3167 = vmatprep.mubr.bf16.mxu0 %v1575
  %3168 = vmatmul.mubr.bf16.gmra.mrb[0].mxu0 %v1574
  %v3169 = vpop.f32.mrb[0].mxu0
  %v3170 = vadd.f32 %v2881, %v3169
  %v3171 = vpop.f32.mrb[0].mxu0
  %v3172 = vpop.f32.mrb[0].mxu0
  %v3173 = vadd.f32 %v2884, %v3172
  %v3174 = vpop.f32.mrb[0].mxu0
  %3175 = vmatprep.mubr.bf16.mxu0 %v1584
  %3176 = vmatmul.mubr.bf16.gmra.mrb[0].mxu0 %v1583
  %v3177 = vpop.f32.mrb[0].mxu0
  %v3178 = vadd.f32 %v2889, %v3177
  %v3179 = vpop.f32.mrb[0].mxu0
  %v3180 = vpop.f32.mrb[0].mxu0
  %v3181 = vadd.f32 %v2892, %v3180
  %v3182 = vpop.f32.mrb[0].mxu0
  %3183 = vmatprep.mubr.bf16.mxu0 %v1593
  %3184 = vmatmul.mubr.bf16.gmra.mrb[0].mxu0 %v1592
  %v3185 = vpop.f32.mrb[0].mxu0
  %v3186 = vadd.f32 %v2897, %v3185
  %v3187 = vpop.f32.mrb[0].mxu0
  %v3188 = vpop.f32.mrb[0].mxu0
  %v3189 = vadd.f32 %v2900, %v3188
  %v3190 = vpop.f32.mrb[0].mxu0
  %3191 = vmatprep.mubr.bf16.mxu0 %v1602
  %3192 = vmatmul.mubr.bf16.gmra.mrb[0].mxu0 %v1601
  %v3193 = vpop.f32.mrb[0].mxu0
  %v3194 = vadd.f32 %v2905, %v3193
  %v3195 = vpop.f32.mrb[0].mxu0
  %v3196 = vpop.f32.mrb[0].mxu0
  %v3197 = vadd.f32 %v2908, %v3196
  %v3198 = vpop.f32.mrb[0].mxu0
  %3199 = vmatprep.mubr.bf16.mxu0 %v1611
  %3200 = vmatmul.mubr.bf16.gmra.mrb[0].mxu0 %v1610
  %v3201 = vpop.f32.mrb[0].mxu0
  %v3202 = vadd.f32 %v2913, %v3201
  %v3203 = vpop.f32.mrb[0].mxu0
  %v3204 = vpop.f32.mrb[0].mxu0
  %v3205 = vadd.f32 %v2916, %v3204
  %v3206 = vpop.f32.mrb[0].mxu0
  %3207 = vmatprep.mubr.bf16.mxu0 %v1620
  %3208 = vmatmul.mubr.bf16.gmra.mrb[0].mxu0 %v1619
  %v3209 = vpop.f32.mrb[0].mxu0
  %v3210 = vadd.f32 %v2921, %v3209
  %v3211 = vpop.f32.mrb[0].mxu0
  %v3212 = vpop.f32.mrb[0].mxu0
  %v3213 = vadd.f32 %v2924, %v3212
  %v3214 = vpop.f32.mrb[0].mxu0
  %3215 = vmatprep.mubr.bf16.mxu0 %v1629
  %3216 = vmatmul.mubr.bf16.gmra.mrb[0].mxu0 %v1628
  %v3217 = vpop.f32.mrb[0].mxu0
  %v3218 = vadd.f32 %v2929, %v3217
  %v3219 = vpop.f32.mrb[0].mxu0
  %v3220 = vpop.f32.mrb[0].mxu0
  %v3221 = vadd.f32 %v2932, %v3220
  %v3222 = vpop.f32.mrb[0].mxu0
  %3223 = vmatprep.mubr.bf16.mxu0 %v1638
  %3224 = vmatmul.mubr.bf16.gmra.mrb[0].mxu0 %v1637
  %v3225 = vpop.f32.mrb[0].mxu0
  %v3226 = vadd.f32 %v2937, %v3225
  %v3227 = vpop.f32.mrb[0].mxu0
  %v3228 = vpop.f32.mrb[0].mxu0
  %v3229 = vadd.f32 %v2940, %v3228
  %v3230 = vpop.f32.mrb[0].mxu0
  %3231 = vmatprep.mubr.bf16.mxu0 %v1647
  %3232 = vmatmul.mubr.bf16.gmra.mrb[0].mxu0 %v1646
  %v3233 = vpop.f32.mrb[0].mxu0
  %v3234 = vadd.f32 %v2945, %v3233
  %v3235 = vpop.f32.mrb[0].mxu0
  %v3236 = vpop.f32.mrb[0].mxu0
  %v3237 = vadd.f32 %v2948, %v3236
  %v3238 = vpop.f32.mrb[0].mxu0
  %3239 = vmatprep.mubr.bf16.mxu0 %v1656
  %3240 = vmatmul.mubr.bf16.gmra.mrb[0].mxu0 %v1655
  %v3241 = vpop.f32.mrb[0].mxu0
  %v3242 = vadd.f32 %v2953, %v3241
  %v3243 = vpop.f32.mrb[0].mxu0
  %v3244 = vpop.f32.mrb[0].mxu0
  %v3245 = vadd.f32 %v2956, %v3244
  %v3246 = vpop.f32.mrb[0].mxu0
  %3247 = vmatprep.mubr.bf16.mxu0 %v1665
  %3248 = vmatmul.mubr.bf16.gmra.mrb[0].mxu0 %v1664
  %v3249 = vpop.f32.mrb[0].mxu0
  %v3250 = vadd.f32 %v2961, %v3249
  %v3251 = vpop.f32.mrb[0].mxu0
  %v3252 = vpop.f32.mrb[0].mxu0
  %v3253 = vadd.f32 %v2964, %v3252
  %v3254 = vpop.f32.mrb[0].mxu0
  %3255 = vdwg.mxu0
  %3256 = vmatprep.subr.bf16.mxu0 0
  %3257 = vmatpush1.bf16.msra.mxu0 %v2293
  %3258 = vmatprep.subr.bf16.mxu0 0
  %3259 = vmatpush1.bf16.msra.mxu0 %v2294
  %3260 = vmatprep.subr.bf16.mxu0 0
  %3261 = vmatpush1.bf16.msra.mxu0 %v2295
  %3262 = vmatprep.subr.bf16.mxu0 0
  %3263 = vmatpush1.bf16.msra.mxu0 %v2296
  %3264 = vmatprep.subr.bf16.mxu0 0
  %3265 = vmatpush1.bf16.msra.mxu0 %v2297
  %3266 = vmatprep.subr.bf16.mxu0 0
  %3267 = vmatpush1.bf16.msra.mxu0 %v2298
  %3268 = vmatprep.subr.bf16.mxu0 0
  %3269 = vmatpush1.bf16.msra.mxu0 %v2299
  %3270 = vmatprep.subr.bf16.mxu0 0
  %3271 = vmatpush1.bf16.msra.mxu0 %v2300
  %3272 = vmatprep.subr.bf16.mxu0 0
  %3273 = vmatpush1.bf16.msra.mxu0 %v2301
  %3274 = vmatprep.subr.bf16.mxu0 0
  %3275 = vmatpush1.bf16.msra.mxu0 %v2302
  %3276 = vmatprep.subr.bf16.mxu0 0
  %3277 = vmatpush1.bf16.msra.mxu0 %v2303
  %3278 = vmatprep.subr.bf16.mxu0 0
  %3279 = vmatpush1.bf16.msra.mxu0 %v2304
  %3280 = vmatprep.subr.bf16.mxu0 0
  %3281 = vmatpush1.bf16.msra.mxu0 %v2305
  %3282 = vmatprep.subr.bf16.mxu0 0
  %3283 = vmatpush1.bf16.msra.mxu0 %v2306
  %3284 = vmatprep.subr.bf16.mxu0 0
  %3285 = vmatpush1.bf16.msra.mxu0 %v2307
  %3286 = vmatprep.subr.bf16.mxu0 0
  %3287 = vmatpush1.bf16.msra.mxu0 %v2308
  %3288 = vmatprep.mubr.bf16.mxu0 %v1388
  %3289 = vmatmul.mubr.bf16.gmra.mrb[0].mxu0 %v1387
  %v3290 = vpop.f32.mrb[0].mxu0
  %v3291 = vadd.f32 %v3002, %v3290
  %v3292 = vpop.f32.mrb[0].mxu0
  %v3293 = vpop.f32.mrb[0].mxu0
  %v3294 = vadd.f32 %v3005, %v3293
  %v3295 = vpop.f32.mrb[0].mxu0
  %3296 = vmatprep.mubr.bf16.mxu0 %v1397
  %3297 = vmatmul.mubr.bf16.gmra.mrb[0].mxu0 %v1396
  %v3298 = vpop.f32.mrb[0].mxu0
  %v3299 = vadd.f32 %v3010, %v3298
  %v3300 = vpop.f32.mrb[0].mxu0
  %v3301 = vpop.f32.mrb[0].mxu0
  %v3302 = vadd.f32 %v3013, %v3301
  %v3303 = vpop.f32.mrb[0].mxu0
  %3304 = vmatprep.mubr.bf16.mxu0 %v1406
  %3305 = vmatmul.mubr.bf16.gmra.mrb[0].mxu0 %v1405
  %v3306 = vpop.f32.mrb[0].mxu0
  %v3307 = vadd.f32 %v3018, %v3306
  %v3308 = vpop.f32.mrb[0].mxu0
  %v3309 = vpop.f32.mrb[0].mxu0
  %v3310 = vadd.f32 %v3021, %v3309
  %v3311 = vpop.f32.mrb[0].mxu0
  %3312 = vmatprep.mubr.bf16.mxu0 %v1415
  %3313 = vmatmul.mubr.bf16.gmra.mrb[0].mxu0 %v1414
  %v3314 = vpop.f32.mrb[0].mxu0
  %v3315 = vadd.f32 %v3026, %v3314
  %v3316 = vpop.f32.mrb[0].mxu0
  %v3317 = vpop.f32.mrb[0].mxu0
  %v3318 = vadd.f32 %v3029, %v3317
  %v3319 = vpop.f32.mrb[0].mxu0
  %3320 = vmatprep.mubr.bf16.mxu0 %v1424
  %3321 = vmatmul.mubr.bf16.gmra.mrb[0].mxu0 %v1423
  %v3322 = vpop.f32.mrb[0].mxu0
  %v3323 = vadd.f32 %v3034, %v3322
  %v3324 = vpop.f32.mrb[0].mxu0
  %v3325 = vpop.f32.mrb[0].mxu0
  %v3326 = vadd.f32 %v3037, %v3325
  %v3327 = vpop.f32.mrb[0].mxu0
  %3328 = vmatprep.mubr.bf16.mxu0 %v1433
  %3329 = vmatmul.mubr.bf16.gmra.mrb[0].mxu0 %v1432
  %v3330 = vpop.f32.mrb[0].mxu0
  %v3331 = vadd.f32 %v3042, %v3330
  %v3332 = vpop.f32.mrb[0].mxu0
  %v3333 = vpop.f32.mrb[0].mxu0
  %v3334 = vadd.f32 %v3045, %v3333
  %v3335 = vpop.f32.mrb[0].mxu0
  %3336 = vmatprep.mubr.bf16.mxu0 %v1442
  %3337 = vmatmul.mubr.bf16.gmra.mrb[0].mxu0 %v1441
  %v3338 = vpop.f32.mrb[0].mxu0
  %v3339 = vadd.f32 %v3050, %v3338
  %v3340 = vpop.f32.mrb[0].mxu0
  %v3341 = vpop.f32.mrb[0].mxu0
  %v3342 = vadd.f32 %v3053, %v3341
  %v3343 = vpop.f32.mrb[0].mxu0
  %3344 = vmatprep.mubr.bf16.mxu0 %v1451
  %3345 = vmatmul.mubr.bf16.gmra.mrb[0].mxu0 %v1450
  %v3346 = vpop.f32.mrb[0].mxu0
  %v3347 = vadd.f32 %v3058, %v3346
  %v3348 = vpop.f32.mrb[0].mxu0
  %v3349 = vpop.f32.mrb[0].mxu0
  %v3350 = vadd.f32 %v3061, %v3349
  %v3351 = vpop.f32.mrb[0].mxu0
  %3352 = vmatprep.mubr.bf16.mxu0 %v1460
  %3353 = vmatmul.mubr.bf16.gmra.mrb[0].mxu0 %v1459
  %v3354 = vpop.f32.mrb[0].mxu0
  %v3355 = vadd.f32 %v3066, %v3354
  %v3356 = vpop.f32.mrb[0].mxu0
  %v3357 = vpop.f32.mrb[0].mxu0
  %v3358 = vadd.f32 %v3069, %v3357
  %v3359 = vpop.f32.mrb[0].mxu0
  %3360 = vmatprep.mubr.bf16.mxu0 %v1469
  %3361 = vmatmul.mubr.bf16.gmra.mrb[0].mxu0 %v1468
  %v3362 = vpop.f32.mrb[0].mxu0
  %v3363 = vadd.f32 %v3074, %v3362
  %v3364 = vpop.f32.mrb[0].mxu0
  %v3365 = vpop.f32.mrb[0].mxu0
  %v3366 = vadd.f32 %v3077, %v3365
  %v3367 = vpop.f32.mrb[0].mxu0
  %3368 = vmatprep.mubr.bf16.mxu0 %v1478
  %3369 = vmatmul.mubr.bf16.gmra.mrb[0].mxu0 %v1477
  %v3370 = vpop.f32.mrb[0].mxu0
  %v3371 = vadd.f32 %v3082, %v3370
  %v3372 = vpop.f32.mrb[0].mxu0
  %v3373 = vpop.f32.mrb[0].mxu0
  %v3374 = vadd.f32 %v3085, %v3373
  %v3375 = vpop.f32.mrb[0].mxu0
  %3376 = vmatprep.mubr.bf16.mxu0 %v1487
  %3377 = vmatmul.mubr.bf16.gmra.mrb[0].mxu0 %v1486
  %v3378 = vpop.f32.mrb[0].mxu0
  %v3379 = vadd.f32 %v3090, %v3378
  %v3380 = vpop.f32.mrb[0].mxu0
  %v3381 = vpop.f32.mrb[0].mxu0
  %v3382 = vadd.f32 %v3093, %v3381
  %v3383 = vpop.f32.mrb[0].mxu0
  %3384 = vmatprep.mubr.bf16.mxu0 %v1496
  %3385 = vmatmul.mubr.bf16.gmra.mrb[0].mxu0 %v1495
  %v3386 = vpop.f32.mrb[0].mxu0
  %v3387 = vadd.f32 %v3098, %v3386
  %v3388 = vpop.f32.mrb[0].mxu0
  %v3389 = vpop.f32.mrb[0].mxu0
  %v3390 = vadd.f32 %v3101, %v3389
  %v3391 = vpop.f32.mrb[0].mxu0
  %3392 = vmatprep.mubr.bf16.mxu0 %v1505
  %3393 = vmatmul.mubr.bf16.gmra.mrb[0].mxu0 %v1504
  %v3394 = vpop.f32.mrb[0].mxu0
  %v3395 = vadd.f32 %v3106, %v3394
  %v3396 = vpop.f32.mrb[0].mxu0
  %v3397 = vpop.f32.mrb[0].mxu0
  %v3398 = vadd.f32 %v3109, %v3397
  %v3399 = vpop.f32.mrb[0].mxu0
  %3400 = vmatprep.mubr.bf16.mxu0 %v1514
  %3401 = vmatmul.mubr.bf16.gmra.mrb[0].mxu0 %v1513
  %v3402 = vpop.f32.mrb[0].mxu0
  %v3403 = vadd.f32 %v3114, %v3402
  %v3404 = vpop.f32.mrb[0].mxu0
  %v3405 = vpop.f32.mrb[0].mxu0
  %v3406 = vadd.f32 %v3117, %v3405
  %v3407 = vpop.f32.mrb[0].mxu0
  %3408 = vmatprep.mubr.bf16.mxu0 %v1523
  %3409 = vmatmul.mubr.bf16.gmra.mrb[0].mxu0 %v1522
  %v3410 = vpop.f32.mrb[0].mxu0
  %v3411 = vadd.f32 %v3122, %v3410
  %v3412 = vpop.f32.mrb[0].mxu0
  %v3413 = vpop.f32.mrb[0].mxu0
  %v3414 = vadd.f32 %v3125, %v3413
  %v3415 = vpop.f32.mrb[0].mxu0
  %3416 = vmatprep.mubr.bf16.mxu0 %v1532
  %3417 = vmatmul.mubr.bf16.gmra.mrb[0].mxu0 %v1531
  %v3418 = vpop.f32.mrb[0].mxu0
  %v3419 = vadd.f32 %v3130, %v3418
  %v3420 = vpop.f32.mrb[0].mxu0
  %v3421 = vpop.f32.mrb[0].mxu0
  %v3422 = vadd.f32 %v3133, %v3421
  %v3423 = vpop.f32.mrb[0].mxu0
  %3424 = vmatprep.mubr.bf16.mxu0 %v1541
  %3425 = vmatmul.mubr.bf16.gmra.mrb[0].mxu0 %v1540
  %v3426 = vpop.f32.mrb[0].mxu0
  %v3427 = vadd.f32 %v3138, %v3426
  %v3428 = vpop.f32.mrb[0].mxu0
  %v3429 = vpop.f32.mrb[0].mxu0
  %v3430 = vadd.f32 %v3141, %v3429
  %v3431 = vpop.f32.mrb[0].mxu0
  %3432 = vmatprep.mubr.bf16.mxu0 %v1550
  %3433 = vmatmul.mubr.bf16.gmra.mrb[0].mxu0 %v1549
  %v3434 = vpop.f32.mrb[0].mxu0
  %v3435 = vadd.f32 %v3146, %v3434
  %v3436 = vpop.f32.mrb[0].mxu0
  %v3437 = vpop.f32.mrb[0].mxu0
  %v3438 = vadd.f32 %v3149, %v3437
  %v3439 = vpop.f32.mrb[0].mxu0
  %3440 = vmatprep.mubr.bf16.mxu0 %v1559
  %3441 = vmatmul.mubr.bf16.gmra.mrb[0].mxu0 %v1558
  %v3442 = vpop.f32.mrb[0].mxu0
  %v3443 = vadd.f32 %v3154, %v3442
  %v3444 = vpop.f32.mrb[0].mxu0
  %v3445 = vpop.f32.mrb[0].mxu0
  %v3446 = vadd.f32 %v3157, %v3445
  %v3447 = vpop.f32.mrb[0].mxu0
  %3448 = vmatprep.mubr.bf16.mxu0 %v1568
  %3449 = vmatmul.mubr.bf16.gmra.mrb[0].mxu0 %v1567
  %v3450 = vpop.f32.mrb[0].mxu0
  %v3451 = vadd.f32 %v3162, %v3450
  %v3452 = vpop.f32.mrb[0].mxu0
  %v3453 = vpop.f32.mrb[0].mxu0
  %v3454 = vadd.f32 %v3165, %v3453
  %v3455 = vpop.f32.mrb[0].mxu0
  %3456 = vmatprep.mubr.bf16.mxu0 %v1577
  %3457 = vmatmul.mubr.bf16.gmra.mrb[0].mxu0 %v1576
  %v3458 = vpop.f32.mrb[0].mxu0
  %v3459 = vadd.f32 %v3170, %v3458
  %v3460 = vpop.f32.mrb[0].mxu0
  %v3461 = vpop.f32.mrb[0].mxu0
  %v3462 = vadd.f32 %v3173, %v3461
  %v3463 = vpop.f32.mrb[0].mxu0
  %3464 = vmatprep.mubr.bf16.mxu0 %v1586
  %3465 = vmatmul.mubr.bf16.gmra.mrb[0].mxu0 %v1585
  %v3466 = vpop.f32.mrb[0].mxu0
  %v3467 = vadd.f32 %v3178, %v3466
  %v3468 = vpop.f32.mrb[0].mxu0
  %v3469 = vpop.f32.mrb[0].mxu0
  %v3470 = vadd.f32 %v3181, %v3469
  %v3471 = vpop.f32.mrb[0].mxu0
  %3472 = vmatprep.mubr.bf16.mxu0 %v1595
  %3473 = vmatmul.mubr.bf16.gmra.mrb[0].mxu0 %v1594
  %v3474 = vpop.f32.mrb[0].mxu0
  %v3475 = vadd.f32 %v3186, %v3474
  %v3476 = vpop.f32.mrb[0].mxu0
  %v3477 = vpop.f32.mrb[0].mxu0
  %v3478 = vadd.f32 %v3189, %v3477
  %v3479 = vpop.f32.mrb[0].mxu0
  %3480 = vmatprep.mubr.bf16.mxu0 %v1604
  %3481 = vmatmul.mubr.bf16.gmra.mrb[0].mxu0 %v1603
  %v3482 = vpop.f32.mrb[0].mxu0
  %v3483 = vadd.f32 %v3194, %v3482
  %v3484 = vpop.f32.mrb[0].mxu0
  %v3485 = vpop.f32.mrb[0].mxu0
  %v3486 = vadd.f32 %v3197, %v3485
  %v3487 = vpop.f32.mrb[0].mxu0
  %3488 = vmatprep.mubr.bf16.mxu0 %v1613
  %3489 = vmatmul.mubr.bf16.gmra.mrb[0].mxu0 %v1612
  %v3490 = vpop.f32.mrb[0].mxu0
  %v3491 = vadd.f32 %v3202, %v3490
  %v3492 = vpop.f32.mrb[0].mxu0
  %v3493 = vpop.f32.mrb[0].mxu0
  %v3494 = vadd.f32 %v3205, %v3493
  %v3495 = vpop.f32.mrb[0].mxu0
  %3496 = vmatprep.mubr.bf16.mxu0 %v1622
  %3497 = vmatmul.mubr.bf16.gmra.mrb[0].mxu0 %v1621
  %v3498 = vpop.f32.mrb[0].mxu0
  %v3499 = vadd.f32 %v3210, %v3498
  %v3500 = vpop.f32.mrb[0].mxu0
  %v3501 = vpop.f32.mrb[0].mxu0
  %v3502 = vadd.f32 %v3213, %v3501
  %v3503 = vpop.f32.mrb[0].mxu0
  %3504 = vmatprep.mubr.bf16.mxu0 %v1631
  %3505 = vmatmul.mubr.bf16.gmra.mrb[0].mxu0 %v1630
  %v3506 = vpop.f32.mrb[0].mxu0
  %v3507 = vadd.f32 %v3218, %v3506
  %v3508 = vpop.f32.mrb[0].mxu0
  %v3509 = vpop.f32.mrb[0].mxu0
  %v3510 = vadd.f32 %v3221, %v3509
  %v3511 = vpop.f32.mrb[0].mxu0
  %3512 = vmatprep.mubr.bf16.mxu0 %v1640
  %3513 = vmatmul.mubr.bf16.gmra.mrb[0].mxu0 %v1639
  %v3514 = vpop.f32.mrb[0].mxu0
  %v3515 = vadd.f32 %v3226, %v3514
  %v3516 = vpop.f32.mrb[0].mxu0
  %v3517 = vpop.f32.mrb[0].mxu0
  %v3518 = vadd.f32 %v3229, %v3517
  %v3519 = vpop.f32.mrb[0].mxu0
  %3520 = vmatprep.mubr.bf16.mxu0 %v1649
  %3521 = vmatmul.mubr.bf16.gmra.mrb[0].mxu0 %v1648
  %v3522 = vpop.f32.mrb[0].mxu0
  %v3523 = vadd.f32 %v3234, %v3522
  %v3524 = vpop.f32.mrb[0].mxu0
  %v3525 = vpop.f32.mrb[0].mxu0
  %v3526 = vadd.f32 %v3237, %v3525
  %v3527 = vpop.f32.mrb[0].mxu0
  %3528 = vmatprep.mubr.bf16.mxu0 %v1658
  %3529 = vmatmul.mubr.bf16.gmra.mrb[0].mxu0 %v1657
  %v3530 = vpop.f32.mrb[0].mxu0
  %v3531 = vadd.f32 %v3242, %v3530
  %v3532 = vpop.f32.mrb[0].mxu0
  %v3533 = vpop.f32.mrb[0].mxu0
  %v3534 = vadd.f32 %v3245, %v3533
  %v3535 = vpop.f32.mrb[0].mxu0
  %3536 = vmatprep.mubr.bf16.mxu0 %v1667
  %3537 = vmatmul.mubr.bf16.gmra.mrb[0].mxu0 %v1666
  %v3538 = vpop.f32.mrb[0].mxu0
  %v3539 = vadd.f32 %v3250, %v3538
  %v3540 = vpop.f32.mrb[0].mxu0
  %v3541 = vpop.f32.mrb[0].mxu0
  %v3542 = vadd.f32 %v3253, %v3541
  %v3543 = vpop.f32.mrb[0].mxu0
  %3544 = vdwg.mxu0
  %3545 = vmatprep.subr.bf16.mxu0 0
  %3546 = vmatpush1.bf16.msra.mxu0 %v2309
  %3547 = vmatprep.subr.bf16.mxu0 0
  %3548 = vmatpush1.bf16.msra.mxu0 %v2310
  %3549 = vmatprep.subr.bf16.mxu0 0
  %3550 = vmatpush1.bf16.msra.mxu0 %v2311
  %3551 = vmatprep.subr.bf16.mxu0 0
  %3552 = vmatpush1.bf16.msra.mxu0 %v2312
  %3553 = vmatprep.subr.bf16.mxu0 0
  %3554 = vmatpush1.bf16.msra.mxu0 %v2313
  %3555 = vmatprep.subr.bf16.mxu0 0
  %3556 = vmatpush1.bf16.msra.mxu0 %v2314
  %3557 = vmatprep.subr.bf16.mxu0 0
  %3558 = vmatpush1.bf16.msra.mxu0 %v2315
  %3559 = vmatprep.subr.bf16.mxu0 0
  %3560 = vmatpush1.bf16.msra.mxu0 %v2316
  %3561 = vmatprep.subr.bf16.mxu0 0
  %3562 = vmatpush1.bf16.msra.mxu0 0
  %3563 = vmatprep.subr.bf16.mxu0 0
  %3564 = vmatpush1.bf16.msra.mxu0 0
  %3565 = vmatprep.subr.bf16.mxu0 0
  %3566 = vmatpush1.bf16.msra.mxu0 0
  %3567 = vmatprep.subr.bf16.mxu0 0
  %3568 = vmatpush1.bf16.msra.mxu0 0
  %3569 = vmatprep.subr.bf16.mxu0 0
  %3570 = vmatpush1.bf16.msra.mxu0 0
  %3571 = vmatprep.subr.bf16.mxu0 0
  %3572 = vmatpush1.bf16.msra.mxu0 0
  %3573 = vmatprep.subr.bf16.mxu0 0
  %3574 = vmatpush1.bf16.msra.mxu0 0
  %3575 = vmatprep.subr.bf16.mxu0 0
  %3576 = vmatpush1.bf16.msra.mxu0 0
  %3577 = vmatprep.mubr.bf16.mxu0 0
  %3578 = vmatmul.mubr.bf16.gmra.mrb[0].mxu0 %v1389
  %v3579 = vpop.f32.mrb[0].mxu0
  %v3580 = vadd.f32 %v3291, %v3579
  %v3581 = vpop.f32.mrb[0].mxu0
  %v3582 = vpop.f32.mrb[0].mxu0
  %v3583 = vadd.f32 %v3294, %v3582
  %v3584 = vpop.f32.mrb[0].mxu0
  %3585 = vmatprep.mubr.bf16.mxu0 0
  %3586 = vmatmul.mubr.bf16.gmra.mrb[0].mxu0 %v1398
  %v3587 = vpop.f32.mrb[0].mxu0
  %v3588 = vadd.f32 %v3299, %v3587
  %v3589 = vpop.f32.mrb[0].mxu0
  %v3590 = vpop.f32.mrb[0].mxu0
  %v3591 = vadd.f32 %v3302, %v3590
  %v3592 = vpop.f32.mrb[0].mxu0
  %3593 = vmatprep.mubr.bf16.mxu0 0
  %3594 = vmatmul.mubr.bf16.gmra.mrb[0].mxu0 %v1407
  %v3595 = vpop.f32.mrb[0].mxu0
  %v3596 = vadd.f32 %v3307, %v3595
  %v3597 = vpop.f32.mrb[0].mxu0
  %v3598 = vpop.f32.mrb[0].mxu0
  %v3599 = vadd.f32 %v3310, %v3598
  %v3600 = vpop.f32.mrb[0].mxu0
  %3601 = vmatprep.mubr.bf16.mxu0 0
  %3602 = vmatmul.mubr.bf16.gmra.mrb[0].mxu0 %v1416
  %v3603 = vpop.f32.mrb[0].mxu0
  %v3604 = vadd.f32 %v3315, %v3603
  %v3605 = vpop.f32.mrb[0].mxu0
  %v3606 = vpop.f32.mrb[0].mxu0
  %v3607 = vadd.f32 %v3318, %v3606
  %v3608 = vpop.f32.mrb[0].mxu0
  %3609 = vmatprep.mubr.bf16.mxu0 0
  %3610 = vmatmul.mubr.bf16.gmra.mrb[0].mxu0 %v1425
  %v3611 = vpop.f32.mrb[0].mxu0
  %v3612 = vadd.f32 %v3323, %v3611
  %v3613 = vpop.f32.mrb[0].mxu0
  %v3614 = vpop.f32.mrb[0].mxu0
  %v3615 = vadd.f32 %v3326, %v3614
  %v3616 = vpop.f32.mrb[0].mxu0
  %3617 = vmatprep.mubr.bf16.mxu0 0
  %3618 = vmatmul.mubr.bf16.gmra.mrb[0].mxu0 %v1434
  %v3619 = vpop.f32.mrb[0].mxu0
  %v3620 = vadd.f32 %v3331, %v3619
  %v3621 = vpop.f32.mrb[0].mxu0
  %v3622 = vpop.f32.mrb[0].mxu0
  %v3623 = vadd.f32 %v3334, %v3622
  %v3624 = vpop.f32.mrb[0].mxu0
  %3625 = vmatprep.mubr.bf16.mxu0 0
  %3626 = vmatmul.mubr.bf16.gmra.mrb[0].mxu0 %v1443
  %v3627 = vpop.f32.mrb[0].mxu0
  %v3628 = vadd.f32 %v3339, %v3627
  %v3629 = vpop.f32.mrb[0].mxu0
  %v3630 = vpop.f32.mrb[0].mxu0
  %v3631 = vadd.f32 %v3342, %v3630
  %v3632 = vpop.f32.mrb[0].mxu0
  %3633 = vmatprep.mubr.bf16.mxu0 0
  %3634 = vmatmul.mubr.bf16.gmra.mrb[0].mxu0 %v1452
  %v3635 = vpop.f32.mrb[0].mxu0
  %v3636 = vadd.f32 %v3347, %v3635
  %v3637 = vpop.f32.mrb[0].mxu0
  %v3638 = vpop.f32.mrb[0].mxu0
  %v3639 = vadd.f32 %v3350, %v3638
  %v3640 = vpop.f32.mrb[0].mxu0
  %3641 = vmatprep.mubr.bf16.mxu0 0
  %3642 = vmatmul.mubr.bf16.gmra.mrb[0].mxu0 %v1461
  %v3643 = vpop.f32.mrb[0].mxu0
  %v3644 = vadd.f32 %v3355, %v3643
  %v3645 = vpop.f32.mrb[0].mxu0
  %v3646 = vpop.f32.mrb[0].mxu0
  %v3647 = vadd.f32 %v3358, %v3646
  %v3648 = vpop.f32.mrb[0].mxu0
  %3649 = vmatprep.mubr.bf16.mxu0 0
  %3650 = vmatmul.mubr.bf16.gmra.mrb[0].mxu0 %v1470
  %v3651 = vpop.f32.mrb[0].mxu0
  %v3652 = vadd.f32 %v3363, %v3651
  %v3653 = vpop.f32.mrb[0].mxu0
  %v3654 = vpop.f32.mrb[0].mxu0
  %v3655 = vadd.f32 %v3366, %v3654
  %v3656 = vpop.f32.mrb[0].mxu0
  %3657 = vmatprep.mubr.bf16.mxu0 0
  %3658 = vmatmul.mubr.bf16.gmra.mrb[0].mxu0 %v1479
  %v3659 = vpop.f32.mrb[0].mxu0
  %v3660 = vadd.f32 %v3371, %v3659
  %v3661 = vpop.f32.mrb[0].mxu0
  %v3662 = vpop.f32.mrb[0].mxu0
  %v3663 = vadd.f32 %v3374, %v3662
  %v3664 = vpop.f32.mrb[0].mxu0
  %3665 = vmatprep.mubr.bf16.mxu0 0
  %3666 = vmatmul.mubr.bf16.gmra.mrb[0].mxu0 %v1488
  %v3667 = vpop.f32.mrb[0].mxu0
  %v3668 = vadd.f32 %v3379, %v3667
  %v3669 = vpop.f32.mrb[0].mxu0
  %v3670 = vpop.f32.mrb[0].mxu0
  %v3671 = vadd.f32 %v3382, %v3670
  %v3672 = vpop.f32.mrb[0].mxu0
  %3673 = vmatprep.mubr.bf16.mxu0 0
  %3674 = vmatmul.mubr.bf16.gmra.mrb[0].mxu0 %v1497
  %v3675 = vpop.f32.mrb[0].mxu0
  %v3676 = vadd.f32 %v3387, %v3675
  %v3677 = vpop.f32.mrb[0].mxu0
  %v3678 = vpop.f32.mrb[0].mxu0
  %v3679 = vadd.f32 %v3390, %v3678
  %v3680 = vpop.f32.mrb[0].mxu0
  %3681 = vmatprep.mubr.bf16.mxu0 0
  %3682 = vmatmul.mubr.bf16.gmra.mrb[0].mxu0 %v1506
  %v3683 = vpop.f32.mrb[0].mxu0
  %v3684 = vadd.f32 %v3395, %v3683
  %v3685 = vpop.f32.mrb[0].mxu0
  %v3686 = vpop.f32.mrb[0].mxu0
  %v3687 = vadd.f32 %v3398, %v3686
  %v3688 = vpop.f32.mrb[0].mxu0
  %3689 = vmatprep.mubr.bf16.mxu0 0
  %3690 = vmatmul.mubr.bf16.gmra.mrb[0].mxu0 %v1515
  %v3691 = vpop.f32.mrb[0].mxu0
  %v3692 = vadd.f32 %v3403, %v3691
  %v3693 = vpop.f32.mrb[0].mxu0
  %v3694 = vpop.f32.mrb[0].mxu0
  %v3695 = vadd.f32 %v3406, %v3694
  %v3696 = vpop.f32.mrb[0].mxu0
  %3697 = vmatprep.mubr.bf16.mxu0 0
  %3698 = vmatmul.mubr.bf16.gmra.mrb[0].mxu0 %v1524
  %v3699 = vpop.f32.mrb[0].mxu0
  %v3700 = vadd.f32 %v3411, %v3699
  %v3701 = vpop.f32.mrb[0].mxu0
  %v3702 = vpop.f32.mrb[0].mxu0
  %v3703 = vadd.f32 %v3414, %v3702
  %v3704 = vpop.f32.mrb[0].mxu0
  %3705 = vmatprep.mubr.bf16.mxu0 0
  %3706 = vmatmul.mubr.bf16.gmra.mrb[0].mxu0 %v1533
  %v3707 = vpop.f32.mrb[0].mxu0
  %v3708 = vadd.f32 %v3419, %v3707
  %v3709 = vpop.f32.mrb[0].mxu0
  %v3710 = vpop.f32.mrb[0].mxu0
  %v3711 = vadd.f32 %v3422, %v3710
  %v3712 = vpop.f32.mrb[0].mxu0
  %3713 = vmatprep.mubr.bf16.mxu0 0
  %3714 = vmatmul.mubr.bf16.gmra.mrb[0].mxu0 %v1542
  %v3715 = vpop.f32.mrb[0].mxu0
  %v3716 = vadd.f32 %v3427, %v3715
  %v3717 = vpop.f32.mrb[0].mxu0
  %v3718 = vpop.f32.mrb[0].mxu0
  %v3719 = vadd.f32 %v3430, %v3718
  %v3720 = vpop.f32.mrb[0].mxu0
  %3721 = vmatprep.mubr.bf16.mxu0 0
  %3722 = vmatmul.mubr.bf16.gmra.mrb[0].mxu0 %v1551
  %v3723 = vpop.f32.mrb[0].mxu0
  %v3724 = vadd.f32 %v3435, %v3723
  %v3725 = vpop.f32.mrb[0].mxu0
  %v3726 = vpop.f32.mrb[0].mxu0
  %v3727 = vadd.f32 %v3438, %v3726
  %v3728 = vpop.f32.mrb[0].mxu0
  %3729 = vmatprep.mubr.bf16.mxu0 0
  %3730 = vmatmul.mubr.bf16.gmra.mrb[0].mxu0 %v1560
  %v3731 = vpop.f32.mrb[0].mxu0
  %v3732 = vadd.f32 %v3443, %v3731
  %v3733 = vpop.f32.mrb[0].mxu0
  %v3734 = vpop.f32.mrb[0].mxu0
  %v3735 = vadd.f32 %v3446, %v3734
  %v3736 = vpop.f32.mrb[0].mxu0
  %3737 = vmatprep.mubr.bf16.mxu0 0
  %3738 = vmatmul.mubr.bf16.gmra.mrb[0].mxu0 %v1569
  %v3739 = vpop.f32.mrb[0].mxu0
  %v3740 = vadd.f32 %v3451, %v3739
  %v3741 = vpop.f32.mrb[0].mxu0
  %v3742 = vpop.f32.mrb[0].mxu0
  %v3743 = vadd.f32 %v3454, %v3742
  %v3744 = vpop.f32.mrb[0].mxu0
  %3745 = vmatprep.mubr.bf16.mxu0 0
  %3746 = vmatmul.mubr.bf16.gmra.mrb[0].mxu0 %v1578
  %v3747 = vpop.f32.mrb[0].mxu0
  %v3748 = vadd.f32 %v3459, %v3747
  %v3749 = vpop.f32.mrb[0].mxu0
  %v3750 = vpop.f32.mrb[0].mxu0
  %v3751 = vadd.f32 %v3462, %v3750
  %v3752 = vpop.f32.mrb[0].mxu0
  %3753 = vmatprep.mubr.bf16.mxu0 0
  %3754 = vmatmul.mubr.bf16.gmra.mrb[0].mxu0 %v1587
  %v3755 = vpop.f32.mrb[0].mxu0
  %v3756 = vadd.f32 %v3467, %v3755
  %v3757 = vpop.f32.mrb[0].mxu0
  %v3758 = vpop.f32.mrb[0].mxu0
  %v3759 = vadd.f32 %v3470, %v3758
  %v3760 = vpop.f32.mrb[0].mxu0
  %3761 = vmatprep.mubr.bf16.mxu0 0
  %3762 = vmatmul.mubr.bf16.gmra.mrb[0].mxu0 %v1596
  %v3763 = vpop.f32.mrb[0].mxu0
  %v3764 = vadd.f32 %v3475, %v3763
  %v3765 = vpop.f32.mrb[0].mxu0
  %v3766 = vpop.f32.mrb[0].mxu0
  %v3767 = vadd.f32 %v3478, %v3766
  %v3768 = vpop.f32.mrb[0].mxu0
  %3769 = vmatprep.mubr.bf16.mxu0 0
  %3770 = vmatmul.mubr.bf16.gmra.mrb[0].mxu0 %v1605
  %v3771 = vpop.f32.mrb[0].mxu0
  %v3772 = vadd.f32 %v3483, %v3771
  %v3773 = vpop.f32.mrb[0].mxu0
  %v3774 = vpop.f32.mrb[0].mxu0
  %v3775 = vadd.f32 %v3486, %v3774
  %v3776 = vpop.f32.mrb[0].mxu0
  %3777 = vmatprep.mubr.bf16.mxu0 0
  %3778 = vmatmul.mubr.bf16.gmra.mrb[0].mxu0 %v1614
  %v3779 = vpop.f32.mrb[0].mxu0
  %v3780 = vadd.f32 %v3491, %v3779
  %v3781 = vpop.f32.mrb[0].mxu0
  %v3782 = vpop.f32.mrb[0].mxu0
  %v3783 = vadd.f32 %v3494, %v3782
  %v3784 = vpop.f32.mrb[0].mxu0
  %3785 = vmatprep.mubr.bf16.mxu0 0
  %3786 = vmatmul.mubr.bf16.gmra.mrb[0].mxu0 %v1623
  %v3787 = vpop.f32.mrb[0].mxu0
  %v3788 = vadd.f32 %v3499, %v3787
  %v3789 = vpop.f32.mrb[0].mxu0
  %v3790 = vpop.f32.mrb[0].mxu0
  %v3791 = vadd.f32 %v3502, %v3790
  %v3792 = vpop.f32.mrb[0].mxu0
  %3793 = vmatprep.mubr.bf16.mxu0 0
  %3794 = vmatmul.mubr.bf16.gmra.mrb[0].mxu0 %v1632
  %v3795 = vpop.f32.mrb[0].mxu0
  %v3796 = vadd.f32 %v3507, %v3795
  %v3797 = vpop.f32.mrb[0].mxu0
  %v3798 = vpop.f32.mrb[0].mxu0
  %v3799 = vadd.f32 %v3510, %v3798
  %v3800 = vpop.f32.mrb[0].mxu0
  %3801 = vmatprep.mubr.bf16.mxu0 0
  %3802 = vmatmul.mubr.bf16.gmra.mrb[0].mxu0 %v1641
  %v3803 = vpop.f32.mrb[0].mxu0
  %v3804 = vadd.f32 %v3515, %v3803
  %v3805 = vpop.f32.mrb[0].mxu0
  %v3806 = vpop.f32.mrb[0].mxu0
  %v3807 = vadd.f32 %v3518, %v3806
  %v3808 = vpop.f32.mrb[0].mxu0
  %3809 = vmatprep.mubr.bf16.mxu0 0
  %3810 = vmatmul.mubr.bf16.gmra.mrb[0].mxu0 %v1650
  %v3811 = vpop.f32.mrb[0].mxu0
  %v3812 = vadd.f32 %v3523, %v3811
  %v3813 = vpop.f32.mrb[0].mxu0
  %v3814 = vpop.f32.mrb[0].mxu0
  %v3815 = vadd.f32 %v3526, %v3814
  %v3816 = vpop.f32.mrb[0].mxu0
  %3817 = vmatprep.mubr.bf16.mxu0 0
  %3818 = vmatmul.mubr.bf16.gmra.mrb[0].mxu0 %v1659
  %v3819 = vpop.f32.mrb[0].mxu0
  %v3820 = vadd.f32 %v3531, %v3819
  %v3821 = vpop.f32.mrb[0].mxu0
  %v3822 = vpop.f32.mrb[0].mxu0
  %v3823 = vadd.f32 %v3534, %v3822
  %v3824 = vpop.f32.mrb[0].mxu0
  %3825 = vmatprep.mubr.bf16.mxu0 0
  %3826 = vmatmul.mubr.bf16.gmra.mrb[0].mxu0 %v1668
  %v3827 = vpop.f32.mrb[0].mxu0
  %v3828 = vadd.f32 %v3539, %v3827
  %v3829 = vpop.f32.mrb[0].mxu0
  %v3830 = vpop.f32.mrb[0].mxu0
  %v3831 = vadd.f32 %v3542, %v3830
  %v3832 = vpop.f32.mrb[0].mxu0
  %3833 = vdwg.mxu0
  %v3834 = vadd.f32 %v3580, %v3583
  %v3835 = vadd.f32 %v3834, %v3588
  %v3836 = vadd.f32 %v3835, %v3591
  %v3837 = vadd.f32 %v3836, %v3596
  %v3838 = vadd.f32 %v3837, %v3599
  %v3839 = vadd.f32 %v3838, %v3604
  %v3840 = vadd.f32 %v3839, %v3607
  %v3841 = vadd.f32 %v3840, %v3612
  %v3842 = vadd.f32 %v3841, %v3615
  %v3843 = vadd.f32 %v3842, %v3620
  %v3844 = vadd.f32 %v3843, %v3623
  %v3845 = vadd.f32 %v3844, %v3628
  %v3846 = vadd.f32 %v3845, %v3631
  %v3847 = vadd.f32 %v3846, %v3636
  %v3848 = vadd.f32 %v3847, %v3639
  %v3849 = vadd.f32 %v3848, %v3644
  %v3850 = vadd.f32 %v3849, %v3647
  %v3851 = vadd.f32 %v3850, %v3652
  %v3852 = vadd.f32 %v3851, %v3655
  %v3853 = vadd.f32 %v3852, %v3660
  %v3854 = vadd.f32 %v3853, %v3663
  %v3855 = vadd.f32 %v3854, %v3668
  %v3856 = vadd.f32 %v3855, %v3671
  %v3857 = vadd.f32 %v3856, %v3676
  %v3858 = vadd.f32 %v3857, %v3679
  %v3859 = vadd.f32 %v3858, %v3684
  %v3860 = vadd.f32 %v3859, %v3687
  %v3861 = vadd.f32 %v3860, %v3692
  %v3862 = vadd.f32 %v3861, %v3695
  %v3863 = vadd.f32 %v3862, %v3700
  %v3864 = vadd.f32 %v3863, %v3703
  %v3865 = vadd.f32 %v3864, %v3708
  %v3866 = vadd.f32 %v3865, %v3711
  %v3867 = vadd.f32 %v3866, %v3716
  %v3868 = vadd.f32 %v3867, %v3719
  %v3869 = vadd.f32 %v3868, %v3724
  %v3870 = vadd.f32 %v3869, %v3727
  %v3871 = vadd.f32 %v3870, %v3732
  %v3872 = vadd.f32 %v3871, %v3735
  %v3873 = vadd.f32 %v3872, %v3740
  %v3874 = vadd.f32 %v3873, %v3743
  %v3875 = vadd.f32 %v3874, %v3748
  %v3876 = vadd.f32 %v3875, %v3751
  %v3877 = vadd.f32 %v3876, %v3756
  %v3878 = vadd.f32 %v3877, %v3759
  %v3879 = vadd.f32 %v3878, %v3764
  %v3880 = vadd.f32 %v3879, %v3767
  %v3881 = vadd.f32 %v3880, %v3772
  %v3882 = vadd.f32 %v3881, %v3775
  %v3883 = vadd.f32 %v3882, %v3780
  %v3884 = vadd.f32 %v3883, %v3783
  %v3885 = vadd.f32 %v3884, %v3788
  %v3886 = vadd.f32 %v3885, %v3791
  %v3887 = vadd.f32 %v3886, %v3796
  %v3888 = vadd.f32 %v3887, %v3799
  %v3889 = vadd.f32 %v3888, %v3804
  %v3890 = vadd.f32 %v3889, %v3807
  %v3891 = vadd.f32 %v3890, %v3812
  %v3892 = vadd.f32 %v3891, %v3815
  %v3893 = vadd.f32 %v3892, %v3820
  %v3894 = vadd.f32 %v3893, %v3823
  %v3895 = vadd.f32 %v3894, %v3828
  %v3896 = vadd.f32 %v3895, %v3831
  %v3897 = vrot.slane %v3896, 4
  %v3898 = vadd.f32 %v3896, %v3897
  %v3899 = vrot.slane %v3898, 2
  %v3900 = vadd.f32 %v3898, %v3899
  %v3901 = vrot.slane %v3900, 1
  %v3902 = vadd.f32 %v3900, %v3901
  %v3903 = vrcp.pop 512.0
  %v3904 = vmul.f32 %v3902, %v3903
  %v3905 = vsub.f32 %v3580, %v3904
  %v3906 = vsub.f32 %v3583, %v3904
  %v3907 = vsub.f32 %v3588, %v3904
  %v3908 = vsub.f32 %v3591, %v3904
  %v3909 = vsub.f32 %v3596, %v3904
  %v3910 = vsub.f32 %v3599, %v3904
  %v3911 = vsub.f32 %v3604, %v3904
  %v3912 = vsub.f32 %v3607, %v3904
  %v3913 = vsub.f32 %v3612, %v3904
  %v3914 = vsub.f32 %v3615, %v3904
  %v3915 = vsub.f32 %v3620, %v3904
  %v3916 = vsub.f32 %v3623, %v3904
  %v3917 = vsub.f32 %v3628, %v3904
  %v3918 = vsub.f32 %v3631, %v3904
  %v3919 = vsub.f32 %v3636, %v3904
  %v3920 = vsub.f32 %v3639, %v3904
  %v3921 = vsub.f32 %v3644, %v3904
  %v3922 = vsub.f32 %v3647, %v3904
  %v3923 = vsub.f32 %v3652, %v3904
  %v3924 = vsub.f32 %v3655, %v3904
  %v3925 = vsub.f32 %v3660, %v3904
  %v3926 = vsub.f32 %v3663, %v3904
  %v3927 = vsub.f32 %v3668, %v3904
  %v3928 = vsub.f32 %v3671, %v3904
  %v3929 = vsub.f32 %v3676, %v3904
  %v3930 = vsub.f32 %v3679, %v3904
  %v3931 = vsub.f32 %v3684, %v3904
  %v3932 = vsub.f32 %v3687, %v3904
  %v3933 = vsub.f32 %v3692, %v3904
  %v3934 = vsub.f32 %v3695, %v3904
  %v3935 = vsub.f32 %v3700, %v3904
  %v3936 = vsub.f32 %v3703, %v3904
  %v3937 = vsub.f32 %v3708, %v3904
  %v3938 = vsub.f32 %v3711, %v3904
  %v3939 = vsub.f32 %v3716, %v3904
  %v3940 = vsub.f32 %v3719, %v3904
  %v3941 = vsub.f32 %v3724, %v3904
  %v3942 = vsub.f32 %v3727, %v3904
  %v3943 = vsub.f32 %v3732, %v3904
  %v3944 = vsub.f32 %v3735, %v3904
  %v3945 = vsub.f32 %v3740, %v3904
  %v3946 = vsub.f32 %v3743, %v3904
  %v3947 = vsub.f32 %v3748, %v3904
  %v3948 = vsub.f32 %v3751, %v3904
  %v3949 = vsub.f32 %v3756, %v3904
  %v3950 = vsub.f32 %v3759, %v3904
  %v3951 = vsub.f32 %v3764, %v3904
  %v3952 = vsub.f32 %v3767, %v3904
  %v3953 = vsub.f32 %v3772, %v3904
  %v3954 = vsub.f32 %v3775, %v3904
  %v3955 = vsub.f32 %v3780, %v3904
  %v3956 = vsub.f32 %v3783, %v3904
  %v3957 = vsub.f32 %v3788, %v3904
  %v3958 = vsub.f32 %v3791, %v3904
  %v3959 = vsub.f32 %v3796, %v3904
  %v3960 = vsub.f32 %v3799, %v3904
  %v3961 = vsub.f32 %v3804, %v3904
  %v3962 = vsub.f32 %v3807, %v3904
  %v3963 = vsub.f32 %v3812, %v3904
  %v3964 = vsub.f32 %v3815, %v3904
  %v3965 = vsub.f32 %v3820, %v3904
  %v3966 = vsub.f32 %v3823, %v3904
  %v3967 = vsub.f32 %v3828, %v3904
  %v3968 = vsub.f32 %v3831, %v3904
  %v3969 = vmul.f32 %v3905, %v3905
  %v3970 = vmul.f32 %v3906, %v3906
  %v3971 = vmul.f32 %v3907, %v3907
  %v3972 = vmul.f32 %v3908, %v3908
  %v3973 = vmul.f32 %v3909, %v3909
  %v3974 = vmul.f32 %v3910, %v3910
  %v3975 = vmul.f32 %v3911, %v3911
  %v3976 = vmul.f32 %v3912, %v3912
  %v3977 = vmul.f32 %v3913, %v3913
  %v3978 = vmul.f32 %v3914, %v3914
  %v3979 = vmul.f32 %v3915, %v3915
  %v3980 = vmul.f32 %v3916, %v3916
  %v3981 = vmul.f32 %v3917, %v3917
  %v3982 = vmul.f32 %v3918, %v3918
  %v3983 = vmul.f32 %v3919, %v3919
  %v3984 = vmul.f32 %v3920, %v3920
  %v3985 = vmul.f32 %v3921, %v3921
  %v3986 = vmul.f32 %v3922, %v3922
  %v3987 = vmul.f32 %v3923, %v3923
  %v3988 = vmul.f32 %v3924, %v3924
  %v3989 = vmul.f32 %v3925, %v3925
  %v3990 = vmul.f32 %v3926, %v3926
  %v3991 = vmul.f32 %v3927, %v3927
  %v3992 = vmul.f32 %v3928, %v3928
  %v3993 = vmul.f32 %v3929, %v3929
  %v3994 = vmul.f32 %v3930, %v3930
  %v3995 = vmul.f32 %v3931, %v3931
  %v3996 = vmul.f32 %v3932, %v3932
  %v3997 = vmul.f32 %v3933, %v3933
  %v3998 = vmul.f32 %v3934, %v3934
  %v3999 = vmul.f32 %v3935, %v3935
  %v4000 = vmul.f32 %v3936, %v3936
  %v4001 = vmul.f32 %v3937, %v3937
  %v4002 = vmul.f32 %v3938, %v3938
  %v4003 = vmul.f32 %v3939, %v3939
  %v4004 = vmul.f32 %v3940, %v3940
  %v4005 = vmul.f32 %v3941, %v3941
  %v4006 = vmul.f32 %v3942, %v3942
  %v4007 = vmul.f32 %v3943, %v3943
  %v4008 = vmul.f32 %v3944, %v3944
  %v4009 = vmul.f32 %v3945, %v3945
  %v4010 = vmul.f32 %v3946, %v3946
  %v4011 = vmul.f32 %v3947, %v3947
  %v4012 = vmul.f32 %v3948, %v3948
  %v4013 = vmul.f32 %v3949, %v3949
  %v4014 = vmul.f32 %v3950, %v3950
  %v4015 = vmul.f32 %v3951, %v3951
  %v4016 = vmul.f32 %v3952, %v3952
  %v4017 = vmul.f32 %v3953, %v3953
  %v4018 = vmul.f32 %v3954, %v3954
  %v4019 = vmul.f32 %v3955, %v3955
  %v4020 = vmul.f32 %v3956, %v3956
  %v4021 = vmul.f32 %v3957, %v3957
  %v4022 = vmul.f32 %v3958, %v3958
  %v4023 = vmul.f32 %v3959, %v3959
  %v4024 = vmul.f32 %v3960, %v3960
  %v4025 = vmul.f32 %v3961, %v3961
  %v4026 = vmul.f32 %v3962, %v3962
  %v4027 = vmul.f32 %v3963, %v3963
  %v4028 = vmul.f32 %v3964, %v3964
  %v4029 = vmul.f32 %v3965, %v3965
  %v4030 = vmul.f32 %v3966, %v3966
  %v4031 = vmul.f32 %v3967, %v3967
  %v4032 = vmul.f32 %v3968, %v3968
  %v4033 = vadd.f32 %v3969, %v3970
  %v4034 = vadd.f32 %v4033, %v3971
  %v4035 = vadd.f32 %v4034, %v3972
  %v4036 = vadd.f32 %v4035, %v3973
  %v4037 = vadd.f32 %v4036, %v3974
  %v4038 = vadd.f32 %v4037, %v3975
  %v4039 = vadd.f32 %v4038, %v3976
  %v4040 = vadd.f32 %v4039, %v3977
  %v4041 = vadd.f32 %v4040, %v3978
  %v4042 = vadd.f32 %v4041, %v3979
  %v4043 = vadd.f32 %v4042, %v3980
  %v4044 = vadd.f32 %v4043, %v3981
  %v4045 = vadd.f32 %v4044, %v3982
  %v4046 = vadd.f32 %v4045, %v3983
  %v4047 = vadd.f32 %v4046, %v3984
  %v4048 = vadd.f32 %v4047, %v3985
  %v4049 = vadd.f32 %v4048, %v3986
  %v4050 = vadd.f32 %v4049, %v3987
  %v4051 = vadd.f32 %v4050, %v3988
  %v4052 = vadd.f32 %v4051, %v3989
  %v4053 = vadd.f32 %v4052, %v3990
  %v4054 = vadd.f32 %v4053, %v3991
  %v4055 = vadd.f32 %v4054, %v3992
  %v4056 = vadd.f32 %v4055, %v3993
  %v4057 = vadd.f32 %v4056, %v3994
  %v4058 = vadd.f32 %v4057, %v3995
  %v4059 = vadd.f32 %v4058, %v3996
  %v4060 = vadd.f32 %v4059, %v3997
  %v4061 = vadd.f32 %v4060, %v3998
  %v4062 = vadd.f32 %v4061, %v3999
  %v4063 = vadd.f32 %v4062, %v4000
  %v4064 = vadd.f32 %v4063, %v4001
  %v4065 = vadd.f32 %v4064, %v4002
  %v4066 = vadd.f32 %v4065, %v4003
  %v4067 = vadd.f32 %v4066, %v4004
  %v4068 = vadd.f32 %v4067, %v4005
  %v4069 = vadd.f32 %v4068, %v4006
  %v4070 = vadd.f32 %v4069, %v4007
  %v4071 = vadd.f32 %v4070, %v4008
  %v4072 = vadd.f32 %v4071, %v4009
  %v4073 = vadd.f32 %v4072, %v4010
  %v4074 = vadd.f32 %v4073, %v4011
  %v4075 = vadd.f32 %v4074, %v4012
  %v4076 = vadd.f32 %v4075, %v4013
  %v4077 = vadd.f32 %v4076, %v4014
  %v4078 = vadd.f32 %v4077, %v4015
  %v4079 = vadd.f32 %v4078, %v4016
  %v4080 = vadd.f32 %v4079, %v4017
  %v4081 = vadd.f32 %v4080, %v4018
  %v4082 = vadd.f32 %v4081, %v4019
  %v4083 = vadd.f32 %v4082, %v4020
  %v4084 = vadd.f32 %v4083, %v4021
  %v4085 = vadd.f32 %v4084, %v4022
  %v4086 = vadd.f32 %v4085, %v4023
  %v4087 = vadd.f32 %v4086, %v4024
  %v4088 = vadd.f32 %v4087, %v4025
  %v4089 = vadd.f32 %v4088, %v4026
  %v4090 = vadd.f32 %v4089, %v4027
  %v4091 = vadd.f32 %v4090, %v4028
  %v4092 = vadd.f32 %v4091, %v4029
  %v4093 = vadd.f32 %v4092, %v4030
  %v4094 = vadd.f32 %v4093, %v4031
  %v4095 = vadd.f32 %v4094, %v4032
  %v4096 = vrot.slane %v4095, 4
  %v4097 = vadd.f32 %v4095, %v4096
  %v4098 = vrot.slane %v4097, 2
  %v4099 = vadd.f32 %v4097, %v4098
  %v4100 = vrot.slane %v4099, 1
  %v4101 = vadd.f32 %v4099, %v4100
  %v4102 = vmul.f32 %v4101, %v3903
  %v4103 = vadd.f32 %v4102, 1e-05
  %v4104 = vrsqrt.pop %v4103
  %v4105 = vmul.f32 %v3905, %v4104
  %v4106 = vmul.f32 %v3906, %v4104
  %v4107 = vmul.f32 %v3907, %v4104
  %v4108 = vmul.f32 %v3908, %v4104
  %v4109 = vmul.f32 %v3909, %v4104
  %v4110 = vmul.f32 %v3910, %v4104
  %v4111 = vmul.f32 %v3911, %v4104
  %v4112 = vmul.f32 %v3912, %v4104
  %v4113 = vmul.f32 %v3913, %v4104
  %v4114 = vmul.f32 %v3914, %v4104
  %v4115 = vmul.f32 %v3915, %v4104
  %v4116 = vmul.f32 %v3916, %v4104
  %v4117 = vmul.f32 %v3917, %v4104
  %v4118 = vmul.f32 %v3918, %v4104
  %v4119 = vmul.f32 %v3919, %v4104
  %v4120 = vmul.f32 %v3920, %v4104
  %v4121 = vmul.f32 %v3921, %v4104
  %v4122 = vmul.f32 %v3922, %v4104
  %v4123 = vmul.f32 %v3923, %v4104
  %v4124 = vmul.f32 %v3924, %v4104
  %v4125 = vmul.f32 %v3925, %v4104
  %v4126 = vmul.f32 %v3926, %v4104
  %v4127 = vmul.f32 %v3927, %v4104
  %v4128 = vmul.f32 %v3928, %v4104
  %v4129 = vmul.f32 %v3929, %v4104
  %v4130 = vmul.f32 %v3930, %v4104
  %v4131 = vmul.f32 %v3931, %v4104
  %v4132 = vmul.f32 %v3932, %v4104
  %v4133 = vmul.f32 %v3933, %v4104
  %v4134 = vmul.f32 %v3934, %v4104
  %v4135 = vmul.f32 %v3935, %v4104
  %v4136 = vmul.f32 %v3936, %v4104
  %v4137 = vmul.f32 %v3937, %v4104
  %v4138 = vmul.f32 %v3938, %v4104
  %v4139 = vmul.f32 %v3939, %v4104
  %v4140 = vmul.f32 %v3940, %v4104
  %v4141 = vmul.f32 %v3941, %v4104
  %v4142 = vmul.f32 %v3942, %v4104
  %v4143 = vmul.f32 %v3943, %v4104
  %v4144 = vmul.f32 %v3944, %v4104
  %v4145 = vmul.f32 %v3945, %v4104
  %v4146 = vmul.f32 %v3946, %v4104
  %v4147 = vmul.f32 %v3947, %v4104
  %v4148 = vmul.f32 %v3948, %v4104
  %v4149 = vmul.f32 %v3949, %v4104
  %v4150 = vmul.f32 %v3950, %v4104
  %v4151 = vmul.f32 %v3951, %v4104
  %v4152 = vmul.f32 %v3952, %v4104
  %v4153 = vmul.f32 %v3953, %v4104
  %v4154 = vmul.f32 %v3954, %v4104
  %v4155 = vmul.f32 %v3955, %v4104
  %v4156 = vmul.f32 %v3956, %v4104
  %v4157 = vmul.f32 %v3957, %v4104
  %v4158 = vmul.f32 %v3958, %v4104
  %v4159 = vmul.f32 %v3959, %v4104
  %v4160 = vmul.f32 %v3960, %v4104
  %v4161 = vmul.f32 %v3961, %v4104
  %v4162 = vmul.f32 %v3962, %v4104
  %v4163 = vmul.f32 %v3963, %v4104
  %v4164 = vmul.f32 %v3964, %v4104
  %v4165 = vmul.f32 %v3965, %v4104
  %v4166 = vmul.f32 %v3966, %v4104
  %v4167 = vmul.f32 %v3967, %v4104
  %v4168 = vmul.f32 %v3968, %v4104
  %v4169 = vld [vmem:[%s2] sm:$0x1]
  %v4171 = vlaneseq
  %v4172 = vshrl.u32 %v4171, 7
  %v4173 = vsub.s32 0, %v4172
  %v4174 = vrot.slane %v4169, %v4173
  %v4176 = vmul.f32 %v4105, %v4174
  %v4177 = vmul.f32 %v4106, %v4174
  %v4178 = vmul.f32 %v4107, %v4174
  %v4179 = vmul.f32 %v4108, %v4174
  %v4180 = vmul.f32 %v4109, %v4174
  %v4181 = vmul.f32 %v4110, %v4174
  %v4182 = vmul.f32 %v4111, %v4174
  %v4183 = vmul.f32 %v4112, %v4174
  %v4184 = vmul.f32 %v4113, %v4174
  %v4185 = vmul.f32 %v4114, %v4174
  %v4186 = vmul.f32 %v4115, %v4174
  %v4187 = vmul.f32 %v4116, %v4174
  %v4188 = vmul.f32 %v4117, %v4174
  %v4189 = vmul.f32 %v4118, %v4174
  %v4190 = vmul.f32 %v4119, %v4174
  %v4191 = vmul.f32 %v4120, %v4174
  %v4192 = vmul.f32 %v4121, %v4174
  %v4193 = vmul.f32 %v4122, %v4174
  %v4194 = vmul.f32 %v4123, %v4174
  %v4195 = vmul.f32 %v4124, %v4174
  %v4196 = vmul.f32 %v4125, %v4174
  %v4197 = vmul.f32 %v4126, %v4174
  %v4198 = vmul.f32 %v4127, %v4174
  %v4199 = vmul.f32 %v4128, %v4174
  %v4200 = vmul.f32 %v4129, %v4174
  %v4201 = vmul.f32 %v4130, %v4174
  %v4202 = vmul.f32 %v4131, %v4174
  %v4203 = vmul.f32 %v4132, %v4174
  %v4204 = vmul.f32 %v4133, %v4174
  %v4205 = vmul.f32 %v4134, %v4174
  %v4206 = vmul.f32 %v4135, %v4174
  %v4207 = vmul.f32 %v4136, %v4174
  %v4208 = vmul.f32 %v4137, %v4174
  %v4209 = vmul.f32 %v4138, %v4174
  %v4210 = vmul.f32 %v4139, %v4174
  %v4211 = vmul.f32 %v4140, %v4174
  %v4212 = vmul.f32 %v4141, %v4174
  %v4213 = vmul.f32 %v4142, %v4174
  %v4214 = vmul.f32 %v4143, %v4174
  %v4215 = vmul.f32 %v4144, %v4174
  %v4216 = vmul.f32 %v4145, %v4174
  %v4217 = vmul.f32 %v4146, %v4174
  %v4218 = vmul.f32 %v4147, %v4174
  %v4219 = vmul.f32 %v4148, %v4174
  %v4220 = vmul.f32 %v4149, %v4174
  %v4221 = vmul.f32 %v4150, %v4174
  %v4222 = vmul.f32 %v4151, %v4174
  %v4223 = vmul.f32 %v4152, %v4174
  %v4224 = vmul.f32 %v4153, %v4174
  %v4225 = vmul.f32 %v4154, %v4174
  %v4226 = vmul.f32 %v4155, %v4174
  %v4227 = vmul.f32 %v4156, %v4174
  %v4228 = vmul.f32 %v4157, %v4174
  %v4229 = vmul.f32 %v4158, %v4174
  %v4230 = vmul.f32 %v4159, %v4174
  %v4231 = vmul.f32 %v4160, %v4174
  %v4232 = vmul.f32 %v4161, %v4174
  %v4233 = vmul.f32 %v4162, %v4174
  %v4234 = vmul.f32 %v4163, %v4174
  %v4235 = vmul.f32 %v4164, %v4174
  %v4236 = vmul.f32 %v4165, %v4174
  %v4237 = vmul.f32 %v4166, %v4174
  %v4238 = vmul.f32 %v4167, %v4174
  %v4239 = vmul.f32 %v4168, %v4174
  %v4240 = vld [vmem:[%s3] sm:$0x1]
  %v4242 = vlaneseq
  %v4243 = vshrl.u32 %v4242, 7
  %v4244 = vsub.s32 0, %v4243
  %v4245 = vrot.slane %v4240, %v4244
  %v4247 = vadd.f32 %v4176, %v4245
  %v4248 = vadd.f32 %v4177, %v4245
  %v4249 = vadd.f32 %v4178, %v4245
  %v4250 = vadd.f32 %v4179, %v4245
  %v4251 = vadd.f32 %v4180, %v4245
  %v4252 = vadd.f32 %v4181, %v4245
  %v4253 = vadd.f32 %v4182, %v4245
  %v4254 = vadd.f32 %v4183, %v4245
  %v4255 = vadd.f32 %v4184, %v4245
  %v4256 = vadd.f32 %v4185, %v4245
  %v4257 = vadd.f32 %v4186, %v4245
  %v4258 = vadd.f32 %v4187, %v4245
  %v4259 = vadd.f32 %v4188, %v4245
  %v4260 = vadd.f32 %v4189, %v4245
  %v4261 = vadd.f32 %v4190, %v4245
  %v4262 = vadd.f32 %v4191, %v4245
  %v4263 = vadd.f32 %v4192, %v4245
  %v4264 = vadd.f32 %v4193, %v4245
  %v4265 = vadd.f32 %v4194, %v4245
  %v4266 = vadd.f32 %v4195, %v4245
  %v4267 = vadd.f32 %v4196, %v4245
  %v4268 = vadd.f32 %v4197, %v4245
  %v4269 = vadd.f32 %v4198, %v4245
  %v4270 = vadd.f32 %v4199, %v4245
  %v4271 = vadd.f32 %v4200, %v4245
  %v4272 = vadd.f32 %v4201, %v4245
  %v4273 = vadd.f32 %v4202, %v4245
  %v4274 = vadd.f32 %v4203, %v4245
  %v4275 = vadd.f32 %v4204, %v4245
  %v4276 = vadd.f32 %v4205, %v4245
  %v4277 = vadd.f32 %v4206, %v4245
  %v4278 = vadd.f32 %v4207, %v4245
  %v4279 = vadd.f32 %v4208, %v4245
  %v4280 = vadd.f32 %v4209, %v4245
  %v4281 = vadd.f32 %v4210, %v4245
  %v4282 = vadd.f32 %v4211, %v4245
  %v4283 = vadd.f32 %v4212, %v4245
  %v4284 = vadd.f32 %v4213, %v4245
  %v4285 = vadd.f32 %v4214, %v4245
  %v4286 = vadd.f32 %v4215, %v4245
  %v4287 = vadd.f32 %v4216, %v4245
  %v4288 = vadd.f32 %v4217, %v4245
  %v4289 = vadd.f32 %v4218, %v4245
  %v4290 = vadd.f32 %v4219, %v4245
  %v4291 = vadd.f32 %v4220, %v4245
  %v4292 = vadd.f32 %v4221, %v4245
  %v4293 = vadd.f32 %v4222, %v4245
  %v4294 = vadd.f32 %v4223, %v4245
  %v4295 = vadd.f32 %v4224, %v4245
  %v4296 = vadd.f32 %v4225, %v4245
  %v4297 = vadd.f32 %v4226, %v4245
  %v4298 = vadd.f32 %v4227, %v4245
  %v4299 = vadd.f32 %v4228, %v4245
  %v4300 = vadd.f32 %v4229, %v4245
  %v4301 = vadd.f32 %v4230, %v4245
  %v4302 = vadd.f32 %v4231, %v4245
  %v4303 = vadd.f32 %v4232, %v4245
  %v4304 = vadd.f32 %v4233, %v4245
  %v4305 = vadd.f32 %v4234, %v4245
  %v4306 = vadd.f32 %v4235, %v4245
  %v4307 = vadd.f32 %v4236, %v4245
  %v4308 = vadd.f32 %v4237, %v4245
  %v4309 = vadd.f32 %v4238, %v4245
  %v4310 = vadd.f32 %v4239, %v4245
  %v4311 = vmax.f32 %v4247, 0.0
  %v4312 = vmax.f32 %v4248, 0.0
  %v4313 = vmax.f32 %v4249, 0.0
  %v4314 = vmax.f32 %v4250, 0.0
  %v4315 = vmax.f32 %v4251, 0.0
  %v4316 = vmax.f32 %v4252, 0.0
  %v4317 = vmax.f32 %v4253, 0.0
  %v4318 = vmax.f32 %v4254, 0.0
  %v4319 = vmax.f32 %v4255, 0.0
  %v4320 = vmax.f32 %v4256, 0.0
  %v4321 = vmax.f32 %v4257, 0.0
  %v4322 = vmax.f32 %v4258, 0.0
  %v4323 = vmax.f32 %v4259, 0.0
  %v4324 = vmax.f32 %v4260, 0.0
  %v4325 = vmax.f32 %v4261, 0.0
  %v4326 = vmax.f32 %v4262, 0.0
  %v4327 = vmax.f32 %v4263, 0.0
  %v4328 = vmax.f32 %v4264, 0.0
  %v4329 = vmax.f32 %v4265, 0.0
  %v4330 = vmax.f32 %v4266, 0.0
  %v4331 = vmax.f32 %v4267, 0.0
  %v4332 = vmax.f32 %v4268, 0.0
  %v4333 = vmax.f32 %v4269, 0.0
  %v4334 = vmax.f32 %v4270, 0.0
  %v4335 = vmax.f32 %v4271, 0.0
  %v4336 = vmax.f32 %v4272, 0.0
  %v4337 = vmax.f32 %v4273, 0.0
  %v4338 = vmax.f32 %v4274, 0.0
  %v4339 = vmax.f32 %v4275, 0.0
  %v4340 = vmax.f32 %v4276, 0.0
  %v4341 = vmax.f32 %v4277, 0.0
  %v4342 = vmax.f32 %v4278, 0.0
  %v4343 = vmax.f32 %v4279, 0.0
  %v4344 = vmax.f32 %v4280, 0.0
  %v4345 = vmax.f32 %v4281, 0.0
  %v4346 = vmax.f32 %v4282, 0.0
  %v4347 = vmax.f32 %v4283, 0.0
  %v4348 = vmax.f32 %v4284, 0.0
  %v4349 = vmax.f32 %v4285, 0.0
  %v4350 = vmax.f32 %v4286, 0.0
  %v4351 = vmax.f32 %v4287, 0.0
  %v4352 = vmax.f32 %v4288, 0.0
  %v4353 = vmax.f32 %v4289, 0.0
  %v4354 = vmax.f32 %v4290, 0.0
  %v4355 = vmax.f32 %v4291, 0.0
  %v4356 = vmax.f32 %v4292, 0.0
  %v4357 = vmax.f32 %v4293, 0.0
  %v4358 = vmax.f32 %v4294, 0.0
  %v4359 = vmax.f32 %v4295, 0.0
  %v4360 = vmax.f32 %v4296, 0.0
  %v4361 = vmax.f32 %v4297, 0.0
  %v4362 = vmax.f32 %v4298, 0.0
  %v4363 = vmax.f32 %v4299, 0.0
  %v4364 = vmax.f32 %v4300, 0.0
  %v4365 = vmax.f32 %v4301, 0.0
  %v4366 = vmax.f32 %v4302, 0.0
  %v4367 = vmax.f32 %v4303, 0.0
  %v4368 = vmax.f32 %v4304, 0.0
  %v4369 = vmax.f32 %v4305, 0.0
  %v4370 = vmax.f32 %v4306, 0.0
  %v4371 = vmax.f32 %v4307, 0.0
  %v4372 = vmax.f32 %v4308, 0.0
  %v4373 = vmax.f32 %v4309, 0.0
  %v4374 = vmax.f32 %v4310, 0.0
  %v4375 = vld [vmem:[%s4] sm:$0xff]
  %v4376 = vld [vmem:[%s4 + $0x8] sm:$0xff]
  %v4377 = vld [vmem:[%s4 + $0x10] sm:$0xff]
  %v4378 = vld [vmem:[%s4 + $0x18] sm:$0xff]
  %v4379 = vld [vmem:[%s4 + $0x20] sm:$0xff]
  %v4380 = vld [vmem:[%s4 + $0x28] sm:$0xff]
  %v4381 = vld [vmem:[%s4 + $0x30] sm:$0xff]
  %v4382 = vld [vmem:[%s4 + $0x38] sm:$0xff]
  %v4383 = vld [vmem:[%s4 + $0x40] sm:$0xff]
  %v4384 = vld [vmem:[%s4 + $0x48] sm:$0xff]
  %v4385 = vld [vmem:[%s4 + $0x50] sm:$0xff]
  %v4386 = vld [vmem:[%s4 + $0x58] sm:$0xff]
  %v4387 = vld [vmem:[%s4 + $0x60] sm:$0xff]
  %v4388 = vld [vmem:[%s4 + $0x68] sm:$0xff]
  %v4389 = vld [vmem:[%s4 + $0x70] sm:$0xff]
  %v4390 = vld [vmem:[%s4 + $0x78] sm:$0xff]
  %v4391 = vld [vmem:[%s4 + $0x80] sm:$0xff]
  %v4392 = vld [vmem:[%s4 + $0x88] sm:$0xff]
  %v4393 = vld [vmem:[%s4 + $0x90] sm:$0xff]
  %v4394 = vld [vmem:[%s4 + $0x98] sm:$0xff]
  %v4395 = vld [vmem:[%s4 + $0xa0] sm:$0xff]
  %v4396 = vld [vmem:[%s4 + $0xa8] sm:$0xff]
  %v4397 = vld [vmem:[%s4 + $0xb0] sm:$0xff]
  %v4398 = vld [vmem:[%s4 + $0xb8] sm:$0xff]
  %v4399 = vld [vmem:[%s4 + $0xc0] sm:$0xff]
  %v4400 = vld [vmem:[%s4 + $0xc8] sm:$0xff]
  %v4401 = vld [vmem:[%s4 + $0xd0] sm:$0xff]
  %v4402 = vld [vmem:[%s4 + $0xd8] sm:$0xff]
  %v4403 = vld [vmem:[%s4 + $0xe0] sm:$0xff]
  %v4404 = vld [vmem:[%s4 + $0xe8] sm:$0xff]
  %v4405 = vld [vmem:[%s4 + $0xf0] sm:$0xff]
  %v4406 = vld [vmem:[%s4 + $0xf8] sm:$0xff]
  %v4407 = vld [vmem:[%s4 + $0x100] sm:$0xff]
  %v4408 = vld [vmem:[%s4 + $0x108] sm:$0xff]
  %v4409 = vld [vmem:[%s4 + $0x110] sm:$0xff]
  %v4410 = vld [vmem:[%s4 + $0x118] sm:$0xff]
  %v4411 = vld [vmem:[%s4 + $0x120] sm:$0xff]
  %v4412 = vld [vmem:[%s4 + $0x128] sm:$0xff]
  %v4413 = vld [vmem:[%s4 + $0x130] sm:$0xff]
  %v4414 = vld [vmem:[%s4 + $0x138] sm:$0xff]
  %v4415 = vld [vmem:[%s4 + $0x140] sm:$0xff]
  %v4416 = vld [vmem:[%s4 + $0x148] sm:$0xff]
  %v4417 = vld [vmem:[%s4 + $0x150] sm:$0xff]
  %v4418 = vld [vmem:[%s4 + $0x158] sm:$0xff]
  %v4419 = vld [vmem:[%s4 + $0x160] sm:$0xff]
  %v4420 = vld [vmem:[%s4 + $0x168] sm:$0xff]
  %v4421 = vld [vmem:[%s4 + $0x170] sm:$0xff]
  %v4422 = vld [vmem:[%s4 + $0x178] sm:$0xff]
  %v4423 = vld [vmem:[%s4 + $0x180] sm:$0xff]
  %v4424 = vld [vmem:[%s4 + $0x188] sm:$0xff]
  %v4425 = vld [vmem:[%s4 + $0x190] sm:$0xff]
  %v4426 = vld [vmem:[%s4 + $0x198] sm:$0xff]
  %v4427 = vld [vmem:[%s4 + $0x1a0] sm:$0xff]
  %v4428 = vld [vmem:[%s4 + $0x1a8] sm:$0xff]
  %v4429 = vld [vmem:[%s4 + $0x1b0] sm:$0xff]
  %v4430 = vld [vmem:[%s4 + $0x1b8] sm:$0xff]
  %v4431 = vld [vmem:[%s4 + $0x1c0] sm:$0xff]
  %v4432 = vld [vmem:[%s4 + $0x1c8] sm:$0xff]
  %v4433 = vld [vmem:[%s4 + $0x1d0] sm:$0xff]
  %v4434 = vld [vmem:[%s4 + $0x1d8] sm:$0xff]
  %v4435 = vld [vmem:[%s4 + $0x1e0] sm:$0xff]
  %v4436 = vld [vmem:[%s4 + $0x1e8] sm:$0xff]
  %v4437 = vld [vmem:[%s4 + $0x1f0] sm:$0xff]
  %v4438 = vld [vmem:[%s4 + $0x1f8] sm:$0xff]
  %v4439 = vadd.f32 %v4375, %v4311
  %v4440 = vadd.f32 %v4376, %v4312
  %v4441 = vadd.f32 %v4377, %v4313
  %v4442 = vadd.f32 %v4378, %v4314
  %v4443 = vadd.f32 %v4379, %v4315
  %v4444 = vadd.f32 %v4380, %v4316
  %v4445 = vadd.f32 %v4381, %v4317
  %v4446 = vadd.f32 %v4382, %v4318
  %v4447 = vadd.f32 %v4383, %v4319
  %v4448 = vadd.f32 %v4384, %v4320
  %v4449 = vadd.f32 %v4385, %v4321
  %v4450 = vadd.f32 %v4386, %v4322
  %v4451 = vadd.f32 %v4387, %v4323
  %v4452 = vadd.f32 %v4388, %v4324
  %v4453 = vadd.f32 %v4389, %v4325
  %v4454 = vadd.f32 %v4390, %v4326
  %v4455 = vadd.f32 %v4391, %v4327
  %v4456 = vadd.f32 %v4392, %v4328
  %v4457 = vadd.f32 %v4393, %v4329
  %v4458 = vadd.f32 %v4394, %v4330
  %v4459 = vadd.f32 %v4395, %v4331
  %v4460 = vadd.f32 %v4396, %v4332
  %v4461 = vadd.f32 %v4397, %v4333
  %v4462 = vadd.f32 %v4398, %v4334
  %v4463 = vadd.f32 %v4399, %v4335
  %v4464 = vadd.f32 %v4400, %v4336
  %v4465 = vadd.f32 %v4401, %v4337
  %v4466 = vadd.f32 %v4402, %v4338
  %v4467 = vadd.f32 %v4403, %v4339
  %v4468 = vadd.f32 %v4404, %v4340
  %v4469 = vadd.f32 %v4405, %v4341
  %v4470 = vadd.f32 %v4406, %v4342
  %v4471 = vadd.f32 %v4407, %v4343
  %v4472 = vadd.f32 %v4408, %v4344
  %v4473 = vadd.f32 %v4409, %v4345
  %v4474 = vadd.f32 %v4410, %v4346
  %v4475 = vadd.f32 %v4411, %v4347
  %v4476 = vadd.f32 %v4412, %v4348
  %v4477 = vadd.f32 %v4413, %v4349
  %v4478 = vadd.f32 %v4414, %v4350
  %v4479 = vadd.f32 %v4415, %v4351
  %v4480 = vadd.f32 %v4416, %v4352
  %v4481 = vadd.f32 %v4417, %v4353
  %v4482 = vadd.f32 %v4418, %v4354
  %v4483 = vadd.f32 %v4419, %v4355
  %v4484 = vadd.f32 %v4420, %v4356
  %v4485 = vadd.f32 %v4421, %v4357
  %v4486 = vadd.f32 %v4422, %v4358
  %v4487 = vadd.f32 %v4423, %v4359
  %v4488 = vadd.f32 %v4424, %v4360
  %v4489 = vadd.f32 %v4425, %v4361
  %v4490 = vadd.f32 %v4426, %v4362
  %v4491 = vadd.f32 %v4427, %v4363
  %v4492 = vadd.f32 %v4428, %v4364
  %v4493 = vadd.f32 %v4429, %v4365
  %v4494 = vadd.f32 %v4430, %v4366
  %v4495 = vadd.f32 %v4431, %v4367
  %v4496 = vadd.f32 %v4432, %v4368
  %v4497 = vadd.f32 %v4433, %v4369
  %v4498 = vadd.f32 %v4434, %v4370
  %v4499 = vadd.f32 %v4435, %v4371
  %v4500 = vadd.f32 %v4436, %v4372
  %v4501 = vadd.f32 %v4437, %v4373
  %v4502 = vadd.f32 %v4438, %v4374
  %v4503 = vmax.f32 %v4439, 0.0
  %v4504 = vmax.f32 %v4440, 0.0
  %v4505 = vmax.f32 %v4441, 0.0
  %v4506 = vmax.f32 %v4442, 0.0
  %v4507 = vmax.f32 %v4443, 0.0
  %v4508 = vmax.f32 %v4444, 0.0
  %v4509 = vmax.f32 %v4445, 0.0
  %v4510 = vmax.f32 %v4446, 0.0
  %v4511 = vmax.f32 %v4447, 0.0
  %v4512 = vmax.f32 %v4448, 0.0
  %v4513 = vmax.f32 %v4449, 0.0
  %v4514 = vmax.f32 %v4450, 0.0
  %v4515 = vmax.f32 %v4451, 0.0
  %v4516 = vmax.f32 %v4452, 0.0
  %v4517 = vmax.f32 %v4453, 0.0
  %v4518 = vmax.f32 %v4454, 0.0
  %v4519 = vmax.f32 %v4455, 0.0
  %v4520 = vmax.f32 %v4456, 0.0
  %v4521 = vmax.f32 %v4457, 0.0
  %v4522 = vmax.f32 %v4458, 0.0
  %v4523 = vmax.f32 %v4459, 0.0
  %v4524 = vmax.f32 %v4460, 0.0
  %v4525 = vmax.f32 %v4461, 0.0
  %v4526 = vmax.f32 %v4462, 0.0
  %v4527 = vmax.f32 %v4463, 0.0
  %v4528 = vmax.f32 %v4464, 0.0
  %v4529 = vmax.f32 %v4465, 0.0
  %v4530 = vmax.f32 %v4466, 0.0
  %v4531 = vmax.f32 %v4467, 0.0
  %v4532 = vmax.f32 %v4468, 0.0
  %v4533 = vmax.f32 %v4469, 0.0
  %v4534 = vmax.f32 %v4470, 0.0
  %v4535 = vmax.f32 %v4471, 0.0
  %v4536 = vmax.f32 %v4472, 0.0
  %v4537 = vmax.f32 %v4473, 0.0
  %v4538 = vmax.f32 %v4474, 0.0
  %v4539 = vmax.f32 %v4475, 0.0
  %v4540 = vmax.f32 %v4476, 0.0
  %v4541 = vmax.f32 %v4477, 0.0
  %v4542 = vmax.f32 %v4478, 0.0
  %v4543 = vmax.f32 %v4479, 0.0
  %v4544 = vmax.f32 %v4480, 0.0
  %v4545 = vmax.f32 %v4481, 0.0
  %v4546 = vmax.f32 %v4482, 0.0
  %v4547 = vmax.f32 %v4483, 0.0
  %v4548 = vmax.f32 %v4484, 0.0
  %v4549 = vmax.f32 %v4485, 0.0
  %v4550 = vmax.f32 %v4486, 0.0
  %v4551 = vmax.f32 %v4487, 0.0
  %v4552 = vmax.f32 %v4488, 0.0
  %v4553 = vmax.f32 %v4489, 0.0
  %v4554 = vmax.f32 %v4490, 0.0
  %v4555 = vmax.f32 %v4491, 0.0
  %v4556 = vmax.f32 %v4492, 0.0
  %v4557 = vmax.f32 %v4493, 0.0
  %v4558 = vmax.f32 %v4494, 0.0
  %v4559 = vmax.f32 %v4495, 0.0
  %v4560 = vmax.f32 %v4496, 0.0
  %v4561 = vmax.f32 %v4497, 0.0
  %v4562 = vmax.f32 %v4498, 0.0
  %v4563 = vmax.f32 %v4499, 0.0
  %v4564 = vmax.f32 %v4500, 0.0
  %v4565 = vmax.f32 %v4501, 0.0
  %v4566 = vmax.f32 %v4502, 0.0
  %4567 = vst [vmem:[%s5] sm:$0xff] %v4503
  %4568 = vst [vmem:[%s5 + $0x8] sm:$0xff] %v4504
  %4569 = vst [vmem:[%s5 + $0x10] sm:$0xff] %v4505
  %4570 = vst [vmem:[%s5 + $0x18] sm:$0xff] %v4506
  %4571 = vst [vmem:[%s5 + $0x20] sm:$0xff] %v4507
  %4572 = vst [vmem:[%s5 + $0x28] sm:$0xff] %v4508
  %4573 = vst [vmem:[%s5 + $0x30] sm:$0xff] %v4509
  %4574 = vst [vmem:[%s5 + $0x38] sm:$0xff] %v4510
  %4575 = vst [vmem:[%s5 + $0x40] sm:$0xff] %v4511
  %4576 = vst [vmem:[%s5 + $0x48] sm:$0xff] %v4512
  %4577 = vst [vmem:[%s5 + $0x50] sm:$0xff] %v4513
  %4578 = vst [vmem:[%s5 + $0x58] sm:$0xff] %v4514
  %4579 = vst [vmem:[%s5 + $0x60] sm:$0xff] %v4515
  %4580 = vst [vmem:[%s5 + $0x68] sm:$0xff] %v4516
  %4581 = vst [vmem:[%s5 + $0x70] sm:$0xff] %v4517
  %4582 = vst [vmem:[%s5 + $0x78] sm:$0xff] %v4518
  %4583 = vst [vmem:[%s5 + $0x80] sm:$0xff] %v4519
  %4584 = vst [vmem:[%s5 + $0x88] sm:$0xff] %v4520
  %4585 = vst [vmem:[%s5 + $0x90] sm:$0xff] %v4521
  %4586 = vst [vmem:[%s5 + $0x98] sm:$0xff] %v4522
  %4587 = vst [vmem:[%s5 + $0xa0] sm:$0xff] %v4523
  %4588 = vst [vmem:[%s5 + $0xa8] sm:$0xff] %v4524
  %4589 = vst [vmem:[%s5 + $0xb0] sm:$0xff] %v4525
  %4590 = vst [vmem:[%s5 + $0xb8] sm:$0xff] %v4526
  %4591 = vst [vmem:[%s5 + $0xc0] sm:$0xff] %v4527
  %4592 = vst [vmem:[%s5 + $0xc8] sm:$0xff] %v4528
  %4593 = vst [vmem:[%s5 + $0xd0] sm:$0xff] %v4529
  %4594 = vst [vmem:[%s5 + $0xd8] sm:$0xff] %v4530
  %4595 = vst [vmem:[%s5 + $0xe0] sm:$0xff] %v4531
  %4596 = vst [vmem:[%s5 + $0xe8] sm:$0xff] %v4532
  %4597 = vst [vmem:[%s5 + $0xf0] sm:$0xff] %v4533
  %4598 = vst [vmem:[%s5 + $0xf8] sm:$0xff] %v4534
  %4599 = vst [vmem:[%s5 + $0x100] sm:$0xff] %v4535
  %4600 = vst [vmem:[%s5 + $0x108] sm:$0xff] %v4536
  %4601 = vst [vmem:[%s5 + $0x110] sm:$0xff] %v4537
  %4602 = vst [vmem:[%s5 + $0x118] sm:$0xff] %v4538
  %4603 = vst [vmem:[%s5 + $0x120] sm:$0xff] %v4539
  %4604 = vst [vmem:[%s5 + $0x128] sm:$0xff] %v4540
  %4605 = vst [vmem:[%s5 + $0x130] sm:$0xff] %v4541
  %4606 = vst [vmem:[%s5 + $0x138] sm:$0xff] %v4542
  %4607 = vst [vmem:[%s5 + $0x140] sm:$0xff] %v4543
  %4608 = vst [vmem:[%s5 + $0x148] sm:$0xff] %v4544
  %4609 = vst [vmem:[%s5 + $0x150] sm:$0xff] %v4545
  %4610 = vst [vmem:[%s5 + $0x158] sm:$0xff] %v4546
  %4611 = vst [vmem:[%s5 + $0x160] sm:$0xff] %v4547
  %4612 = vst [vmem:[%s5 + $0x168] sm:$0xff] %v4548
  %4613 = vst [vmem:[%s5 + $0x170] sm:$0xff] %v4549
  %4614 = vst [vmem:[%s5 + $0x178] sm:$0xff] %v4550
  %4615 = vst [vmem:[%s5 + $0x180] sm:$0xff] %v4551
  %4616 = vst [vmem:[%s5 + $0x188] sm:$0xff] %v4552
  %4617 = vst [vmem:[%s5 + $0x190] sm:$0xff] %v4553
  %4618 = vst [vmem:[%s5 + $0x198] sm:$0xff] %v4554
  %4619 = vst [vmem:[%s5 + $0x1a0] sm:$0xff] %v4555
  %4620 = vst [vmem:[%s5 + $0x1a8] sm:$0xff] %v4556
  %4621 = vst [vmem:[%s5 + $0x1b0] sm:$0xff] %v4557
  %4622 = vst [vmem:[%s5 + $0x1b8] sm:$0xff] %v4558
  %4623 = vst [vmem:[%s5 + $0x1c0] sm:$0xff] %v4559
  %4624 = vst [vmem:[%s5 + $0x1c8] sm:$0xff] %v4560
  %4625 = vst [vmem:[%s5 + $0x1d0] sm:$0xff] %v4561
  %4626 = vst [vmem:[%s5 + $0x1d8] sm:$0xff] %v4562
  %4627 = vst [vmem:[%s5 + $0x1e0] sm:$0xff] %v4563
  %4628 = vst [vmem:[%s5 + $0x1e8] sm:$0xff] %v4564
  %4629 = vst [vmem:[%s5 + $0x1f0] sm:$0xff] %v4565
  %4630 = vst [vmem:[%s5 + $0x1f8] sm:$0xff] %v4566
  // Predicated region
  $region22: #{residual_block_forward.3} parent=0 // pred_check
    _
  $region23: #{residual_block_forward.3} parent=0 // pred_check_branch
    %4632 = sbr.rel (0) target = $region25
  $region24: #{residual_block_forward.3} parent=0 // pred_region
    _
  $region25: #{residual_block_forward.3} parent=0 // pred_fallthru
    _
  // Predicated region
  $region26: #{residual_block_forward.3} parent=0 // pred_check
    _
  $region27: #{residual_block_forward.3} parent=0 // pred_check_branch
    %4634 = sbr.rel (0) target = $region29
  $region28: #{residual_block_forward.3} parent=0 // pred_region
    _
  $region29: #{residual_block_forward.3} parent=0 // pred_fallthru
    _

</llo_original>
